<compile_context>
chip_gen: v7x
topology: tpu7x:2x2x1
jax: 0.10.0
libtpu: 0.0.40
codegen_flags: <defaults>
</compile_context>

<pallas_src>
import jax
import jax.numpy as jnp
import numpy as np
from jax.experimental import pallas as pl
from jax.experimental.pallas import tpu as pltpu


VMEM_LIMIT_BYTES = 48 * 1024 * 1024   # headroom below v7x's 64 MiB physical VMEM


def _compiler_params():
    return pltpu.CompilerParams(
        dimension_semantics=("parallel",),
        vmem_limit_bytes=VMEM_LIMIT_BYTES,
    )


# ---------------------------------------------------------------------------
# Kernel factories (shapes baked in as Python ints)
# ---------------------------------------------------------------------------

def _make_conv1_kernel(W, OH):
    """conv1 (3x3 valid) + PReLU1, in-kernel im2col via 9 tap slices."""
    R = OH * W                       # full-width output rows

    def kernel(x_ref, w_ref, b_ref, alpha_ref, o_ref):
        # x_ref: (H*W + 2, Cin) flat padded image, w_ref: (9, Cin, C1),
        # b_ref: (1, C1) VMEM, alpha_ref: (1,) SMEM, o_ref: (OH*W, C1).
        acc = jnp.dot(x_ref[0:R, :], w_ref[0],
                      preferred_element_type=jnp.float32)
        for t in range(1, 9):
            i, j = divmod(t, 3)
            off = i * W + j
            acc = acc + jnp.dot(x_ref[off:off + R, :], w_ref[t],
                                preferred_element_type=jnp.float32)
        acc = acc + b_ref[...]
        o_ref[...] = jnp.where(acc >= 0.0, acc, alpha_ref[0] * acc)

    return kernel


def _make_tail_kernel(Hp, Wp):
    """conv2+PReLU2 -> conv3+PReLU3 -> fused 1x1 heads, all in one kernel."""
    OH2, OH3 = Hp - 2, Hp - 4
    R2 = OH2 * Wp + 2                # +2 overcomputed rows: conv3 halo stays in bounds
    R3 = OH3 * Wp

    def kernel(x_ref, w2_ref, b2_ref, w3_ref, b3_ref, wh_ref, bh_ref,
               alphas_ref, o_ref):
        # x_ref: (Hp*Wp + 4, 10) flat padded pooled activation.
        # conv2 + PReLU2 (full-width, in-kernel im2col)
        a2 = jnp.dot(x_ref[0:R2, :], w2_ref[0],
                     preferred_element_type=jnp.float32)
        for t in range(1, 9):
            i, j = divmod(t, 3)
            off = i * Wp + j
            a2 = a2 + jnp.dot(x_ref[off:off + R2, :], w2_ref[t],
                              preferred_element_type=jnp.float32)
        a2 = a2 + b2_ref[...]
        a2 = jnp.where(a2 >= 0.0, a2, alphas_ref[0] * a2)

        # conv3 + PReLU3 -- feature map never leaves VMEM
        a3 = jnp.dot(a2[0:R3, :], w3_ref[0],
                     preferred_element_type=jnp.float32)
        for t in range(1, 9):
            i, j = divmod(t, 3)
            off = i * Wp + j
            a3 = a3 + jnp.dot(a2[off:off + R3, :], w3_ref[t],
                              preferred_element_type=jnp.float32)
        a3 = a3 + b3_ref[...]
        a3 = jnp.where(a3 >= 0.0, a3, alphas_ref[1] * a3)

        # Both 1x1 heads as a single (32, 6) matmul; lane-local 2-way softmax;
        # one fused (rows, 6) store.
        h = jnp.dot(a3, wh_ref[...], preferred_element_type=jnp.float32)
        h = h + bh_ref[...]
        p1 = 1.0 / (1.0 + jnp.exp(h[:, 0:1] - h[:, 1:2]))
        o_ref[...] = jnp.concatenate([1.0 - p1, p1, h[:, 2:6]], axis=-1)

    return kernel


# ---------------------------------------------------------------------------
# pallas_call wrappers (grid over batch images; weights VMEM-resident)
# ---------------------------------------------------------------------------

def conv1_prelu(x_flat, w9, b, alpha, *, W, OH):
    n, rows_in, c_in = x_flat.shape
    c_out = w9.shape[-1]
    R = OH * W
    flops = 2 * n * R * 9 * c_in * c_out
    bytes_accessed = 4 * (x_flat.size + n * R * c_out + w9.size + b.size + alpha.size)
    return pl.pallas_call(
        _make_conv1_kernel(W, OH),
        out_shape=jax.ShapeDtypeStruct((n, R, c_out), jnp.float32),
        grid_spec=pltpu.PrefetchScalarGridSpec(
            num_scalar_prefetch=0,
            grid=(n,),
            in_specs=[
                pl.BlockSpec((None, rows_in, c_in), lambda i: (i, 0, 0)),   # image slab
                pl.BlockSpec((9, c_in, c_out), lambda i: (0, 0, 0)),        # weights (resident)
                pl.BlockSpec((1, c_out), lambda i: (0, 0)),                 # bias (resident)
                pl.BlockSpec(memory_space=pltpu.MemorySpace.SMEM),          # PReLU slope
            ],
            out_specs=pl.BlockSpec((None, R, c_out), lambda i: (i, 0, 0)),
        ),
        compiler_params=_compiler_params(),
        cost_estimate=pl.CostEstimate(flops=flops, transcendentals=0,
                                      bytes_accessed=bytes_accessed),
    )(x_flat, w9, b, alpha)


def conv_tail(xp, w2, b2, w3, b3, wh, bh, alphas, *, Hp, Wp):
    n, rows_in, c1 = xp.shape
    c2, c3, ch = w2.shape[-1], w3.shape[-1], wh.shape[-1]
    OH2, OH3 = Hp - 2, Hp - 4
    R2 = OH2 * Wp + 2
    R3 = OH3 * Wp
    flops = 2 * n * (R2 * 9 * c1 * c2 + R3 * 9 * c2 * c3 + R3 * c3 * ch)
    bytes_accessed = 4 * (xp.size + n * R3 * ch + w2.size + b2.size + w3.size
                          + b3.size + wh.size + bh.size + alphas.size)
    return pl.pallas_call(
        _make_tail_kernel(Hp, Wp),
        out_shape=jax.ShapeDtypeStruct((n, R3, ch), jnp.float32),
        grid_spec=pltpu.PrefetchScalarGridSpec(
            num_scalar_prefetch=0,
            grid=(n,),
            in_specs=[
                pl.BlockSpec((None, rows_in, c1), lambda i: (i, 0, 0)),     # pooled slab
                pl.BlockSpec((9, c1, c2), lambda i: (0, 0, 0)),             # conv2 weights
                pl.BlockSpec((1, c2), lambda i: (0, 0)),                    # conv2 bias
                pl.BlockSpec((9, c2, c3), lambda i: (0, 0, 0)),             # conv3 weights
                pl.BlockSpec((1, c3), lambda i: (0, 0)),                    # conv3 bias
                pl.BlockSpec((c3, ch), lambda i: (0, 0)),                   # fused head weights
                pl.BlockSpec((1, ch), lambda i: (0, 0)),                    # fused head bias
                pl.BlockSpec(memory_space=pltpu.MemorySpace.SMEM),          # PReLU2/3 slopes
            ],
            out_specs=pl.BlockSpec((None, R3, ch), lambda i: (i, 0, 0)),
        ),
        compiler_params=_compiler_params(),
        cost_estimate=pl.CostEstimate(flops=flops, transcendentals=n * R3,
                                      bytes_accessed=bytes_accessed),
    )(xp, w2, b2, w3, b3, wh, bh, alphas)


# ---------------------------------------------------------------------------
# Parameter init / packing (packing done once, outside the forward pass)
# ---------------------------------------------------------------------------

def init_params(key):
    def conv_init(key, cout, cin, kh, kw):
        k1, k2 = jax.random.split(key)
        fan_in = cin * kh * kw
        w = jax.random.normal(k1, (cout, cin, kh, kw), jnp.float32) / np.sqrt(fan_in)
        b = 0.01 * jax.random.normal(k2, (cout,), jnp.float32)
        return w, b

    keys = jax.random.split(key, 5)
    p = {}
    p["conv1_w"], p["conv1_b"] = conv_init(keys[0], 10, 3, 3, 3)
    p["conv2_w"], p["conv2_b"] = conv_init(keys[1], 16, 10, 3, 3)
    p["conv3_w"], p["conv3_b"] = conv_init(keys[2], 32, 16, 3, 3)
    p["conv4_1_w"], p["conv4_1_b"] = conv_init(keys[3], 2, 32, 1, 1)
    p["conv4_2_w"], p["conv4_2_b"] = conv_init(keys[4], 4, 32, 1, 1)
    # nn.PReLU() default: single shared parameter initialized to 0.25
    p["prelu1_a"] = jnp.array([0.25], jnp.float32)
    p["prelu2_a"] = jnp.array([0.25], jnp.float32)
    p["prelu3_a"] = jnp.array([0.25], jnp.float32)
    return p


def pack_params(p):
    def pack3(w):     # (Cout, Cin, 3, 3) -> (9, Cin, Cout), tap index t = i*3 + j
        cout, cin, kh, kw = w.shape
        return jnp.transpose(w, (2, 3, 1, 0)).reshape(kh * kw, cin, cout)

    def pack1(w):     # (Cout, Cin, 1, 1) -> (Cin, Cout)
        return jnp.transpose(w[:, :, 0, 0], (1, 0))

    return {
        "w1": pack3(p["conv1_w"]), "b1": p["conv1_b"].reshape(1, -1),
        "w2": pack3(p["conv2_w"]), "b2": p["conv2_b"].reshape(1, -1),
        "w3": pack3(p["conv3_w"]), "b3": p["conv3_b"].reshape(1, -1),
        "wh": jnp.concatenate([pack1(p["conv4_1_w"]), pack1(p["conv4_2_w"])], axis=1),
        "bh": jnp.concatenate([p["conv4_1_b"], p["conv4_2_b"]]).reshape(1, -1),
        "a1": p["prelu1_a"].reshape(1),
        "a23": jnp.concatenate([p["prelu2_a"], p["prelu3_a"]]).reshape(2),
    }


# ---------------------------------------------------------------------------
# PNet forward (Pallas) and pure-JAX reference
# ---------------------------------------------------------------------------

def pnet_forward(x_nchw, pk):
    n, c, h, w = x_nchw.shape
    oh1, ow1 = h - 2, w - 2
    hp, wp = oh1 // 2, ow1 // 2
    oh3, ow3 = hp - 4, wp - 4

    # conv1 + PReLU1: flat full-width layout, 2 halo pad rows, grid over batch.
    x = jnp.transpose(x_nchw, (0, 2, 3, 1)).reshape(n, h * w, c)
    x = jnp.pad(x, ((0, 0), (0, 2), (0, 0)))
    y = conv1_prelu(x, pk["w1"], pk["b1"], pk["a1"], W=w, OH=oh1)   # (n, oh1*w, 10)

    # pool1: 2x2 stride-2 floor pool as fused XLA slicing (no kernel launch,
    # no tap materialization); also crops the full-width garbage columns.
    y = y.reshape(n, oh1, w, 10)[:, :2 * hp, :2 * wp, :]
    y = jnp.maximum(
        jnp.maximum(y[:, 0::2, 0::2, :], y[:, 0::2, 1::2, :]),
        jnp.maximum(y[:, 1::2, 0::2, :], y[:, 1::2, 1::2, :]))      # (n, hp, wp, 10)

    # conv2 + PReLU2 + conv3 + PReLU3 + both heads in one fused kernel.
    yf = jnp.pad(y.reshape(n, hp * wp, 10), ((0, 0), (0, 4), (0, 0)))
    out = conv_tail(yf, pk["w2"], pk["b2"], pk["w3"], pk["b3"],
                    pk["wh"], pk["bh"], pk["a23"], Hp=hp, Wp=wp)    # (n, oh3*wp, 6)

    out = out.reshape(n, oh3, wp, 6)[:, :, :ow3, :]                 # crop garbage cols
    prob = jnp.transpose(out[..., 0:2], (0, 3, 1, 2))               # -> NCHW
    bbox = jnp.transpose(out[..., 2:6], (0, 3, 1, 2))               # -> NCHW
    return prob, bbox


def pnet_reference(x_nchw, p):
    def conv(x, w, b):
        return jax.lax.conv_general_dilated(
            x, w, window_strides=(1, 1), padding="VALID",
            dimension_numbers=("NCHW", "OIHW", "NCHW"),
        ) + b.reshape(1, -1, 1, 1)

    def prelu(x, a):
        return jnp.where(x >= 0, x, a[0] * x)

    x = prelu(conv(x_nchw, p["conv1_w"], p["conv1_b"]), p["prelu1_a"])
    x = jax.lax.reduce_window(x, -jnp.inf, jax.lax.max,
                              (1, 1, 2, 2), (1, 1, 2, 2), "VALID")
    x = prelu(conv(x, p["conv2_w"], p["conv2_b"]), p["prelu2_a"])
    x = prelu(conv(x, p["conv3_w"], p["conv3_b"]), p["prelu3_a"])
    prob = jax.nn.softmax(conv(x, p["conv4_1_w"], p["conv4_1_b"]), axis=1)
    bbox = conv(x, p["conv4_2_w"], p["conv4_2_b"])
    return prob, bbox


if __name__ == "__main__":
    key = jax.random.PRNGKey(0)
    kx, kp = jax.random.split(key)

    # Small NCHW input consistent with the module (3 input channels).
    x = jax.random.normal(kx, (2, 3, 16, 16), jnp.float32)
    params = init_params(kp)
    packed = pack_params(params)        # packed/concatenated weights, computed once

    prob, bbox = jax.jit(pnet_forward)(x, packed)
    jax.block_until_ready((prob, bbox))

    prob_ref, bbox_ref = pnet_reference(x, params)
    assert prob.shape == (2, 2, 3, 3) and bbox.shape == (2, 4, 3, 3)
    np.testing.assert_allclose(np.asarray(prob), np.asarray(prob_ref),
                               rtol=1e-4, atol=1e-4)
    np.testing.assert_allclose(np.asarray(bbox), np.asarray(bbox_ref),
                               rtol=1e-4, atol=1e-4)

    print("KERNEL_OK")
</pallas_src>

<mosaic_0001>
module attributes {stable_mosaic.version = 11 : i64} {
  func.func @kernel(%arg0: i32, %arg1: memref<1x258x3xf32, #tpu.memory_space<vmem>>, %arg2: memref<9x3x10xf32, #tpu.memory_space<vmem>>, %arg3: memref<1x10xf32, #tpu.memory_space<vmem>>, %arg4: memref<1xf32, #tpu.memory_space<smem>>, %arg5: memref<1x224x10xf32, #tpu.memory_space<vmem>>) attributes {dimension_semantics = [#tpu.dimension_semantics<parallel>], iteration_bounds = array<i64: 2>, scalar_prefetch = 0 : i64, scratch_operands = 0 : i64, tpu.core_type = #tpu.core_type<tc>, window_params = [{transform_indices = @transform_0, window_bounds = array<i64: 1, 258, 3>}, {pipeline_mode = #tpu.pipeline_mode<synchronous>, transform_indices = @transform_1, window_bounds = array<i64: 9, 3, 10>}, {pipeline_mode = #tpu.pipeline_mode<synchronous>, transform_indices = @transform_2, window_bounds = array<i64: 1, 10>}, {transform_indices = @transform_3, window_bounds = array<i64: 1>}, {transform_indices = @transform_4, window_bounds = array<i64: 1, 224, 10>}]} {
    %c0 = arith.constant 0 : index
    %c0_0 = arith.constant 0 : index
    %c0_1 = arith.constant 0 : index
    %0 = vector.load %arg1[%c0, %c0_0, %c0_1] : memref<1x258x3xf32, #tpu.memory_space<vmem>>, vector<1x224x3xf32>
    %1 = vector.shape_cast %0 : vector<1x224x3xf32> to vector<224x3xf32>
    %c0_2 = arith.constant 0 : index
    %c0_3 = arith.constant 0 : index
    %c0_4 = arith.constant 0 : index
    %2 = vector.load %arg2[%c0_2, %c0_3, %c0_4] : memref<9x3x10xf32, #tpu.memory_space<vmem>>, vector<1x3x10xf32>
    %3 = vector.shape_cast %2 : vector<1x3x10xf32> to vector<3x10xf32>
    %cst = arith.constant dense<0.000000e+00> : vector<224x10xf32>
    %4 = tpu.matmul %1, %3, %cst {dimension_numbers = #tpu.dot_dimension_numbers<[1], [0], [0], [1], [0, 0, 1, 1], [], []>} : vector<224x3xf32>, vector<3x10xf32>, vector<224x10xf32> -> vector<224x10xf32>
    %c0_5 = arith.constant 0 : index
    %c1 = arith.constant 1 : index
    %c0_6 = arith.constant 0 : index
    %5 = vector.load %arg1[%c0_5, %c1, %c0_6] : memref<1x258x3xf32, #tpu.memory_space<vmem>>, vector<1x224x3xf32>
    %6 = vector.shape_cast %5 : vector<1x224x3xf32> to vector<224x3xf32>
    %c1_7 = arith.constant 1 : index
    %c0_8 = arith.constant 0 : index
    %c0_9 = arith.constant 0 : index
    %7 = vector.load %arg2[%c1_7, %c0_8, %c0_9] : memref<9x3x10xf32, #tpu.memory_space<vmem>>, vector<1x3x10xf32>
    %8 = vector.shape_cast %7 : vector<1x3x10xf32> to vector<3x10xf32>
    %cst_10 = arith.constant dense<0.000000e+00> : vector<224x10xf32>
    %9 = tpu.matmul %6, %8, %cst_10 {dimension_numbers = #tpu.dot_dimension_numbers<[1], [0], [0], [1], [0, 0, 1, 1], [], []>} : vector<224x3xf32>, vector<3x10xf32>, vector<224x10xf32> -> vector<224x10xf32>
    %10 = arith.addf %4, %9 : vector<224x10xf32>
    %c0_11 = arith.constant 0 : index
    %c2 = arith.constant 2 : index
    %c0_12 = arith.constant 0 : index
    %11 = vector.load %arg1[%c0_11, %c2, %c0_12] : memref<1x258x3xf32, #tpu.memory_space<vmem>>, vector<1x224x3xf32>
    %12 = vector.shape_cast %11 : vector<1x224x3xf32> to vector<224x3xf32>
    %c2_13 = arith.constant 2 : index
    %c0_14 = arith.constant 0 : index
    %c0_15 = arith.constant 0 : index
    %13 = vector.load %arg2[%c2_13, %c0_14, %c0_15] : memref<9x3x10xf32, #tpu.memory_space<vmem>>, vector<1x3x10xf32>
    %14 = vector.shape_cast %13 : vector<1x3x10xf32> to vector<3x10xf32>
    %cst_16 = arith.constant dense<0.000000e+00> : vector<224x10xf32>
    %15 = tpu.matmul %12, %14, %cst_16 {dimension_numbers = #tpu.dot_dimension_numbers<[1], [0], [0], [1], [0, 0, 1, 1], [], []>} : vector<224x3xf32>, vector<3x10xf32>, vector<224x10xf32> -> vector<224x10xf32>
    %16 = arith.addf %10, %15 : vector<224x10xf32>
    %c0_17 = arith.constant 0 : index
    %c16 = arith.constant 16 : index
    %c0_18 = arith.constant 0 : index
    %17 = vector.load %arg1[%c0_17, %c16, %c0_18] : memref<1x258x3xf32, #tpu.memory_space<vmem>>, vector<1x224x3xf32>
    %18 = vector.shape_cast %17 : vector<1x224x3xf32> to vector<224x3xf32>
    %c3 = arith.constant 3 : index
    %c0_19 = arith.constant 0 : index
    %c0_20 = arith.constant 0 : index
    %19 = vector.load %arg2[%c3, %c0_19, %c0_20] : memref<9x3x10xf32, #tpu.memory_space<vmem>>, vector<1x3x10xf32>
    %20 = vector.shape_cast %19 : vector<1x3x10xf32> to vector<3x10xf32>
    %cst_21 = arith.constant dense<0.000000e+00> : vector<224x10xf32>
    %21 = tpu.matmul %18, %20, %cst_21 {dimension_numbers = #tpu.dot_dimension_numbers<[1], [0], [0], [1], [0, 0, 1, 1], [], []>} : vector<224x3xf32>, vector<3x10xf32>, vector<224x10xf32> -> vector<224x10xf32>
    %22 = arith.addf %16, %21 : vector<224x10xf32>
    %c0_22 = arith.constant 0 : index
    %c17 = arith.constant 17 : index
    %c0_23 = arith.constant 0 : index
    %23 = vector.load %arg1[%c0_22, %c17, %c0_23] : memref<1x258x3xf32, #tpu.memory_space<vmem>>, vector<1x224x3xf32>
    %24 = vector.shape_cast %23 : vector<1x224x3xf32> to vector<224x3xf32>
    %c4 = arith.constant 4 : index
    %c0_24 = arith.constant 0 : index
    %c0_25 = arith.constant 0 : index
    %25 = vector.load %arg2[%c4, %c0_24, %c0_25] : memref<9x3x10xf32, #tpu.memory_space<vmem>>, vector<1x3x10xf32>
    %26 = vector.shape_cast %25 : vector<1x3x10xf32> to vector<3x10xf32>
    %cst_26 = arith.constant dense<0.000000e+00> : vector<224x10xf32>
    %27 = tpu.matmul %24, %26, %cst_26 {dimension_numbers = #tpu.dot_dimension_numbers<[1], [0], [0], [1], [0, 0, 1, 1], [], []>} : vector<224x3xf32>, vector<3x10xf32>, vector<224x10xf32> -> vector<224x10xf32>
    %28 = arith.addf %22, %27 : vector<224x10xf32>
    %c0_27 = arith.constant 0 : index
    %c18 = arith.constant 18 : index
    %c0_28 = arith.constant 0 : index
    %29 = vector.load %arg1[%c0_27, %c18, %c0_28] : memref<1x258x3xf32, #tpu.memory_space<vmem>>, vector<1x224x3xf32>
    %30 = vector.shape_cast %29 : vector<1x224x3xf32> to vector<224x3xf32>
    %c5 = arith.constant 5 : index
    %c0_29 = arith.constant 0 : index
    %c0_30 = arith.constant 0 : index
    %31 = vector.load %arg2[%c5, %c0_29, %c0_30] : memref<9x3x10xf32, #tpu.memory_space<vmem>>, vector<1x3x10xf32>
    %32 = vector.shape_cast %31 : vector<1x3x10xf32> to vector<3x10xf32>
    %cst_31 = arith.constant dense<0.000000e+00> : vector<224x10xf32>
    %33 = tpu.matmul %30, %32, %cst_31 {dimension_numbers = #tpu.dot_dimension_numbers<[1], [0], [0], [1], [0, 0, 1, 1], [], []>} : vector<224x3xf32>, vector<3x10xf32>, vector<224x10xf32> -> vector<224x10xf32>
    %34 = arith.addf %28, %33 : vector<224x10xf32>
    %c0_32 = arith.constant 0 : index
    %c32 = arith.constant 32 : index
    %c0_33 = arith.constant 0 : index
    %35 = vector.load %arg1[%c0_32, %c32, %c0_33] : memref<1x258x3xf32, #tpu.memory_space<vmem>>, vector<1x224x3xf32>
    %36 = vector.shape_cast %35 : vector<1x224x3xf32> to vector<224x3xf32>
    %c6 = arith.constant 6 : index
    %c0_34 = arith.constant 0 : index
    %c0_35 = arith.constant 0 : index
    %37 = vector.load %arg2[%c6, %c0_34, %c0_35] : memref<9x3x10xf32, #tpu.memory_space<vmem>>, vector<1x3x10xf32>
    %38 = vector.shape_cast %37 : vector<1x3x10xf32> to vector<3x10xf32>
    %cst_36 = arith.constant dense<0.000000e+00> : vector<224x10xf32>
    %39 = tpu.matmul %36, %38, %cst_36 {dimension_numbers = #tpu.dot_dimension_numbers<[1], [0], [0], [1], [0, 0, 1, 1], [], []>} : vector<224x3xf32>, vector<3x10xf32>, vector<224x10xf32> -> vector<224x10xf32>
    %40 = arith.addf %34, %39 : vector<224x10xf32>
    %c0_37 = arith.constant 0 : index
    %c33 = arith.constant 33 : index
    %c0_38 = arith.constant 0 : index
    %41 = vector.load %arg1[%c0_37, %c33, %c0_38] : memref<1x258x3xf32, #tpu.memory_space<vmem>>, vector<1x224x3xf32>
    %42 = vector.shape_cast %41 : vector<1x224x3xf32> to vector<224x3xf32>
    %c7 = arith.constant 7 : index
    %c0_39 = arith.constant 0 : index
    %c0_40 = arith.constant 0 : index
    %43 = vector.load %arg2[%c7, %c0_39, %c0_40] : memref<9x3x10xf32, #tpu.memory_space<vmem>>, vector<1x3x10xf32>
    %44 = vector.shape_cast %43 : vector<1x3x10xf32> to vector<3x10xf32>
    %cst_41 = arith.constant dense<0.000000e+00> : vector<224x10xf32>
    %45 = tpu.matmul %42, %44, %cst_41 {dimension_numbers = #tpu.dot_dimension_numbers<[1], [0], [0], [1], [0, 0, 1, 1], [], []>} : vector<224x3xf32>, vector<3x10xf32>, vector<224x10xf32> -> vector<224x10xf32>
    %46 = arith.addf %40, %45 : vector<224x10xf32>
    %c0_42 = arith.constant 0 : index
    %c34 = arith.constant 34 : index
    %c0_43 = arith.constant 0 : index
    %47 = vector.load %arg1[%c0_42, %c34, %c0_43] : memref<1x258x3xf32, #tpu.memory_space<vmem>>, vector<1x224x3xf32>
    %48 = vector.shape_cast %47 : vector<1x224x3xf32> to vector<224x3xf32>
    %c8 = arith.constant 8 : index
    %c0_44 = arith.constant 0 : index
    %c0_45 = arith.constant 0 : index
    %49 = vector.load %arg2[%c8, %c0_44, %c0_45] : memref<9x3x10xf32, #tpu.memory_space<vmem>>, vector<1x3x10xf32>
    %50 = vector.shape_cast %49 : vector<1x3x10xf32> to vector<3x10xf32>
    %cst_46 = arith.constant dense<0.000000e+00> : vector<224x10xf32>
    %51 = tpu.matmul %48, %50, %cst_46 {dimension_numbers = #tpu.dot_dimension_numbers<[1], [0], [0], [1], [0, 0, 1, 1], [], []>} : vector<224x3xf32>, vector<3x10xf32>, vector<224x10xf32> -> vector<224x10xf32>
    %52 = arith.addf %46, %51 : vector<224x10xf32>
    %c0_47 = arith.constant 0 : index
    %c0_48 = arith.constant 0 : index
    %53 = vector.load %arg3[%c0_47, %c0_48] : memref<1x10xf32, #tpu.memory_space<vmem>>, vector<1x10xf32>
    %54 = vector.broadcast %53 : vector<1x10xf32> to vector<224x10xf32>
    %55 = arith.addf %52, %54 : vector<224x10xf32>
    %cst_49 = arith.constant 0.000000e+00 : f32
    %56 = vector.broadcast %cst_49 : f32 to vector<224x10xf32>
    %57 = arith.cmpf oge, %55, %56 : vector<224x10xf32>
    %c0_50 = arith.constant 0 : index
    %58 = memref.load %arg4[%c0_50] : memref<1xf32, #tpu.memory_space<smem>>
    %59 = vector.broadcast %58 : f32 to vector<224x10xf32>
    %60 = arith.mulf %59, %55 : vector<224x10xf32>
    %61 = arith.select %57, %55, %60 : vector<224x10xi1>, vector<224x10xf32>
    %c0_51 = arith.constant 0 : index
    %c0_52 = arith.constant 0 : index
    %c0_53 = arith.constant 0 : index
    %62 = vector.load %arg5[%c0_51, %c0_52, %c0_53] : memref<1x224x10xf32, #tpu.memory_space<vmem>>, vector<1x224x10xf32>
    %63 = vector.shape_cast %62 : vector<1x224x10xf32> to vector<224x10xf32>
    %64 = vector.shape_cast %61 : vector<224x10xf32> to vector<1x224x10xf32>
    tpu.vector_store %arg5[%c0_51, %c0_52, %c0_53], %64 {strides = array<i32>} : memref<1x224x10xf32, #tpu.memory_space<vmem>>, vector<1x224x10xf32>,
    return
  }
  func.func @transform_0(%arg0: i32) -> (i32, i32, i32) {
    %c0_i32 = arith.constant 0 : i32
    %c0_i32_0 = arith.constant 0 : i32
    %c0_i32_1 = arith.constant 0 : i32
    return %arg0, %c0_i32, %c0_i32_0 : i32, i32, i32
  }
  func.func @transform_1(%arg0: i32) -> (i32, i32, i32) {
    %c0_i32 = arith.constant 0 : i32
    %c0_i32_0 = arith.constant 0 : i32
    %c0_i32_1 = arith.constant 0 : i32
    %c0_i32_2 = arith.constant 0 : i32
    return %c0_i32, %c0_i32_0, %c0_i32_1 : i32, i32, i32
  }
  func.func @transform_2(%arg0: i32) -> (i32, i32) {
    %c0_i32 = arith.constant 0 : i32
    %c0_i32_0 = arith.constant 0 : i32
    %c0_i32_1 = arith.constant 0 : i32
    return %c0_i32, %c0_i32_0 : i32, i32
  }
  func.func @transform_3(%arg0: i32) -> i32 {
    %c0_i32 = arith.constant 0 : i32
    %c0_i32_0 = arith.constant 0 : i32
    return %c0_i32 : i32
  }
  func.func @transform_4(%arg0: i32) -> (i32, i32, i32) {
    %c0_i32 = arith.constant 0 : i32
    %c0_i32_0 = arith.constant 0 : i32
    %c0_i32_1 = arith.constant 0 : i32
    return %arg0, %c0_i32, %c0_i32_0 : i32, i32, i32
  }
}

module attributes {stable_mosaic.version = 11 : i64} {
  func.func @kernel(%arg0: i32, %arg1: memref<1x53x10xf32, #tpu.memory_space<vmem>>, %arg2: memref<9x10x16xf32, #tpu.memory_space<vmem>>, %arg3: memref<1x16xf32, #tpu.memory_space<vmem>>, %arg4: memref<9x16x32xf32, #tpu.memory_space<vmem>>, %arg5: memref<1x32xf32, #tpu.memory_space<vmem>>, %arg6: memref<32x6xf32, #tpu.memory_space<vmem>>, %arg7: memref<1x6xf32, #tpu.memory_space<vmem>>, %arg8: memref<2xf32, #tpu.memory_space<smem>>, %arg9: memref<1x21x6xf32, #tpu.memory_space<vmem>>) attributes {dimension_semantics = [#tpu.dimension_semantics<parallel>], iteration_bounds = array<i64: 2>, scalar_prefetch = 0 : i64, scratch_operands = 0 : i64, tpu.core_type = #tpu.core_type<tc>, window_params = [{transform_indices = @transform_0, window_bounds = array<i64: 1, 53, 10>}, {pipeline_mode = #tpu.pipeline_mode<synchronous>, transform_indices = @transform_1, window_bounds = array<i64: 9, 10, 16>}, {pipeline_mode = #tpu.pipeline_mode<synchronous>, transform_indices = @transform_2, window_bounds = array<i64: 1, 16>}, {pipeline_mode = #tpu.pipeline_mode<synchronous>, transform_indices = @transform_3, window_bounds = array<i64: 9, 16, 32>}, {pipeline_mode = #tpu.pipeline_mode<synchronous>, transform_indices = @transform_4, window_bounds = array<i64: 1, 32>}, {pipeline_mode = #tpu.pipeline_mode<synchronous>, transform_indices = @transform_5, window_bounds = array<i64: 32, 6>}, {pipeline_mode = #tpu.pipeline_mode<synchronous>, transform_indices = @transform_6, window_bounds = array<i64: 1, 6>}, {transform_indices = @transform_7, window_bounds = array<i64: 2>}, {transform_indices = @transform_8, window_bounds = array<i64: 1, 21, 6>}]} {
    %c0 = arith.constant 0 : index
    %c0_0 = arith.constant 0 : index
    %c0_1 = arith.constant 0 : index
    %0 = vector.load %arg1[%c0, %c0_0, %c0_1] : memref<1x53x10xf32, #tpu.memory_space<vmem>>, vector<1x37x10xf32>
    %1 = vector.shape_cast %0 : vector<1x37x10xf32> to vector<37x10xf32>
    %c0_2 = arith.constant 0 : index
    %c0_3 = arith.constant 0 : index
    %c0_4 = arith.constant 0 : index
    %2 = vector.load %arg2[%c0_2, %c0_3, %c0_4] : memref<9x10x16xf32, #tpu.memory_space<vmem>>, vector<1x10x16xf32>
    %3 = vector.shape_cast %2 : vector<1x10x16xf32> to vector<10x16xf32>
    %cst = arith.constant dense<0.000000e+00> : vector<37x16xf32>
    %4 = tpu.matmul %1, %3, %cst {dimension_numbers = #tpu.dot_dimension_numbers<[1], [0], [0], [1], [0, 0, 1, 1], [], []>} : vector<37x10xf32>, vector<10x16xf32>, vector<37x16xf32> -> vector<37x16xf32>
    %c0_5 = arith.constant 0 : index
    %c1 = arith.constant 1 : index
    %c0_6 = arith.constant 0 : index
    %5 = vector.load %arg1[%c0_5, %c1, %c0_6] : memref<1x53x10xf32, #tpu.memory_space<vmem>>, vector<1x37x10xf32>
    %6 = vector.shape_cast %5 : vector<1x37x10xf32> to vector<37x10xf32>
    %c1_7 = arith.constant 1 : index
    %c0_8 = arith.constant 0 : index
    %c0_9 = arith.constant 0 : index
    %7 = vector.load %arg2[%c1_7, %c0_8, %c0_9] : memref<9x10x16xf32, #tpu.memory_space<vmem>>, vector<1x10x16xf32>
    %8 = vector.shape_cast %7 : vector<1x10x16xf32> to vector<10x16xf32>
    %cst_10 = arith.constant dense<0.000000e+00> : vector<37x16xf32>
    %9 = tpu.matmul %6, %8, %cst_10 {dimension_numbers = #tpu.dot_dimension_numbers<[1], [0], [0], [1], [0, 0, 1, 1], [], []>} : vector<37x10xf32>, vector<10x16xf32>, vector<37x16xf32> -> vector<37x16xf32>
    %10 = arith.addf %4, %9 : vector<37x16xf32>
    %c0_11 = arith.constant 0 : index
    %c2 = arith.constant 2 : index
    %c0_12 = arith.constant 0 : index
    %11 = vector.load %arg1[%c0_11, %c2, %c0_12] : memref<1x53x10xf32, #tpu.memory_space<vmem>>, vector<1x37x10xf32>
    %12 = vector.shape_cast %11 : vector<1x37x10xf32> to vector<37x10xf32>
    %c2_13 = arith.constant 2 : index
    %c0_14 = arith.constant 0 : index
    %c0_15 = arith.constant 0 : index
    %13 = vector.load %arg2[%c2_13, %c0_14, %c0_15] : memref<9x10x16xf32, #tpu.memory_space<vmem>>, vector<1x10x16xf32>
    %14 = vector.shape_cast %13 : vector<1x10x16xf32> to vector<10x16xf32>
    %cst_16 = arith.constant dense<0.000000e+00> : vector<37x16xf32>
    %15 = tpu.matmul %12, %14, %cst_16 {dimension_numbers = #tpu.dot_dimension_numbers<[1], [0], [0], [1], [0, 0, 1, 1], [], []>} : vector<37x10xf32>, vector<10x16xf32>, vector<37x16xf32> -> vector<37x16xf32>
    %16 = arith.addf %10, %15 : vector<37x16xf32>
    %c0_17 = arith.constant 0 : index
    %c7 = arith.constant 7 : index
    %c0_18 = arith.constant 0 : index
    %17 = vector.load %arg1[%c0_17, %c7, %c0_18] : memref<1x53x10xf32, #tpu.memory_space<vmem>>, vector<1x37x10xf32>
    %18 = vector.shape_cast %17 : vector<1x37x10xf32> to vector<37x10xf32>
    %c3 = arith.constant 3 : index
    %c0_19 = arith.constant 0 : index
    %c0_20 = arith.constant 0 : index
    %19 = vector.load %arg2[%c3, %c0_19, %c0_20] : memref<9x10x16xf32, #tpu.memory_space<vmem>>, vector<1x10x16xf32>
    %20 = vector.shape_cast %19 : vector<1x10x16xf32> to vector<10x16xf32>
    %cst_21 = arith.constant dense<0.000000e+00> : vector<37x16xf32>
    %21 = tpu.matmul %18, %20, %cst_21 {dimension_numbers = #tpu.dot_dimension_numbers<[1], [0], [0], [1], [0, 0, 1, 1], [], []>} : vector<37x10xf32>, vector<10x16xf32>, vector<37x16xf32> -> vector<37x16xf32>
    %22 = arith.addf %16, %21 : vector<37x16xf32>
    %c0_22 = arith.constant 0 : index
    %c8 = arith.constant 8 : index
    %c0_23 = arith.constant 0 : index
    %23 = vector.load %arg1[%c0_22, %c8, %c0_23] : memref<1x53x10xf32, #tpu.memory_space<vmem>>, vector<1x37x10xf32>
    %24 = vector.shape_cast %23 : vector<1x37x10xf32> to vector<37x10xf32>
    %c4 = arith.constant 4 : index
    %c0_24 = arith.constant 0 : index
    %c0_25 = arith.constant 0 : index
    %25 = vector.load %arg2[%c4, %c0_24, %c0_25] : memref<9x10x16xf32, #tpu.memory_space<vmem>>, vector<1x10x16xf32>
    %26 = vector.shape_cast %25 : vector<1x10x16xf32> to vector<10x16xf32>
    %cst_26 = arith.constant dense<0.000000e+00> : vector<37x16xf32>
    %27 = tpu.matmul %24, %26, %cst_26 {dimension_numbers = #tpu.dot_dimension_numbers<[1], [0], [0], [1], [0, 0, 1, 1], [], []>} : vector<37x10xf32>, vector<10x16xf32>, vector<37x16xf32> -> vector<37x16xf32>
    %28 = arith.addf %22, %27 : vector<37x16xf32>
    %c0_27 = arith.constant 0 : index
    %c9 = arith.constant 9 : index
    %c0_28 = arith.constant 0 : index
    %29 = vector.load %arg1[%c0_27, %c9, %c0_28] : memref<1x53x10xf32, #tpu.memory_space<vmem>>, vector<1x37x10xf32>
    %30 = vector.shape_cast %29 : vector<1x37x10xf32> to vector<37x10xf32>
    %c5 = arith.constant 5 : index
    %c0_29 = arith.constant 0 : index
    %c0_30 = arith.constant 0 : index
    %31 = vector.load %arg2[%c5, %c0_29, %c0_30] : memref<9x10x16xf32, #tpu.memory_space<vmem>>, vector<1x10x16xf32>
    %32 = vector.shape_cast %31 : vector<1x10x16xf32> to vector<10x16xf32>
    %cst_31 = arith.constant dense<0.000000e+00> : vector<37x16xf32>
    %33 = tpu.matmul %30, %32, %cst_31 {dimension_numbers = #tpu.dot_dimension_numbers<[1], [0], [0], [1], [0, 0, 1, 1], [], []>} : vector<37x10xf32>, vector<10x16xf32>, vector<37x16xf32> -> vector<37x16xf32>
    %34 = arith.addf %28, %33 : vector<37x16xf32>
    %c0_32 = arith.constant 0 : index
    %c14 = arith.constant 14 : index
    %c0_33 = arith.constant 0 : index
    %35 = vector.load %arg1[%c0_32, %c14, %c0_33] : memref<1x53x10xf32, #tpu.memory_space<vmem>>, vector<1x37x10xf32>
    %36 = vector.shape_cast %35 : vector<1x37x10xf32> to vector<37x10xf32>
    %c6 = arith.constant 6 : index
    %c0_34 = arith.constant 0 : index
    %c0_35 = arith.constant 0 : index
    %37 = vector.load %arg2[%c6, %c0_34, %c0_35] : memref<9x10x16xf32, #tpu.memory_space<vmem>>, vector<1x10x16xf32>
    %38 = vector.shape_cast %37 : vector<1x10x16xf32> to vector<10x16xf32>
    %cst_36 = arith.constant dense<0.000000e+00> : vector<37x16xf32>
    %39 = tpu.matmul %36, %38, %cst_36 {dimension_numbers = #tpu.dot_dimension_numbers<[1], [0], [0], [1], [0, 0, 1, 1], [], []>} : vector<37x10xf32>, vector<10x16xf32>, vector<37x16xf32> -> vector<37x16xf32>
    %40 = arith.addf %34, %39 : vector<37x16xf32>
    %c0_37 = arith.constant 0 : index
    %c15 = arith.constant 15 : index
    %c0_38 = arith.constant 0 : index
    %41 = vector.load %arg1[%c0_37, %c15, %c0_38] : memref<1x53x10xf32, #tpu.memory_space<vmem>>, vector<1x37x10xf32>
    %42 = vector.shape_cast %41 : vector<1x37x10xf32> to vector<37x10xf32>
    %c7_39 = arith.constant 7 : index
    %c0_40 = arith.constant 0 : index
    %c0_41 = arith.constant 0 : index
    %43 = vector.load %arg2[%c7_39, %c0_40, %c0_41] : memref<9x10x16xf32, #tpu.memory_space<vmem>>, vector<1x10x16xf32>
    %44 = vector.shape_cast %43 : vector<1x10x16xf32> to vector<10x16xf32>
    %cst_42 = arith.constant dense<0.000000e+00> : vector<37x16xf32>
    %45 = tpu.matmul %42, %44, %cst_42 {dimension_numbers = #tpu.dot_dimension_numbers<[1], [0], [0], [1], [0, 0, 1, 1], [], []>} : vector<37x10xf32>, vector<10x16xf32>, vector<37x16xf32> -> vector<37x16xf32>
    %46 = arith.addf %40, %45 : vector<37x16xf32>
    %c0_43 = arith.constant 0 : index
    %c16 = arith.constant 16 : index
    %c0_44 = arith.constant 0 : index
    %47 = vector.load %arg1[%c0_43, %c16, %c0_44] : memref<1x53x10xf32, #tpu.memory_space<vmem>>, vector<1x37x10xf32>
    %48 = vector.shape_cast %47 : vector<1x37x10xf32> to vector<37x10xf32>
    %c8_45 = arith.constant 8 : index
    %c0_46 = arith.constant 0 : index
    %c0_47 = arith.constant 0 : index
    %49 = vector.load %arg2[%c8_45, %c0_46, %c0_47] : memref<9x10x16xf32, #tpu.memory_space<vmem>>, vector<1x10x16xf32>
    %50 = vector.shape_cast %49 : vector<1x10x16xf32> to vector<10x16xf32>
    %cst_48 = arith.constant dense<0.000000e+00> : vector<37x16xf32>
    %51 = tpu.matmul %48, %50, %cst_48 {dimension_numbers = #tpu.dot_dimension_numbers<[1], [0], [0], [1], [0, 0, 1, 1], [], []>} : vector<37x10xf32>, vector<10x16xf32>, vector<37x16xf32> -> vector<37x16xf32>
    %52 = arith.addf %46, %51 : vector<37x16xf32>
    %c0_49 = arith.constant 0 : index
    %c0_50 = arith.constant 0 : index
    %53 = vector.load %arg3[%c0_49, %c0_50] : memref<1x16xf32, #tpu.memory_space<vmem>>, vector<1x16xf32>
    %54 = vector.broadcast %53 : vector<1x16xf32> to vector<37x16xf32>
    %55 = arith.addf %52, %54 : vector<37x16xf32>
    %cst_51 = arith.constant 0.000000e+00 : f32
    %56 = vector.broadcast %cst_51 : f32 to vector<37x16xf32>
    %57 = arith.cmpf oge, %55, %56 : vector<37x16xf32>
    %c0_52 = arith.constant 0 : index
    %58 = memref.load %arg8[%c0_52] : memref<2xf32, #tpu.memory_space<smem>>
    %59 = vector.broadcast %58 : f32 to vector<37x16xf32>
    %60 = arith.mulf %59, %55 : vector<37x16xf32>
    %61 = arith.select %57, %55, %60 : vector<37x16xi1>, vector<37x16xf32>
    %62 = vector.extract_strided_slice %61 {offsets = [0, 0], sizes = [21, 16], strides = [1, 1]} : vector<37x16xf32> to vector<21x16xf32>
    %c0_53 = arith.constant 0 : index
    %c0_54 = arith.constant 0 : index
    %c0_55 = arith.constant 0 : index
    %63 = vector.load %arg4[%c0_53, %c0_54, %c0_55] : memref<9x16x32xf32, #tpu.memory_space<vmem>>, vector<1x16x32xf32>
    %64 = vector.shape_cast %63 : vector<1x16x32xf32> to vector<16x32xf32>
    %cst_56 = arith.constant dense<0.000000e+00> : vector<21x32xf32>
    %65 = tpu.matmul %62, %64, %cst_56 {dimension_numbers = #tpu.dot_dimension_numbers<[1], [0], [0], [1], [0, 0, 1, 1], [], []>} : vector<21x16xf32>, vector<16x32xf32>, vector<21x32xf32> -> vector<21x32xf32>
    %66 = vector.extract_strided_slice %61 {offsets = [1, 0], sizes = [21, 16], strides = [1, 1]} : vector<37x16xf32> to vector<21x16xf32>
    %c1_57 = arith.constant 1 : index
    %c0_58 = arith.constant 0 : index
    %c0_59 = arith.constant 0 : index
    %67 = vector.load %arg4[%c1_57, %c0_58, %c0_59] : memref<9x16x32xf32, #tpu.memory_space<vmem>>, vector<1x16x32xf32>
    %68 = vector.shape_cast %67 : vector<1x16x32xf32> to vector<16x32xf32>
    %cst_60 = arith.constant dense<0.000000e+00> : vector<21x32xf32>
    %69 = tpu.matmul %66, %68, %cst_60 {dimension_numbers = #tpu.dot_dimension_numbers<[1], [0], [0], [1], [0, 0, 1, 1], [], []>} : vector<21x16xf32>, vector<16x32xf32>, vector<21x32xf32> -> vector<21x32xf32>
    %70 = arith.addf %65, %69 : vector<21x32xf32>
    %71 = vector.extract_strided_slice %61 {offsets = [2, 0], sizes = [21, 16], strides = [1, 1]} : vector<37x16xf32> to vector<21x16xf32>
    %c2_61 = arith.constant 2 : index
    %c0_62 = arith.constant 0 : index
    %c0_63 = arith.constant 0 : index
    %72 = vector.load %arg4[%c2_61, %c0_62, %c0_63] : memref<9x16x32xf32, #tpu.memory_space<vmem>>, vector<1x16x32xf32>
    %73 = vector.shape_cast %72 : vector<1x16x32xf32> to vector<16x32xf32>
    %cst_64 = arith.constant dense<0.000000e+00> : vector<21x32xf32>
    %74 = tpu.matmul %71, %73, %cst_64 {dimension_numbers = #tpu.dot_dimension_numbers<[1], [0], [0], [1], [0, 0, 1, 1], [], []>} : vector<21x16xf32>, vector<16x32xf32>, vector<21x32xf32> -> vector<21x32xf32>
    %75 = arith.addf %70, %74 : vector<21x32xf32>
    %76 = vector.extract_strided_slice %61 {offsets = [7, 0], sizes = [21, 16], strides = [1, 1]} : vector<37x16xf32> to vector<21x16xf32>
    %c3_65 = arith.constant 3 : index
    %c0_66 = arith.constant 0 : index
    %c0_67 = arith.constant 0 : index
    %77 = vector.load %arg4[%c3_65, %c0_66, %c0_67] : memref<9x16x32xf32, #tpu.memory_space<vmem>>, vector<1x16x32xf32>
    %78 = vector.shape_cast %77 : vector<1x16x32xf32> to vector<16x32xf32>
    %cst_68 = arith.constant dense<0.000000e+00> : vector<21x32xf32>
    %79 = tpu.matmul %76, %78, %cst_68 {dimension_numbers = #tpu.dot_dimension_numbers<[1], [0], [0], [1], [0, 0, 1, 1], [], []>} : vector<21x16xf32>, vector<16x32xf32>, vector<21x32xf32> -> vector<21x32xf32>
    %80 = arith.addf %75, %79 : vector<21x32xf32>
    %81 = vector.extract_strided_slice %61 {offsets = [8, 0], sizes = [21, 16], strides = [1, 1]} : vector<37x16xf32> to vector<21x16xf32>
    %c4_69 = arith.constant 4 : index
    %c0_70 = arith.constant 0 : index
    %c0_71 = arith.constant 0 : index
    %82 = vector.load %arg4[%c4_69, %c0_70, %c0_71] : memref<9x16x32xf32, #tpu.memory_space<vmem>>, vector<1x16x32xf32>
    %83 = vector.shape_cast %82 : vector<1x16x32xf32> to vector<16x32xf32>
    %cst_72 = arith.constant dense<0.000000e+00> : vector<21x32xf32>
    %84 = tpu.matmul %81, %83, %cst_72 {dimension_numbers = #tpu.dot_dimension_numbers<[1], [0], [0], [1], [0, 0, 1, 1], [], []>} : vector<21x16xf32>, vector<16x32xf32>, vector<21x32xf32> -> vector<21x32xf32>
    %85 = arith.addf %80, %84 : vector<21x32xf32>
    %86 = vector.extract_strided_slice %61 {offsets = [9, 0], sizes = [21, 16], strides = [1, 1]} : vector<37x16xf32> to vector<21x16xf32>
    %c5_73 = arith.constant 5 : index
    %c0_74 = arith.constant 0 : index
    %c0_75 = arith.constant 0 : index
    %87 = vector.load %arg4[%c5_73, %c0_74, %c0_75] : memref<9x16x32xf32, #tpu.memory_space<vmem>>, vector<1x16x32xf32>
    %88 = vector.shape_cast %87 : vector<1x16x32xf32> to vector<16x32xf32>
    %cst_76 = arith.constant dense<0.000000e+00> : vector<21x32xf32>
    %89 = tpu.matmul %86, %88, %cst_76 {dimension_numbers = #tpu.dot_dimension_numbers<[1], [0], [0], [1], [0, 0, 1, 1], [], []>} : vector<21x16xf32>, vector<16x32xf32>, vector<21x32xf32> -> vector<21x32xf32>
    %90 = arith.addf %85, %89 : vector<21x32xf32>
    %91 = vector.extract_strided_slice %61 {offsets = [14, 0], sizes = [21, 16], strides = [1, 1]} : vector<37x16xf32> to vector<21x16xf32>
    %c6_77 = arith.constant 6 : index
    %c0_78 = arith.constant 0 : index
    %c0_79 = arith.constant 0 : index
    %92 = vector.load %arg4[%c6_77, %c0_78, %c0_79] : memref<9x16x32xf32, #tpu.memory_space<vmem>>, vector<1x16x32xf32>
    %93 = vector.shape_cast %92 : vector<1x16x32xf32> to vector<16x32xf32>
    %cst_80 = arith.constant dense<0.000000e+00> : vector<21x32xf32>
    %94 = tpu.matmul %91, %93, %cst_80 {dimension_numbers = #tpu.dot_dimension_numbers<[1], [0], [0], [1], [0, 0, 1, 1], [], []>} : vector<21x16xf32>, vector<16x32xf32>, vector<21x32xf32> -> vector<21x32xf32>
    %95 = arith.addf %90, %94 : vector<21x32xf32>
    %96 = vector.extract_strided_slice %61 {offsets = [15, 0], sizes = [21, 16], strides = [1, 1]} : vector<37x16xf32> to vector<21x16xf32>
    %c7_81 = arith.constant 7 : index
    %c0_82 = arith.constant 0 : index
    %c0_83 = arith.constant 0 : index
    %97 = vector.load %arg4[%c7_81, %c0_82, %c0_83] : memref<9x16x32xf32, #tpu.memory_space<vmem>>, vector<1x16x32xf32>
    %98 = vector.shape_cast %97 : vector<1x16x32xf32> to vector<16x32xf32>
    %cst_84 = arith.constant dense<0.000000e+00> : vector<21x32xf32>
    %99 = tpu.matmul %96, %98, %cst_84 {dimension_numbers = #tpu.dot_dimension_numbers<[1], [0], [0], [1], [0, 0, 1, 1], [], []>} : vector<21x16xf32>, vector<16x32xf32>, vector<21x32xf32> -> vector<21x32xf32>
    %100 = arith.addf %95, %99 : vector<21x32xf32>
    %101 = vector.extract_strided_slice %61 {offsets = [16, 0], sizes = [21, 16], strides = [1, 1]} : vector<37x16xf32> to vector<21x16xf32>
    %c8_85 = arith.constant 8 : index
    %c0_86 = arith.constant 0 : index
    %c0_87 = arith.constant 0 : index
    %102 = vector.load %arg4[%c8_85, %c0_86, %c0_87] : memref<9x16x32xf32, #tpu.memory_space<vmem>>, vector<1x16x32xf32>
    %103 = vector.shape_cast %102 : vector<1x16x32xf32> to vector<16x32xf32>
    %cst_88 = arith.constant dense<0.000000e+00> : vector<21x32xf32>
    %104 = tpu.matmul %101, %103, %cst_88 {dimension_numbers = #tpu.dot_dimension_numbers<[1], [0], [0], [1], [0, 0, 1, 1], [], []>} : vector<21x16xf32>, vector<16x32xf32>, vector<21x32xf32> -> vector<21x32xf32>
    %105 = arith.addf %100, %104 : vector<21x32xf32>
    %c0_89 = arith.constant 0 : index
    %c0_90 = arith.constant 0 : index
    %106 = vector.load %arg5[%c0_89, %c0_90] : memref<1x32xf32, #tpu.memory_space<vmem>>, vector<1x32xf32>
    %107 = vector.broadcast %106 : vector<1x32xf32> to vector<21x32xf32>
    %108 = arith.addf %105, %107 : vector<21x32xf32>
    %cst_91 = arith.constant 0.000000e+00 : f32
    %109 = vector.broadcast %cst_91 : f32 to vector<21x32xf32>
    %110 = arith.cmpf oge, %108, %109 : vector<21x32xf32>
    %c1_92 = arith.constant 1 : index
    %111 = memref.load %arg8[%c1_92] : memref<2xf32, #tpu.memory_space<smem>>
    %112 = vector.broadcast %111 : f32 to vector<21x32xf32>
    %113 = arith.mulf %112, %108 : vector<21x32xf32>
    %114 = arith.select %110, %108, %113 : vector<21x32xi1>, vector<21x32xf32>
    %c0_93 = arith.constant 0 : index
    %c0_94 = arith.constant 0 : index
    %115 = vector.load %arg6[%c0_93, %c0_94] : memref<32x6xf32, #tpu.memory_space<vmem>>, vector<32x6xf32>
    %cst_95 = arith.constant dense<0.000000e+00> : vector<21x6xf32>
    %116 = tpu.matmul %114, %115, %cst_95 {dimension_numbers = #tpu.dot_dimension_numbers<[1], [0], [0], [1], [0, 0, 1, 1], [], []>} : vector<21x32xf32>, vector<32x6xf32>, vector<21x6xf32> -> vector<21x6xf32>
    %c0_96 = arith.constant 0 : index
    %c0_97 = arith.constant 0 : index
    %117 = vector.load %arg7[%c0_96, %c0_97] : memref<1x6xf32, #tpu.memory_space<vmem>>, vector<1x6xf32>
    %118 = vector.broadcast %117 : vector<1x6xf32> to vector<21x6xf32>
    %119 = arith.addf %116, %118 : vector<21x6xf32>
    %120 = vector.extract_strided_slice %119 {offsets = [0, 0], sizes = [21, 1], strides = [1, 1]} : vector<21x6xf32> to vector<21x1xf32>
    %121 = vector.extract_strided_slice %119 {offsets = [0, 1], sizes = [21, 1], strides = [1, 1]} : vector<21x6xf32> to vector<21x1xf32>
    %122 = arith.subf %120, %121 : vector<21x1xf32>
    %123 = math.exp %122 : vector<21x1xf32>
    %cst_98 = arith.constant 1.000000e+00 : f32
    %124 = vector.broadcast %cst_98 : f32 to vector<21x1xf32>
    %125 = arith.addf %124, %123 : vector<21x1xf32>
    %cst_99 = arith.constant 1.000000e+00 : f32
    %126 = vector.broadcast %cst_99 : f32 to vector<21x1xf32>
    %127 = arith.divf %126, %125 : vector<21x1xf32>
    %cst_100 = arith.constant 1.000000e+00 : f32
    %128 = vector.broadcast %cst_100 : f32 to vector<21x1xf32>
    %129 = arith.subf %128, %127 : vector<21x1xf32>
    %130 = vector.extract_strided_slice %119 {offsets = [0, 2], sizes = [21, 4], strides = [1, 1]} : vector<21x6xf32> to vector<21x4xf32>
    %131 = tpu.concatenate %129, %127, %130 in 1 : vector<21x1xf32>, vector<21x1xf32>, vector<21x4xf32> -> vector<21x6xf32>
    %c0_101 = arith.constant 0 : index
    %c0_102 = arith.constant 0 : index
    %c0_103 = arith.constant 0 : index
    %132 = vector.load %arg9[%c0_101, %c0_102, %c0_103] : memref<1x21x6xf32, #tpu.memory_space<vmem>>, vector<1x21x6xf32>
    %133 = vector.shape_cast %132 : vector<1x21x6xf32> to vector<21x6xf32>
    %134 = vector.shape_cast %131 : vector<21x6xf32> to vector<1x21x6xf32>
    tpu.vector_store %arg9[%c0_101, %c0_102, %c0_103], %134 {strides = array<i32>} : memref<1x21x6xf32, #tpu.memory_space<vmem>>, vector<1x21x6xf32>,
    return
  }
  func.func @transform_0(%arg0: i32) -> (i32, i32, i32) {
    %c0_i32 = arith.constant 0 : i32
    %c0_i32_0 = arith.constant 0 : i32
    %c0_i32_1 = arith.constant 0 : i32
    return %arg0, %c0_i32, %c0_i32_0 : i32, i32, i32
  }
  func.func @transform_1(%arg0: i32) -> (i32, i32, i32) {
    %c0_i32 = arith.constant 0 : i32
    %c0_i32_0 = arith.constant 0 : i32
    %c0_i32_1 = arith.constant 0 : i32
    %c0_i32_2 = arith.constant 0 : i32
    return %c0_i32, %c0_i32_0, %c0_i32_1 : i32, i32, i32
  }
  func.func @transform_2(%arg0: i32) -> (i32, i32) {
    %c0_i32 = arith.constant 0 : i32
    %c0_i32_0 = arith.constant 0 : i32
    %c0_i32_1 = arith.constant 0 : i32
    return %c0_i32, %c0_i32_0 : i32, i32
  }
  func.func @transform_3(%arg0: i32) -> (i32, i32, i32) {
    %c0_i32 = arith.constant 0 : i32
    %c0_i32_0 = arith.constant 0 : i32
    %c0_i32_1 = arith.constant 0 : i32
    %c0_i32_2 = arith.constant 0 : i32
    return %c0_i32, %c0_i32_0, %c0_i32_1 : i32, i32, i32
  }
  func.func @transform_4(%arg0: i32) -> (i32, i32) {
    %c0_i32 = arith.constant 0 : i32
    %c0_i32_0 = arith.constant 0 : i32
    %c0_i32_1 = arith.constant 0 : i32
    return %c0_i32, %c0_i32_0 : i32, i32
  }
  func.func @transform_5(%arg0: i32) -> (i32, i32) {
    %c0_i32 = arith.constant 0 : i32
    %c0_i32_0 = arith.constant 0 : i32
    %c0_i32_1 = arith.constant 0 : i32
    return %c0_i32, %c0_i32_0 : i32, i32
  }
  func.func @transform_6(%arg0: i32) -> (i32, i32) {
    %c0_i32 = arith.constant 0 : i32
    %c0_i32_0 = arith.constant 0 : i32
    %c0_i32_1 = arith.constant 0 : i32
    return %c0_i32, %c0_i32_0 : i32, i32
  }
  func.func @transform_7(%arg0: i32) -> i32 {
    %c0_i32 = arith.constant 0 : i32
    %c0_i32_0 = arith.constant 0 : i32
    return %c0_i32 : i32
  }
  func.func @transform_8(%arg0: i32) -> (i32, i32, i32) {
    %c0_i32 = arith.constant 0 : i32
    %c0_i32_0 = arith.constant 0 : i32
    %c0_i32_1 = arith.constant 0 : i32
    return %arg0, %c0_i32, %c0_i32_0 : i32, i32, i32
  }
}

</mosaic_0001>

<llo_original>
// kernel: pnet_forward.3
$region0: #{pnet_forward.3}
  #allocation0 [shape = 'u32[]', space=smem, size = 0x4, offset = 0x4, fixed_abs, tag = 'smem constant byte address 0x4 - core index']
  #allocation1 [shape = 'u32[144,128]{1,0:T(1,128)}', space=vmem, size = 0x12000, scoped, tag = 'internal scratch']
  %s0 = inlined_call_operand.vmem [shape: f32[2,53,10], index: 0, kind: input, shape index: {}]
  %s1 = inlined_call_operand.vmem [shape: f32[9,10,16], index: 1, kind: input, shape index: {}]
  %s2 = inlined_call_operand.vmem [shape: f32[1,16], index: 2, kind: input, shape index: {}]
  %s3 = inlined_call_operand.vmem [shape: f32[9,16,32], index: 3, kind: input, shape index: {}]
  %s4 = inlined_call_operand.vmem [shape: f32[1,32], index: 4, kind: input, shape index: {}]
  %s5 = inlined_call_operand.vmem [shape: f32[32,6], index: 5, kind: input, shape index: {}]
  %s6 = inlined_call_operand.vmem [shape: f32[1,6], index: 6, kind: input, shape index: {}]
  %s7 = inlined_call_operand.vmem [shape: f32[2], index: 7, kind: input, shape index: {}]
  %s8 = inlined_call_operand.vmem [shape: f32[2,21,6], index: 8, kind: output, shape index: {}]
  %s9 = sld [smem:[#allocation0]]
  $region69: #{pnet_forward.3} parent=0
    _
  %s11 = ssub.s32 1, %s9
  %s12 = scalar_select 0, %s11, %s9
  $region1: #{pnet_forward.3} parent=0
    #allocation2 [shape = 'u8[512]{0}', space=smem, size = 0x200, scoped, tag = 'input window, operand 7, single buffered']
    #allocation3 [shape = 's32[2]{0}', space=sflag, size = 0x8, scoped, tag = 'scoped memory for pnet_forward.3']
    %13 = vsyncpa [#allocation3], 0
    loop: start=0, step=1, limit=4
    $region2: #{pnet_forward.3} parent=1 // loop_pre_header
      _
    $region3: #{pnet_forward.3} parent=1 // loop_header
      %s15 = sphi 0, %s19
      %p16 = scmp.ge.s32.totalorder %s15, 4
      %s25 = sphi 0, %s27
      %s28 = sphi 0, %s25
      %s29 = sphi 0, %s28
      %s45 = sphi 0, %s29
      %s49 = sphi 0, %s49
      %s51 = sphi 0, %s49
      %s52 = sphi 0, %s51
      %s66 = sphi 0, %s52
      %s70 = sphi 0, %s70
      %s72 = sphi 0, %s70
      %s73 = sphi 0, %s72
      %s87 = sphi 0, %s73
      %s91 = sphi 0, %s91
      %s93 = sphi 0, %s91
      %s94 = sphi 0, %s93
      %s108 = sphi 0, %s94
      %s112 = sphi 0, %s112
      %s114 = sphi 0, %s112
      %s115 = sphi 0, %s114
      %s129 = sphi 0, %s115
      %s133 = sphi 0, %s133
      %s135 = sphi 0, %s133
      %s136 = sphi 0, %s135
      %s150 = sphi 0, %s136
      %s154 = sphi 0, %s154
      %s156 = sphi 0, %s154
      %s157 = sphi 0, %s156
      %s171 = sphi 0, %s157
      %s175 = sphi 0, %s175
      %s177 = sphi 0, %s175
      %s178 = sphi 0, %s177
      %s192 = sphi 0, %s178
      %s198 = sphi 0, %s200
      %s201 = sphi 0, %s198
      %s202 = sphi 0, %s201
      %s218 = sphi 0, %s202
    $region4: #{pnet_forward.3} parent=1 // loop_header_branch
      %18 = sbr.rel (%p16) target = $region8
    $region5: #{pnet_forward.3} parent=1 // loop_body
      %s20 = ssub.s32 %s15, 1
      %s21 = ssub.s32 %s15, 2
      %s22 = sadd.s32 %s15, 1
      %s23 = ssub.s32 %s15, %s22
      %p24 = scmp.eq.s32.totalorder %s23, 0
      %s26 = sadd.s32 %s25, 1
      %s27 = scalar_select %p24, %s25, %s26
      %p30 = pneg %p24
      %p31 = scmp.eq.s32.totalorder %s15, 1
      %p32 = por %p30, %p31
      %p33 = scmp.ne.s32.totalorder %s25, %s28
      %p34 = scmp.eq.s32.totalorder %s15, 0
      %p35 = por %p33, %p34
      %p36 = scmp.ne.s32.totalorder %s25, %s28
      %p37 = scmp.eq.s32.totalorder %s20, 1
      %p38 = por %p36, %p37
      %p39 = scmp.ne.s32.totalorder %s28, %s29
      %p40 = scmp.eq.s32.totalorder %s20, 0
      %p41 = por %p39, %p40
      %p42 = scmp.ne.s32.totalorder %s28, %s29
      %p43 = scmp.eq.s32.totalorder %s21, 1
      %p44 = por %p42, %p43
      %p46 = scmp.ne.s32.totalorder %s29, %s45
      %p47 = scmp.eq.s32.totalorder %s21, 0
      %p48 = por %p46, %p47
      %s50 = sadd.s32 %s49, 1
      %p53 = scmp.eq.s32.totalorder %s15, 1
      %p54 = scmp.ne.s32.totalorder %s49, %s51
      %p55 = scmp.eq.s32.totalorder %s15, 0
      %p56 = por %p54, %p55
      %p57 = scmp.ne.s32.totalorder %s49, %s51
      %p58 = scmp.eq.s32.totalorder %s20, 1
      %p59 = por %p57, %p58
      %p60 = scmp.ne.s32.totalorder %s51, %s52
      %p61 = scmp.eq.s32.totalorder %s20, 0
      %p62 = por %p60, %p61
      %p63 = scmp.ne.s32.totalorder %s51, %s52
      %p64 = scmp.eq.s32.totalorder %s21, 1
      %p65 = por %p63, %p64
      %p67 = scmp.ne.s32.totalorder %s52, %s66
      %p68 = scmp.eq.s32.totalorder %s21, 0
      %p69 = por %p67, %p68
      %s71 = sadd.s32 %s70, 1
      %p74 = scmp.eq.s32.totalorder %s15, 1
      %p75 = scmp.ne.s32.totalorder %s70, %s72
      %p76 = scmp.eq.s32.totalorder %s15, 0
      %p77 = por %p75, %p76
      %p78 = scmp.ne.s32.totalorder %s70, %s72
      %p79 = scmp.eq.s32.totalorder %s20, 1
      %p80 = por %p78, %p79
      %p81 = scmp.ne.s32.totalorder %s72, %s73
      %p82 = scmp.eq.s32.totalorder %s20, 0
      %p83 = por %p81, %p82
      %p84 = scmp.ne.s32.totalorder %s72, %s73
      %p85 = scmp.eq.s32.totalorder %s21, 1
      %p86 = por %p84, %p85
      %p88 = scmp.ne.s32.totalorder %s73, %s87
      %p89 = scmp.eq.s32.totalorder %s21, 0
      %p90 = por %p88, %p89
      %s92 = sadd.s32 %s91, 1
      %p95 = scmp.eq.s32.totalorder %s15, 1
      %p96 = scmp.ne.s32.totalorder %s91, %s93
      %p97 = scmp.eq.s32.totalorder %s15, 0
      %p98 = por %p96, %p97
      %p99 = scmp.ne.s32.totalorder %s91, %s93
      %p100 = scmp.eq.s32.totalorder %s20, 1
      %p101 = por %p99, %p100
      %p102 = scmp.ne.s32.totalorder %s93, %s94
      %p103 = scmp.eq.s32.totalorder %s20, 0
      %p104 = por %p102, %p103
      %p105 = scmp.ne.s32.totalorder %s93, %s94
      %p106 = scmp.eq.s32.totalorder %s21, 1
      %p107 = por %p105, %p106
      %p109 = scmp.ne.s32.totalorder %s94, %s108
      %p110 = scmp.eq.s32.totalorder %s21, 0
      %p111 = por %p109, %p110
      %s113 = sadd.s32 %s112, 1
      %p116 = scmp.eq.s32.totalorder %s15, 1
      %p117 = scmp.ne.s32.totalorder %s112, %s114
      %p118 = scmp.eq.s32.totalorder %s15, 0
      %p119 = por %p117, %p118
      %p120 = scmp.ne.s32.totalorder %s112, %s114
      %p121 = scmp.eq.s32.totalorder %s20, 1
      %p122 = por %p120, %p121
      %p123 = scmp.ne.s32.totalorder %s114, %s115
      %p124 = scmp.eq.s32.totalorder %s20, 0
      %p125 = por %p123, %p124
      %p126 = scmp.ne.s32.totalorder %s114, %s115
      %p127 = scmp.eq.s32.totalorder %s21, 1
      %p128 = por %p126, %p127
      %p130 = scmp.ne.s32.totalorder %s115, %s129
      %p131 = scmp.eq.s32.totalorder %s21, 0
      %p132 = por %p130, %p131
      %s134 = sadd.s32 %s133, 1
      %p137 = scmp.eq.s32.totalorder %s15, 1
      %p138 = scmp.ne.s32.totalorder %s133, %s135
      %p139 = scmp.eq.s32.totalorder %s15, 0
      %p140 = por %p138, %p139
      %p141 = scmp.ne.s32.totalorder %s133, %s135
      %p142 = scmp.eq.s32.totalorder %s20, 1
      %p143 = por %p141, %p142
      %p144 = scmp.ne.s32.totalorder %s135, %s136
      %p145 = scmp.eq.s32.totalorder %s20, 0
      %p146 = por %p144, %p145
      %p147 = scmp.ne.s32.totalorder %s135, %s136
      %p148 = scmp.eq.s32.totalorder %s21, 1
      %p149 = por %p147, %p148
      %p151 = scmp.ne.s32.totalorder %s136, %s150
      %p152 = scmp.eq.s32.totalorder %s21, 0
      %p153 = por %p151, %p152
      %s155 = sadd.s32 %s154, 1
      %p158 = scmp.eq.s32.totalorder %s15, 1
      %p159 = scmp.ne.s32.totalorder %s154, %s156
      %p160 = scmp.eq.s32.totalorder %s15, 0
      %p161 = por %p159, %p160
      %p162 = scmp.ne.s32.totalorder %s154, %s156
      %p163 = scmp.eq.s32.totalorder %s20, 1
      %p164 = por %p162, %p163
      %p165 = scmp.ne.s32.totalorder %s156, %s157
      %p166 = scmp.eq.s32.totalorder %s20, 0
      %p167 = por %p165, %p166
      %p168 = scmp.ne.s32.totalorder %s156, %s157
      %p169 = scmp.eq.s32.totalorder %s21, 1
      %p170 = por %p168, %p169
      %p172 = scmp.ne.s32.totalorder %s157, %s171
      %p173 = scmp.eq.s32.totalorder %s21, 0
      %p174 = por %p172, %p173
      %s176 = sadd.s32 %s175, 1
      %p179 = scmp.eq.s32.totalorder %s15, 1
      %p180 = scmp.ne.s32.totalorder %s175, %s177
      %p181 = scmp.eq.s32.totalorder %s15, 0
      %p182 = por %p180, %p181
      %p183 = scmp.ne.s32.totalorder %s175, %s177
      %p184 = scmp.eq.s32.totalorder %s20, 1
      %p185 = por %p183, %p184
      %p186 = scmp.ne.s32.totalorder %s177, %s178
      %p187 = scmp.eq.s32.totalorder %s20, 0
      %p188 = por %p186, %p187
      %p189 = scmp.ne.s32.totalorder %s177, %s178
      %p190 = scmp.eq.s32.totalorder %s21, 1
      %p191 = por %p189, %p190
      %p193 = scmp.ne.s32.totalorder %s178, %s192
      %p194 = scmp.eq.s32.totalorder %s21, 0
      %p195 = por %p193, %p194
      %s196 = ssub.s32 %s15, %s22
      %p197 = scmp.eq.s32.totalorder %s196, 0
      %s199 = sadd.s32 %s198, 1
      %s200 = scalar_select %p197, %s198, %s199
      %p203 = pneg %p197
      %p204 = scmp.eq.s32.totalorder %s15, 1
      %p205 = por %p203, %p204
      %p206 = scmp.ne.s32.totalorder %s198, %s201
      %p207 = scmp.eq.s32.totalorder %s15, 0
      %p208 = por %p206, %p207
      %p209 = scmp.ne.s32.totalorder %s198, %s201
      %p210 = scmp.eq.s32.totalorder %s20, 1
      %p211 = por %p209, %p210
      %p212 = scmp.ne.s32.totalorder %s201, %s202
      %p213 = scmp.eq.s32.totalorder %s20, 0
      %p214 = por %p212, %p213
      %p215 = scmp.ne.s32.totalorder %s201, %s202
      %p216 = scmp.eq.s32.totalorder %s21, 1
      %p217 = por %p215, %p216
      %p219 = scmp.ne.s32.totalorder %s202, %s218
      %p220 = scmp.eq.s32.totalorder %s21, 0
      %p221 = por %p219, %p220
      %p222 = scmp.le.s32.totalorder 1, %s15
      %p223 = scmp.lt.s32.totalorder %s15, 3
      %p224 = pnand %p222, %p223
      %p225 = pneg %p224
      // Predicated region
      $region9: #{pnet_forward.3} parent=5 // pred_check
        _
      $region10: #{pnet_forward.3} parent=5 // pred_check_branch
        %227 = sbr.rel (%p224) target = $region12
      $region11: #{pnet_forward.3} parent=5 // pred_region
        %s228 = ssub.s32 %s15, 1
        // Predicated region
        $region13: #{pnet_forward.3} parent=11 // pred_check
          %p229 = pneg %p62
        $region14: #{pnet_forward.3} parent=11 // pred_check_branch
          %231 = sbr.rel (%p229) target = $region16
        $region15: #{pnet_forward.3} parent=11 // pred_region
          _
        $region16: #{pnet_forward.3} parent=11 // pred_fallthru
          _
        // Predicated region
        $region17: #{pnet_forward.3} parent=11 // pred_check
          %p232 = pneg %p83
        $region18: #{pnet_forward.3} parent=11 // pred_check_branch
          %234 = sbr.rel (%p232) target = $region20
        $region19: #{pnet_forward.3} parent=11 // pred_region
          _
        $region20: #{pnet_forward.3} parent=11 // pred_fallthru
          _
        // Predicated region
        $region21: #{pnet_forward.3} parent=11 // pred_check
          %p235 = pneg %p104
        $region22: #{pnet_forward.3} parent=11 // pred_check_branch
          %237 = sbr.rel (%p235) target = $region24
        $region23: #{pnet_forward.3} parent=11 // pred_region
          _
        $region24: #{pnet_forward.3} parent=11 // pred_fallthru
          _
        // Predicated region
        $region25: #{pnet_forward.3} parent=11 // pred_check
          %p238 = pneg %p125
        $region26: #{pnet_forward.3} parent=11 // pred_check_branch
          %240 = sbr.rel (%p238) target = $region28
        $region27: #{pnet_forward.3} parent=11 // pred_region
          _
        $region28: #{pnet_forward.3} parent=11 // pred_fallthru
          _
        // Predicated region
        $region29: #{pnet_forward.3} parent=11 // pred_check
          %p241 = pneg %p146
        $region30: #{pnet_forward.3} parent=11 // pred_check_branch
          %243 = sbr.rel (%p241) target = $region32
        $region31: #{pnet_forward.3} parent=11 // pred_region
          _
        $region32: #{pnet_forward.3} parent=11 // pred_fallthru
          _
        // Predicated region
        $region33: #{pnet_forward.3} parent=11 // pred_check
          %p244 = pneg %p167
        $region34: #{pnet_forward.3} parent=11 // pred_check_branch
          %246 = sbr.rel (%p244) target = $region36
        $region35: #{pnet_forward.3} parent=11 // pred_region
          _
        $region36: #{pnet_forward.3} parent=11 // pred_fallthru
          _
        // Predicated region
        $region37: #{pnet_forward.3} parent=11 // pred_check
          %p247 = pneg %p188
        $region38: #{pnet_forward.3} parent=11 // pred_check_branch
          %249 = sbr.rel (%p247) target = $region40
        $region39: #{pnet_forward.3} parent=11 // pred_region
          %s251 = ssub.s32 16, 16
          %252 = vsyncadd [#allocation3], %s251
          %s254 = sshll.u32 %s7, 4
          %s255 = int_to_ptr.vmem [resolvable:$true] %s254
          %257 = dma.vmem_to_smem %s255, 16, [#allocation2], [#allocation3]
        $region40: #{pnet_forward.3} parent=11 // pred_fallthru
          _
      $region12: #{pnet_forward.3} parent=5 // pred_fallthru
        _
      %p258 = scmp.lt.s32.totalorder %s15, 2
      // Predicated region
      $region41: #{pnet_forward.3} parent=5 // pred_check
        %p259 = pneg %p258
      $region42: #{pnet_forward.3} parent=5 // pred_check_branch
        %261 = sbr.rel (%p259) target = $region44
      $region43: #{pnet_forward.3} parent=5 // pred_region
        // Predicated region
        $region45: #{pnet_forward.3} parent=43 // pred_check
          %p262 = pneg %p35
        $region46: #{pnet_forward.3} parent=43 // pred_check_branch
          %264 = sbr.rel (%p262) target = $region48
        $region47: #{pnet_forward.3} parent=43 // pred_region
          %p265 = scmp.lt.s32.totalorder %s15, 1
          %s266 = scalar_select %p265, %s15, 1
          %s267 = smul.addr %s266, 7
          %s268 = smul.addr %s267, 8
          %s269 = scalar_lea.vmem %s0, %s268
        $region48: #{pnet_forward.3} parent=43 // pred_fallthru
          _
      $region44: #{pnet_forward.3} parent=5 // pred_fallthru
        _
      %p270 = scmp.le.s32.totalorder 1, %s15
      %p271 = scmp.lt.s32.totalorder %s15, 3
      %p272 = pnand %p270, %p271
      %p273 = pneg %p272
      // Predicated region
      $region49: #{pnet_forward.3} parent=5 // pred_check
        _
      $region50: #{pnet_forward.3} parent=5 // pred_check_branch
        %275 = sbr.rel (%p272) target = $region52
      $region51: #{pnet_forward.3} parent=5 // pred_region
        %s276 = ssub.s32 %s15, 1
        // Predicated region
        $region53: #{pnet_forward.3} parent=51 // pred_check
          %p277 = pneg %p188
        $region54: #{pnet_forward.3} parent=51 // pred_check_branch
          %279 = sbr.rel (%p277) target = $region56
        $region55: #{pnet_forward.3} parent=51 // pred_region
          %280 = dma.done [#allocation3], 16
        $region56: #{pnet_forward.3} parent=51 // pred_fallthru
          _
        %281 = sfence
        %p282 = scmp.lt.s32.totalorder %s20, 1
        %s283 = scalar_select %p282, %s20, 1
        %s284 = smul.addr %s283, 7
        %s285 = smul.addr %s284, 8
        %s286 = scalar_lea.vmem %s0, %s285
        %p287 = pneg %p41
        %p288 = pneg %p38
        %p289 = pneg %p62
        %p290 = pneg %p59
        %p291 = pneg %p83
        %p292 = pneg %p80
        %p293 = pneg %p104
        %p294 = pneg %p101
        %p295 = pneg %p125
        %p296 = pneg %p122
        %p297 = pneg %p146
        %p298 = pneg %p143
        %p299 = pneg %p167
        %p300 = pneg %p164
        %p301 = pneg %p188
        %p302 = pneg %p185
        %p303 = pneg %p214
        %p304 = pneg %p211
        %p305 = scmp.lt.s32.totalorder %s20, 1
        %s306 = scalar_select %p305, %s20, 1
        %s307 = smul.addr %s306, 3
        %s308 = smul.addr %s307, 8
        %s309 = scalar_lea.vmem %s8, %s308
        %p310 = scmp.lt.s32.totalorder %s20, 1
        %s311 = scalar_select %p310, %s20, 1
        %s312 = smul.addr %s311, 7
        %s313 = smul.addr %s312, 8
        %s314 = scalar_lea.vmem %s0, %s313
        %p315 = scmp.lt.s32.totalorder %s20, 1
        %s316 = scalar_select %p315, %s20, 1
        %s317 = smul.addr %s316, 3
        %s318 = smul.addr %s317, 8
        %s319 = scalar_lea.vmem %s8, %s318
        %v320 = vld [vmem:[%s314] sm:$0xff]
        %v321 = vld [vmem:[%s314 + $0x8] sm:$0xff]
        %v322 = vld [vmem:[%s314 + $0x10] sm:$0xff]
        %v323 = vld [vmem:[%s314 + $0x18] sm:$0xff]
        %v324 = vld [vmem:[%s314 + $0x20] sm:$0x1f]
        %v325 = vld [vmem:[%s1] sm:$0xff]
        %v326 = vld [vmem:[%s1 + $0x8] sm:$0x3]
        %v327 = vld [vmem:[%s314 + $0x1] sm:$0xff]
        %v328 = vld [vmem:[%s314 + $0x9] sm:$0xff]
        %v329 = vld [vmem:[%s314 + $0x11] sm:$0xff]
        %v330 = vld [vmem:[%s314 + $0x19] sm:$0xff]
        %v331 = vld [vmem:[%s314 + $0x21] sm:$0x1f]
        %s332 = scalar_lea.vmem %s1, 16
        %v333 = vld [vmem:[%s332] sm:$0xff]
        %v334 = vld [vmem:[%s332 + $0x8] sm:$0x3]
        %vm335 = vcmask 80896
        %v337 = vsel %vm335, %v327, 0
        %v340 = vsel %vm335, %v328, 0
        %v343 = vsel %vm335, %v329, 0
        %v346 = vsel %vm335, %v330, 0
        %v349 = vsel %vm335, %v331, 0
        %vm351 = vcmask 1041408
        %v353 = vsel %vm351, %v334, 0
        %355 = vmatprep.subr.mxu0 0.0
        %356 = vmatpush1.msra.mxu0 %v333
        %357 = vmatprep.subr.mxu0 0.0
        %358 = vmatpush1.msra.mxu0 %v353
        %359 = vmatprep.subr.mxu0 0.0
        %360 = vmatpush1.msra.mxu0 0.0
        %361 = vmatprep.subr.mxu0 0.0
        %362 = vmatpush1.msra.mxu0 0.0
        %363 = vmatprep.subr.mxu0 0.0
        %364 = vmatpush1.msra.mxu0 0.0
        %365 = vmatprep.subr.mxu0 0.0
        %366 = vmatpush1.msra.mxu0 0.0
        %367 = vmatprep.subr.mxu0 0.0
        %368 = vmatpush1.msra.mxu0 0.0
        %369 = vmatprep.subr.mxu0 0.0
        %370 = vmatpush1.msra.mxu0 0.0
        %371 = vmatprep.subr.mxu0 0.0
        %372 = vmatpush1.msra.mxu0 0.0
        %373 = vmatprep.subr.mxu0 0.0
        %374 = vmatpush1.msra.mxu0 0.0
        %375 = vmatprep.subr.mxu0 0.0
        %376 = vmatpush1.msra.mxu0 0.0
        %377 = vmatprep.subr.mxu0 0.0
        %378 = vmatpush1.msra.mxu0 0.0
        %379 = vmatprep.subr.mxu0 0.0
        %380 = vmatpush1.msra.mxu0 0.0
        %381 = vmatprep.subr.mxu0 0.0
        %382 = vmatpush1.msra.mxu0 0.0
        %383 = vmatprep.subr.mxu0 0.0
        %384 = vmatpush1.msra.mxu0 0.0
        %385 = vmatprep.subr.mxu0 0.0
        %386 = vmatpush1.msra.mxu0 0.0
        %387 = vmatprep.subr.mxu0 0.0
        %388 = vmatpush1.msra.mxu0 0.0
        %389 = vmatprep.subr.mxu0 0.0
        %390 = vmatpush1.msra.mxu0 0.0
        %391 = vmatprep.subr.mxu0 0.0
        %392 = vmatpush1.msra.mxu0 0.0
        %393 = vmatprep.subr.mxu0 0.0
        %394 = vmatpush1.msra.mxu0 0.0
        %395 = vmatprep.subr.mxu0 0.0
        %396 = vmatpush1.msra.mxu0 0.0
        %397 = vmatprep.subr.mxu0 0.0
        %398 = vmatpush1.msra.mxu0 0.0
        %399 = vmatprep.subr.mxu0 0.0
        %400 = vmatpush1.msra.mxu0 0.0
        %401 = vmatprep.subr.mxu0 0.0
        %402 = vmatpush1.msra.mxu0 0.0
        %403 = vmatprep.subr.mxu0 0.0
        %404 = vmatpush1.msra.mxu0 0.0
        %405 = vmatprep.subr.mxu0 0.0
        %406 = vmatpush1.msra.mxu0 0.0
        %407 = vmatprep.subr.mxu0 0.0
        %408 = vmatpush1.msra.mxu0 0.0
        %409 = vmatprep.subr.mxu0 0.0
        %410 = vmatpush1.msra.mxu0 0.0
        %411 = vmatprep.subr.mxu0 0.0
        %412 = vmatpush1.msra.mxu0 0.0
        %413 = vmatprep.subr.mxu0 0.0
        %414 = vmatpush1.msra.mxu0 0.0
        %415 = vmatprep.subr.mxu0 0.0
        %416 = vmatpush1.msra.mxu0 0.0
        %417 = vmatprep.subr.mxu0 0.0
        %418 = vmatpush1.msra.mxu0 0.0
        %419 = vmatprep.mubr.f32.mxu0 0.0
        %420 = vmatmul.mubr.f32.gmra.mrb[0].mxu0 %v337
        %v421 = vpop.f32.mrb[0].mxu0
        %v422 = vadd.f32 0.0, %v421
        %v423 = vpop.f32.mrb[0].mxu0
        %424 = vmatprep.mubr.f32.mxu0 0.0
        %425 = vmatmul.mubr.f32.gmra.mrb[0].mxu0 %v340
        %v426 = vpop.f32.mrb[0].mxu0
        %v427 = vadd.f32 0.0, %v426
        %v428 = vpop.f32.mrb[0].mxu0
        %429 = vmatprep.mubr.f32.mxu0 0.0
        %430 = vmatmul.mubr.f32.gmra.mrb[0].mxu0 %v343
        %v431 = vpop.f32.mrb[0].mxu0
        %v432 = vadd.f32 0.0, %v431
        %v433 = vpop.f32.mrb[0].mxu0
        %434 = vmatprep.mubr.f32.mxu0 0.0
        %435 = vmatmul.mubr.f32.gmra.mrb[0].mxu0 %v346
        %v436 = vpop.f32.mrb[0].mxu0
        %v437 = vadd.f32 0.0, %v436
        %v438 = vpop.f32.mrb[0].mxu0
        %439 = vmatprep.mubr.f32.mxu0 0.0
        %440 = vmatmul.mubr.f32.gmra.mrb[0].mxu0 %v349
        %v441 = vpop.f32.mrb[0].mxu0
        %v442 = vadd.f32 0.0, %v441
        %v443 = vpop.f32.mrb[0].mxu0
        %444 = vdwg.mxu0
        %v446 = vsel %vm335, %v320, 0
        %v449 = vsel %vm335, %v321, 0
        %v452 = vsel %vm335, %v322, 0
        %v455 = vsel %vm335, %v323, 0
        %v458 = vsel %vm335, %v324, 0
        %v461 = vsel %vm351, %v326, 0
        %463 = vmatprep.subr.mxu0 0.0
        %464 = vmatpush1.msra.mxu0 %v325
        %465 = vmatprep.subr.mxu0 0.0
        %466 = vmatpush1.msra.mxu0 %v461
        %467 = vmatprep.subr.mxu0 0.0
        %468 = vmatpush1.msra.mxu0 0.0
        %469 = vmatprep.subr.mxu0 0.0
        %470 = vmatpush1.msra.mxu0 0.0
        %471 = vmatprep.subr.mxu0 0.0
        %472 = vmatpush1.msra.mxu0 0.0
        %473 = vmatprep.subr.mxu0 0.0
        %474 = vmatpush1.msra.mxu0 0.0
        %475 = vmatprep.subr.mxu0 0.0
        %476 = vmatpush1.msra.mxu0 0.0
        %477 = vmatprep.subr.mxu0 0.0
        %478 = vmatpush1.msra.mxu0 0.0
        %479 = vmatprep.subr.mxu0 0.0
        %480 = vmatpush1.msra.mxu0 0.0
        %481 = vmatprep.subr.mxu0 0.0
        %482 = vmatpush1.msra.mxu0 0.0
        %483 = vmatprep.subr.mxu0 0.0
        %484 = vmatpush1.msra.mxu0 0.0
        %485 = vmatprep.subr.mxu0 0.0
        %486 = vmatpush1.msra.mxu0 0.0
        %487 = vmatprep.subr.mxu0 0.0
        %488 = vmatpush1.msra.mxu0 0.0
        %489 = vmatprep.subr.mxu0 0.0
        %490 = vmatpush1.msra.mxu0 0.0
        %491 = vmatprep.subr.mxu0 0.0
        %492 = vmatpush1.msra.mxu0 0.0
        %493 = vmatprep.subr.mxu0 0.0
        %494 = vmatpush1.msra.mxu0 0.0
        %495 = vmatprep.subr.mxu0 0.0
        %496 = vmatpush1.msra.mxu0 0.0
        %497 = vmatprep.subr.mxu0 0.0
        %498 = vmatpush1.msra.mxu0 0.0
        %499 = vmatprep.subr.mxu0 0.0
        %500 = vmatpush1.msra.mxu0 0.0
        %501 = vmatprep.subr.mxu0 0.0
        %502 = vmatpush1.msra.mxu0 0.0
        %503 = vmatprep.subr.mxu0 0.0
        %504 = vmatpush1.msra.mxu0 0.0
        %505 = vmatprep.subr.mxu0 0.0
        %506 = vmatpush1.msra.mxu0 0.0
        %507 = vmatprep.subr.mxu0 0.0
        %508 = vmatpush1.msra.mxu0 0.0
        %509 = vmatprep.subr.mxu0 0.0
        %510 = vmatpush1.msra.mxu0 0.0
        %511 = vmatprep.subr.mxu0 0.0
        %512 = vmatpush1.msra.mxu0 0.0
        %513 = vmatprep.subr.mxu0 0.0
        %514 = vmatpush1.msra.mxu0 0.0
        %515 = vmatprep.subr.mxu0 0.0
        %516 = vmatpush1.msra.mxu0 0.0
        %517 = vmatprep.subr.mxu0 0.0
        %518 = vmatpush1.msra.mxu0 0.0
        %519 = vmatprep.subr.mxu0 0.0
        %520 = vmatpush1.msra.mxu0 0.0
        %521 = vmatprep.subr.mxu0 0.0
        %522 = vmatpush1.msra.mxu0 0.0
        %523 = vmatprep.subr.mxu0 0.0
        %524 = vmatpush1.msra.mxu0 0.0
        %525 = vmatprep.subr.mxu0 0.0
        %526 = vmatpush1.msra.mxu0 0.0
        %527 = vmatprep.mubr.f32.mxu0 0.0
        %528 = vmatmul.mubr.f32.gmra.mrb[0].mxu0 %v446
        %v529 = vpop.f32.mrb[0].mxu0
        %v530 = vadd.f32 %v422, %v529
        %v531 = vpop.f32.mrb[0].mxu0
        %532 = vmatprep.mubr.f32.mxu0 0.0
        %533 = vmatmul.mubr.f32.gmra.mrb[0].mxu0 %v449
        %v534 = vpop.f32.mrb[0].mxu0
        %v535 = vadd.f32 %v427, %v534
        %v536 = vpop.f32.mrb[0].mxu0
        %537 = vmatprep.mubr.f32.mxu0 0.0
        %538 = vmatmul.mubr.f32.gmra.mrb[0].mxu0 %v452
        %v539 = vpop.f32.mrb[0].mxu0
        %v540 = vadd.f32 %v432, %v539
        %v541 = vpop.f32.mrb[0].mxu0
        %542 = vmatprep.mubr.f32.mxu0 0.0
        %543 = vmatmul.mubr.f32.gmra.mrb[0].mxu0 %v455
        %v544 = vpop.f32.mrb[0].mxu0
        %v545 = vadd.f32 %v437, %v544
        %v546 = vpop.f32.mrb[0].mxu0
        %547 = vmatprep.mubr.f32.mxu0 0.0
        %548 = vmatmul.mubr.f32.gmra.mrb[0].mxu0 %v458
        %v549 = vpop.f32.mrb[0].mxu0
        %v550 = vadd.f32 %v442, %v549
        %v551 = vpop.f32.mrb[0].mxu0
        %552 = vdwg.mxu0
        %v553 = vld [vmem:[%s314 + $0x2] sm:$0xff]
        %v554 = vld [vmem:[%s314 + $0xa] sm:$0xff]
        %v555 = vld [vmem:[%s314 + $0x12] sm:$0xff]
        %v556 = vld [vmem:[%s314 + $0x1a] sm:$0xff]
        %v557 = vld [vmem:[%s314 + $0x22] sm:$0x1f]
        %s558 = scalar_lea.vmem %s1, 32
        %v559 = vld [vmem:[%s558] sm:$0xff]
        %v560 = vld [vmem:[%s558 + $0x8] sm:$0x3]
        %v562 = vsel %vm335, %v553, 0
        %v565 = vsel %vm335, %v554, 0
        %v568 = vsel %vm335, %v555, 0
        %v571 = vsel %vm335, %v556, 0
        %v574 = vsel %vm335, %v557, 0
        %v577 = vsel %vm351, %v560, 0
        %579 = vmatprep.subr.mxu0 0.0
        %580 = vmatpush1.msra.mxu0 %v559
        %581 = vmatprep.subr.mxu0 0.0
        %582 = vmatpush1.msra.mxu0 %v577
        %583 = vmatprep.subr.mxu0 0.0
        %584 = vmatpush1.msra.mxu0 0.0
        %585 = vmatprep.subr.mxu0 0.0
        %586 = vmatpush1.msra.mxu0 0.0
        %587 = vmatprep.subr.mxu0 0.0
        %588 = vmatpush1.msra.mxu0 0.0
        %589 = vmatprep.subr.mxu0 0.0
        %590 = vmatpush1.msra.mxu0 0.0
        %591 = vmatprep.subr.mxu0 0.0
        %592 = vmatpush1.msra.mxu0 0.0
        %593 = vmatprep.subr.mxu0 0.0
        %594 = vmatpush1.msra.mxu0 0.0
        %595 = vmatprep.subr.mxu0 0.0
        %596 = vmatpush1.msra.mxu0 0.0
        %597 = vmatprep.subr.mxu0 0.0
        %598 = vmatpush1.msra.mxu0 0.0
        %599 = vmatprep.subr.mxu0 0.0
        %600 = vmatpush1.msra.mxu0 0.0
        %601 = vmatprep.subr.mxu0 0.0
        %602 = vmatpush1.msra.mxu0 0.0
        %603 = vmatprep.subr.mxu0 0.0
        %604 = vmatpush1.msra.mxu0 0.0
        %605 = vmatprep.subr.mxu0 0.0
        %606 = vmatpush1.msra.mxu0 0.0
        %607 = vmatprep.subr.mxu0 0.0
        %608 = vmatpush1.msra.mxu0 0.0
        %609 = vmatprep.subr.mxu0 0.0
        %610 = vmatpush1.msra.mxu0 0.0
        %611 = vmatprep.subr.mxu0 0.0
        %612 = vmatpush1.msra.mxu0 0.0
        %613 = vmatprep.subr.mxu0 0.0
        %614 = vmatpush1.msra.mxu0 0.0
        %615 = vmatprep.subr.mxu0 0.0
        %616 = vmatpush1.msra.mxu0 0.0
        %617 = vmatprep.subr.mxu0 0.0
        %618 = vmatpush1.msra.mxu0 0.0
        %619 = vmatprep.subr.mxu0 0.0
        %620 = vmatpush1.msra.mxu0 0.0
        %621 = vmatprep.subr.mxu0 0.0
        %622 = vmatpush1.msra.mxu0 0.0
        %623 = vmatprep.subr.mxu0 0.0
        %624 = vmatpush1.msra.mxu0 0.0
        %625 = vmatprep.subr.mxu0 0.0
        %626 = vmatpush1.msra.mxu0 0.0
        %627 = vmatprep.subr.mxu0 0.0
        %628 = vmatpush1.msra.mxu0 0.0
        %629 = vmatprep.subr.mxu0 0.0
        %630 = vmatpush1.msra.mxu0 0.0
        %631 = vmatprep.subr.mxu0 0.0
        %632 = vmatpush1.msra.mxu0 0.0
        %633 = vmatprep.subr.mxu0 0.0
        %634 = vmatpush1.msra.mxu0 0.0
        %635 = vmatprep.subr.mxu0 0.0
        %636 = vmatpush1.msra.mxu0 0.0
        %637 = vmatprep.subr.mxu0 0.0
        %638 = vmatpush1.msra.mxu0 0.0
        %639 = vmatprep.subr.mxu0 0.0
        %640 = vmatpush1.msra.mxu0 0.0
        %641 = vmatprep.subr.mxu0 0.0
        %642 = vmatpush1.msra.mxu0 0.0
        %643 = vmatprep.mubr.f32.mxu0 0.0
        %644 = vmatmul.mubr.f32.gmra.mrb[0].mxu0 %v562
        %v645 = vpop.f32.mrb[0].mxu0
        %v646 = vadd.f32 0.0, %v645
        %v647 = vpop.f32.mrb[0].mxu0
        %648 = vmatprep.mubr.f32.mxu0 0.0
        %649 = vmatmul.mubr.f32.gmra.mrb[0].mxu0 %v565
        %v650 = vpop.f32.mrb[0].mxu0
        %v651 = vadd.f32 0.0, %v650
        %v652 = vpop.f32.mrb[0].mxu0
        %653 = vmatprep.mubr.f32.mxu0 0.0
        %654 = vmatmul.mubr.f32.gmra.mrb[0].mxu0 %v568
        %v655 = vpop.f32.mrb[0].mxu0
        %v656 = vadd.f32 0.0, %v655
        %v657 = vpop.f32.mrb[0].mxu0
        %658 = vmatprep.mubr.f32.mxu0 0.0
        %659 = vmatmul.mubr.f32.gmra.mrb[0].mxu0 %v571
        %v660 = vpop.f32.mrb[0].mxu0
        %v661 = vadd.f32 0.0, %v660
        %v662 = vpop.f32.mrb[0].mxu0
        %663 = vmatprep.mubr.f32.mxu0 0.0
        %664 = vmatmul.mubr.f32.gmra.mrb[0].mxu0 %v574
        %v665 = vpop.f32.mrb[0].mxu0
        %v666 = vadd.f32 0.0, %v665
        %v667 = vpop.f32.mrb[0].mxu0
        %668 = vdwg.mxu0
        %v669 = vadd.f32 %v530, %v646
        %v670 = vadd.f32 %v535, %v651
        %v671 = vadd.f32 %v540, %v656
        %v672 = vadd.f32 %v545, %v661
        %v673 = vadd.f32 %v550, %v666
        %v674 = vld [vmem:[%s314 + $0x7] sm:$0xff]
        %v675 = vld [vmem:[%s314 + $0xf] sm:$0xff]
        %v676 = vld [vmem:[%s314 + $0x17] sm:$0xff]
        %v677 = vld [vmem:[%s314 + $0x1f] sm:$0xff]
        %v678 = vld [vmem:[%s314 + $0x27] sm:$0x1f]
        %s679 = scalar_lea.vmem %s1, 48
        %v680 = vld [vmem:[%s679] sm:$0xff]
        %v681 = vld [vmem:[%s679 + $0x8] sm:$0x3]
        %v683 = vsel %vm335, %v674, 0
        %v686 = vsel %vm335, %v675, 0
        %v689 = vsel %vm335, %v676, 0
        %v692 = vsel %vm335, %v677, 0
        %v695 = vsel %vm335, %v678, 0
        %v698 = vsel %vm351, %v681, 0
        %700 = vmatprep.subr.mxu0 0.0
        %701 = vmatpush1.msra.mxu0 %v680
        %702 = vmatprep.subr.mxu0 0.0
        %703 = vmatpush1.msra.mxu0 %v698
        %704 = vmatprep.subr.mxu0 0.0
        %705 = vmatpush1.msra.mxu0 0.0
        %706 = vmatprep.subr.mxu0 0.0
        %707 = vmatpush1.msra.mxu0 0.0
        %708 = vmatprep.subr.mxu0 0.0
        %709 = vmatpush1.msra.mxu0 0.0
        %710 = vmatprep.subr.mxu0 0.0
        %711 = vmatpush1.msra.mxu0 0.0
        %712 = vmatprep.subr.mxu0 0.0
        %713 = vmatpush1.msra.mxu0 0.0
        %714 = vmatprep.subr.mxu0 0.0
        %715 = vmatpush1.msra.mxu0 0.0
        %716 = vmatprep.subr.mxu0 0.0
        %717 = vmatpush1.msra.mxu0 0.0
        %718 = vmatprep.subr.mxu0 0.0
        %719 = vmatpush1.msra.mxu0 0.0
        %720 = vmatprep.subr.mxu0 0.0
        %721 = vmatpush1.msra.mxu0 0.0
        %722 = vmatprep.subr.mxu0 0.0
        %723 = vmatpush1.msra.mxu0 0.0
        %724 = vmatprep.subr.mxu0 0.0
        %725 = vmatpush1.msra.mxu0 0.0
        %726 = vmatprep.subr.mxu0 0.0
        %727 = vmatpush1.msra.mxu0 0.0
        %728 = vmatprep.subr.mxu0 0.0
        %729 = vmatpush1.msra.mxu0 0.0
        %730 = vmatprep.subr.mxu0 0.0
        %731 = vmatpush1.msra.mxu0 0.0
        %732 = vmatprep.subr.mxu0 0.0
        %733 = vmatpush1.msra.mxu0 0.0
        %734 = vmatprep.subr.mxu0 0.0
        %735 = vmatpush1.msra.mxu0 0.0
        %736 = vmatprep.subr.mxu0 0.0
        %737 = vmatpush1.msra.mxu0 0.0
        %738 = vmatprep.subr.mxu0 0.0
        %739 = vmatpush1.msra.mxu0 0.0
        %740 = vmatprep.subr.mxu0 0.0
        %741 = vmatpush1.msra.mxu0 0.0
        %742 = vmatprep.subr.mxu0 0.0
        %743 = vmatpush1.msra.mxu0 0.0
        %744 = vmatprep.subr.mxu0 0.0
        %745 = vmatpush1.msra.mxu0 0.0
        %746 = vmatprep.subr.mxu0 0.0
        %747 = vmatpush1.msra.mxu0 0.0
        %748 = vmatprep.subr.mxu0 0.0
        %749 = vmatpush1.msra.mxu0 0.0
        %750 = vmatprep.subr.mxu0 0.0
        %751 = vmatpush1.msra.mxu0 0.0
        %752 = vmatprep.subr.mxu0 0.0
        %753 = vmatpush1.msra.mxu0 0.0
        %754 = vmatprep.subr.mxu0 0.0
        %755 = vmatpush1.msra.mxu0 0.0
        %756 = vmatprep.subr.mxu0 0.0
        %757 = vmatpush1.msra.mxu0 0.0
        %758 = vmatprep.subr.mxu0 0.0
        %759 = vmatpush1.msra.mxu0 0.0
        %760 = vmatprep.subr.mxu0 0.0
        %761 = vmatpush1.msra.mxu0 0.0
        %762 = vmatprep.subr.mxu0 0.0
        %763 = vmatpush1.msra.mxu0 0.0
        %764 = vmatprep.mubr.f32.mxu0 0.0
        %765 = vmatmul.mubr.f32.gmra.mrb[0].mxu0 %v683
        %v766 = vpop.f32.mrb[0].mxu0
        %v767 = vadd.f32 0.0, %v766
        %v768 = vpop.f32.mrb[0].mxu0
        %769 = vmatprep.mubr.f32.mxu0 0.0
        %770 = vmatmul.mubr.f32.gmra.mrb[0].mxu0 %v686
        %v771 = vpop.f32.mrb[0].mxu0
        %v772 = vadd.f32 0.0, %v771
        %v773 = vpop.f32.mrb[0].mxu0
        %774 = vmatprep.mubr.f32.mxu0 0.0
        %775 = vmatmul.mubr.f32.gmra.mrb[0].mxu0 %v689
        %v776 = vpop.f32.mrb[0].mxu0
        %v777 = vadd.f32 0.0, %v776
        %v778 = vpop.f32.mrb[0].mxu0
        %779 = vmatprep.mubr.f32.mxu0 0.0
        %780 = vmatmul.mubr.f32.gmra.mrb[0].mxu0 %v692
        %v781 = vpop.f32.mrb[0].mxu0
        %v782 = vadd.f32 0.0, %v781
        %v783 = vpop.f32.mrb[0].mxu0
        %784 = vmatprep.mubr.f32.mxu0 0.0
        %785 = vmatmul.mubr.f32.gmra.mrb[0].mxu0 %v695
        %v786 = vpop.f32.mrb[0].mxu0
        %v787 = vadd.f32 0.0, %v786
        %v788 = vpop.f32.mrb[0].mxu0
        %789 = vdwg.mxu0
        %v790 = vadd.f32 %v669, %v767
        %v791 = vadd.f32 %v670, %v772
        %v792 = vadd.f32 %v671, %v777
        %v793 = vadd.f32 %v672, %v782
        %v794 = vadd.f32 %v673, %v787
        %v795 = vld [vmem:[%s314 + $0x8] sm:$0xff]
        %v796 = vld [vmem:[%s314 + $0x10] sm:$0xff]
        %v797 = vld [vmem:[%s314 + $0x18] sm:$0xff]
        %v798 = vld [vmem:[%s314 + $0x20] sm:$0xff]
        %v799 = vld [vmem:[%s314 + $0x28] sm:$0x1f]
        %s800 = scalar_lea.vmem %s1, 64
        %v801 = vld [vmem:[%s800] sm:$0xff]
        %v802 = vld [vmem:[%s800 + $0x8] sm:$0x3]
        %v804 = vsel %vm335, %v795, 0
        %v807 = vsel %vm335, %v796, 0
        %v810 = vsel %vm335, %v797, 0
        %v813 = vsel %vm335, %v798, 0
        %v816 = vsel %vm335, %v799, 0
        %v819 = vsel %vm351, %v802, 0
        %821 = vmatprep.subr.mxu0 0.0
        %822 = vmatpush1.msra.mxu0 %v801
        %823 = vmatprep.subr.mxu0 0.0
        %824 = vmatpush1.msra.mxu0 %v819
        %825 = vmatprep.subr.mxu0 0.0
        %826 = vmatpush1.msra.mxu0 0.0
        %827 = vmatprep.subr.mxu0 0.0
        %828 = vmatpush1.msra.mxu0 0.0
        %829 = vmatprep.subr.mxu0 0.0
        %830 = vmatpush1.msra.mxu0 0.0
        %831 = vmatprep.subr.mxu0 0.0
        %832 = vmatpush1.msra.mxu0 0.0
        %833 = vmatprep.subr.mxu0 0.0
        %834 = vmatpush1.msra.mxu0 0.0
        %835 = vmatprep.subr.mxu0 0.0
        %836 = vmatpush1.msra.mxu0 0.0
        %837 = vmatprep.subr.mxu0 0.0
        %838 = vmatpush1.msra.mxu0 0.0
        %839 = vmatprep.subr.mxu0 0.0
        %840 = vmatpush1.msra.mxu0 0.0
        %841 = vmatprep.subr.mxu0 0.0
        %842 = vmatpush1.msra.mxu0 0.0
        %843 = vmatprep.subr.mxu0 0.0
        %844 = vmatpush1.msra.mxu0 0.0
        %845 = vmatprep.subr.mxu0 0.0
        %846 = vmatpush1.msra.mxu0 0.0
        %847 = vmatprep.subr.mxu0 0.0
        %848 = vmatpush1.msra.mxu0 0.0
        %849 = vmatprep.subr.mxu0 0.0
        %850 = vmatpush1.msra.mxu0 0.0
        %851 = vmatprep.subr.mxu0 0.0
        %852 = vmatpush1.msra.mxu0 0.0
        %853 = vmatprep.subr.mxu0 0.0
        %854 = vmatpush1.msra.mxu0 0.0
        %855 = vmatprep.subr.mxu0 0.0
        %856 = vmatpush1.msra.mxu0 0.0
        %857 = vmatprep.subr.mxu0 0.0
        %858 = vmatpush1.msra.mxu0 0.0
        %859 = vmatprep.subr.mxu0 0.0
        %860 = vmatpush1.msra.mxu0 0.0
        %861 = vmatprep.subr.mxu0 0.0
        %862 = vmatpush1.msra.mxu0 0.0
        %863 = vmatprep.subr.mxu0 0.0
        %864 = vmatpush1.msra.mxu0 0.0
        %865 = vmatprep.subr.mxu0 0.0
        %866 = vmatpush1.msra.mxu0 0.0
        %867 = vmatprep.subr.mxu0 0.0
        %868 = vmatpush1.msra.mxu0 0.0
        %869 = vmatprep.subr.mxu0 0.0
        %870 = vmatpush1.msra.mxu0 0.0
        %871 = vmatprep.subr.mxu0 0.0
        %872 = vmatpush1.msra.mxu0 0.0
        %873 = vmatprep.subr.mxu0 0.0
        %874 = vmatpush1.msra.mxu0 0.0
        %875 = vmatprep.subr.mxu0 0.0
        %876 = vmatpush1.msra.mxu0 0.0
        %877 = vmatprep.subr.mxu0 0.0
        %878 = vmatpush1.msra.mxu0 0.0
        %879 = vmatprep.subr.mxu0 0.0
        %880 = vmatpush1.msra.mxu0 0.0
        %881 = vmatprep.subr.mxu0 0.0
        %882 = vmatpush1.msra.mxu0 0.0
        %883 = vmatprep.subr.mxu0 0.0
        %884 = vmatpush1.msra.mxu0 0.0
        %885 = vmatprep.mubr.f32.mxu0 0.0
        %886 = vmatmul.mubr.f32.gmra.mrb[0].mxu0 %v804
        %v887 = vpop.f32.mrb[0].mxu0
        %v888 = vadd.f32 0.0, %v887
        %v889 = vpop.f32.mrb[0].mxu0
        %890 = vmatprep.mubr.f32.mxu0 0.0
        %891 = vmatmul.mubr.f32.gmra.mrb[0].mxu0 %v807
        %v892 = vpop.f32.mrb[0].mxu0
        %v893 = vadd.f32 0.0, %v892
        %v894 = vpop.f32.mrb[0].mxu0
        %895 = vmatprep.mubr.f32.mxu0 0.0
        %896 = vmatmul.mubr.f32.gmra.mrb[0].mxu0 %v810
        %v897 = vpop.f32.mrb[0].mxu0
        %v898 = vadd.f32 0.0, %v897
        %v899 = vpop.f32.mrb[0].mxu0
        %900 = vmatprep.mubr.f32.mxu0 0.0
        %901 = vmatmul.mubr.f32.gmra.mrb[0].mxu0 %v813
        %v902 = vpop.f32.mrb[0].mxu0
        %v903 = vadd.f32 0.0, %v902
        %v904 = vpop.f32.mrb[0].mxu0
        %905 = vmatprep.mubr.f32.mxu0 0.0
        %906 = vmatmul.mubr.f32.gmra.mrb[0].mxu0 %v816
        %v907 = vpop.f32.mrb[0].mxu0
        %v908 = vadd.f32 0.0, %v907
        %v909 = vpop.f32.mrb[0].mxu0
        %910 = vdwg.mxu0
        %v911 = vadd.f32 %v790, %v888
        %v912 = vadd.f32 %v791, %v893
        %v913 = vadd.f32 %v792, %v898
        %v914 = vadd.f32 %v793, %v903
        %v915 = vadd.f32 %v794, %v908
        %v916 = vld [vmem:[%s314 + $0x9] sm:$0xff]
        %v917 = vld [vmem:[%s314 + $0x11] sm:$0xff]
        %v918 = vld [vmem:[%s314 + $0x19] sm:$0xff]
        %v919 = vld [vmem:[%s314 + $0x21] sm:$0xff]
        %v920 = vld [vmem:[%s314 + $0x29] sm:$0x1f]
        %s921 = scalar_lea.vmem %s1, 80
        %v922 = vld [vmem:[%s921] sm:$0xff]
        %v923 = vld [vmem:[%s921 + $0x8] sm:$0x3]
        %v925 = vsel %vm335, %v916, 0
        %v928 = vsel %vm335, %v917, 0
        %v931 = vsel %vm335, %v918, 0
        %v934 = vsel %vm335, %v919, 0
        %v937 = vsel %vm335, %v920, 0
        %v940 = vsel %vm351, %v923, 0
        %942 = vmatprep.subr.mxu0 0.0
        %943 = vmatpush1.msra.mxu0 %v922
        %944 = vmatprep.subr.mxu0 0.0
        %945 = vmatpush1.msra.mxu0 %v940
        %946 = vmatprep.subr.mxu0 0.0
        %947 = vmatpush1.msra.mxu0 0.0
        %948 = vmatprep.subr.mxu0 0.0
        %949 = vmatpush1.msra.mxu0 0.0
        %950 = vmatprep.subr.mxu0 0.0
        %951 = vmatpush1.msra.mxu0 0.0
        %952 = vmatprep.subr.mxu0 0.0
        %953 = vmatpush1.msra.mxu0 0.0
        %954 = vmatprep.subr.mxu0 0.0
        %955 = vmatpush1.msra.mxu0 0.0
        %956 = vmatprep.subr.mxu0 0.0
        %957 = vmatpush1.msra.mxu0 0.0
        %958 = vmatprep.subr.mxu0 0.0
        %959 = vmatpush1.msra.mxu0 0.0
        %960 = vmatprep.subr.mxu0 0.0
        %961 = vmatpush1.msra.mxu0 0.0
        %962 = vmatprep.subr.mxu0 0.0
        %963 = vmatpush1.msra.mxu0 0.0
        %964 = vmatprep.subr.mxu0 0.0
        %965 = vmatpush1.msra.mxu0 0.0
        %966 = vmatprep.subr.mxu0 0.0
        %967 = vmatpush1.msra.mxu0 0.0
        %968 = vmatprep.subr.mxu0 0.0
        %969 = vmatpush1.msra.mxu0 0.0
        %970 = vmatprep.subr.mxu0 0.0
        %971 = vmatpush1.msra.mxu0 0.0
        %972 = vmatprep.subr.mxu0 0.0
        %973 = vmatpush1.msra.mxu0 0.0
        %974 = vmatprep.subr.mxu0 0.0
        %975 = vmatpush1.msra.mxu0 0.0
        %976 = vmatprep.subr.mxu0 0.0
        %977 = vmatpush1.msra.mxu0 0.0
        %978 = vmatprep.subr.mxu0 0.0
        %979 = vmatpush1.msra.mxu0 0.0
        %980 = vmatprep.subr.mxu0 0.0
        %981 = vmatpush1.msra.mxu0 0.0
        %982 = vmatprep.subr.mxu0 0.0
        %983 = vmatpush1.msra.mxu0 0.0
        %984 = vmatprep.subr.mxu0 0.0
        %985 = vmatpush1.msra.mxu0 0.0
        %986 = vmatprep.subr.mxu0 0.0
        %987 = vmatpush1.msra.mxu0 0.0
        %988 = vmatprep.subr.mxu0 0.0
        %989 = vmatpush1.msra.mxu0 0.0
        %990 = vmatprep.subr.mxu0 0.0
        %991 = vmatpush1.msra.mxu0 0.0
        %992 = vmatprep.subr.mxu0 0.0
        %993 = vmatpush1.msra.mxu0 0.0
        %994 = vmatprep.subr.mxu0 0.0
        %995 = vmatpush1.msra.mxu0 0.0
        %996 = vmatprep.subr.mxu0 0.0
        %997 = vmatpush1.msra.mxu0 0.0
        %998 = vmatprep.subr.mxu0 0.0
        %999 = vmatpush1.msra.mxu0 0.0
        %1000 = vmatprep.subr.mxu0 0.0
        %1001 = vmatpush1.msra.mxu0 0.0
        %1002 = vmatprep.subr.mxu0 0.0
        %1003 = vmatpush1.msra.mxu0 0.0
        %1004 = vmatprep.subr.mxu0 0.0
        %1005 = vmatpush1.msra.mxu0 0.0
        %1006 = vmatprep.mubr.f32.mxu0 0.0
        %1007 = vmatmul.mubr.f32.gmra.mrb[0].mxu0 %v925
        %v1008 = vpop.f32.mrb[0].mxu0
        %v1009 = vadd.f32 0.0, %v1008
        %v1010 = vpop.f32.mrb[0].mxu0
        %1011 = vmatprep.mubr.f32.mxu0 0.0
        %1012 = vmatmul.mubr.f32.gmra.mrb[0].mxu0 %v928
        %v1013 = vpop.f32.mrb[0].mxu0
        %v1014 = vadd.f32 0.0, %v1013
        %v1015 = vpop.f32.mrb[0].mxu0
        %1016 = vmatprep.mubr.f32.mxu0 0.0
        %1017 = vmatmul.mubr.f32.gmra.mrb[0].mxu0 %v931
        %v1018 = vpop.f32.mrb[0].mxu0
        %v1019 = vadd.f32 0.0, %v1018
        %v1020 = vpop.f32.mrb[0].mxu0
        %1021 = vmatprep.mubr.f32.mxu0 0.0
        %1022 = vmatmul.mubr.f32.gmra.mrb[0].mxu0 %v934
        %v1023 = vpop.f32.mrb[0].mxu0
        %v1024 = vadd.f32 0.0, %v1023
        %v1025 = vpop.f32.mrb[0].mxu0
        %1026 = vmatprep.mubr.f32.mxu0 0.0
        %1027 = vmatmul.mubr.f32.gmra.mrb[0].mxu0 %v937
        %v1028 = vpop.f32.mrb[0].mxu0
        %v1029 = vadd.f32 0.0, %v1028
        %v1030 = vpop.f32.mrb[0].mxu0
        %1031 = vdwg.mxu0
        %v1032 = vadd.f32 %v911, %v1009
        %v1033 = vadd.f32 %v912, %v1014
        %v1034 = vadd.f32 %v913, %v1019
        %v1035 = vadd.f32 %v914, %v1024
        %v1036 = vadd.f32 %v915, %v1029
        %v1037 = vld [vmem:[%s314 + $0xe] sm:$0xff]
        %v1038 = vld [vmem:[%s314 + $0x16] sm:$0xff]
        %v1039 = vld [vmem:[%s314 + $0x1e] sm:$0xff]
        %v1040 = vld [vmem:[%s314 + $0x26] sm:$0xff]
        %v1041 = vld [vmem:[%s314 + $0x2e] sm:$0x1f]
        %s1042 = scalar_lea.vmem %s1, 96
        %v1043 = vld [vmem:[%s1042] sm:$0xff]
        %v1044 = vld [vmem:[%s1042 + $0x8] sm:$0x3]
        %v1046 = vsel %vm335, %v1037, 0
        %v1049 = vsel %vm335, %v1038, 0
        %v1052 = vsel %vm335, %v1039, 0
        %v1055 = vsel %vm335, %v1040, 0
        %v1058 = vsel %vm335, %v1041, 0
        %v1061 = vsel %vm351, %v1044, 0
        %1063 = vmatprep.subr.mxu0 0.0
        %1064 = vmatpush1.msra.mxu0 %v1043
        %1065 = vmatprep.subr.mxu0 0.0
        %1066 = vmatpush1.msra.mxu0 %v1061
        %1067 = vmatprep.subr.mxu0 0.0
        %1068 = vmatpush1.msra.mxu0 0.0
        %1069 = vmatprep.subr.mxu0 0.0
        %1070 = vmatpush1.msra.mxu0 0.0
        %1071 = vmatprep.subr.mxu0 0.0
        %1072 = vmatpush1.msra.mxu0 0.0
        %1073 = vmatprep.subr.mxu0 0.0
        %1074 = vmatpush1.msra.mxu0 0.0
        %1075 = vmatprep.subr.mxu0 0.0
        %1076 = vmatpush1.msra.mxu0 0.0
        %1077 = vmatprep.subr.mxu0 0.0
        %1078 = vmatpush1.msra.mxu0 0.0
        %1079 = vmatprep.subr.mxu0 0.0
        %1080 = vmatpush1.msra.mxu0 0.0
        %1081 = vmatprep.subr.mxu0 0.0
        %1082 = vmatpush1.msra.mxu0 0.0
        %1083 = vmatprep.subr.mxu0 0.0
        %1084 = vmatpush1.msra.mxu0 0.0
        %1085 = vmatprep.subr.mxu0 0.0
        %1086 = vmatpush1.msra.mxu0 0.0
        %1087 = vmatprep.subr.mxu0 0.0
        %1088 = vmatpush1.msra.mxu0 0.0
        %1089 = vmatprep.subr.mxu0 0.0
        %1090 = vmatpush1.msra.mxu0 0.0
        %1091 = vmatprep.subr.mxu0 0.0
        %1092 = vmatpush1.msra.mxu0 0.0
        %1093 = vmatprep.subr.mxu0 0.0
        %1094 = vmatpush1.msra.mxu0 0.0
        %1095 = vmatprep.subr.mxu0 0.0
        %1096 = vmatpush1.msra.mxu0 0.0
        %1097 = vmatprep.subr.mxu0 0.0
        %1098 = vmatpush1.msra.mxu0 0.0
        %1099 = vmatprep.subr.mxu0 0.0
        %1100 = vmatpush1.msra.mxu0 0.0
        %1101 = vmatprep.subr.mxu0 0.0
        %1102 = vmatpush1.msra.mxu0 0.0
        %1103 = vmatprep.subr.mxu0 0.0
        %1104 = vmatpush1.msra.mxu0 0.0
        %1105 = vmatprep.subr.mxu0 0.0
        %1106 = vmatpush1.msra.mxu0 0.0
        %1107 = vmatprep.subr.mxu0 0.0
        %1108 = vmatpush1.msra.mxu0 0.0
        %1109 = vmatprep.subr.mxu0 0.0
        %1110 = vmatpush1.msra.mxu0 0.0
        %1111 = vmatprep.subr.mxu0 0.0
        %1112 = vmatpush1.msra.mxu0 0.0
        %1113 = vmatprep.subr.mxu0 0.0
        %1114 = vmatpush1.msra.mxu0 0.0
        %1115 = vmatprep.subr.mxu0 0.0
        %1116 = vmatpush1.msra.mxu0 0.0
        %1117 = vmatprep.subr.mxu0 0.0
        %1118 = vmatpush1.msra.mxu0 0.0
        %1119 = vmatprep.subr.mxu0 0.0
        %1120 = vmatpush1.msra.mxu0 0.0
        %1121 = vmatprep.subr.mxu0 0.0
        %1122 = vmatpush1.msra.mxu0 0.0
        %1123 = vmatprep.subr.mxu0 0.0
        %1124 = vmatpush1.msra.mxu0 0.0
        %1125 = vmatprep.subr.mxu0 0.0
        %1126 = vmatpush1.msra.mxu0 0.0
        %1127 = vmatprep.mubr.f32.mxu0 0.0
        %1128 = vmatmul.mubr.f32.gmra.mrb[0].mxu0 %v1046
        %v1129 = vpop.f32.mrb[0].mxu0
        %v1130 = vadd.f32 0.0, %v1129
        %v1131 = vpop.f32.mrb[0].mxu0
        %1132 = vmatprep.mubr.f32.mxu0 0.0
        %1133 = vmatmul.mubr.f32.gmra.mrb[0].mxu0 %v1049
        %v1134 = vpop.f32.mrb[0].mxu0
        %v1135 = vadd.f32 0.0, %v1134
        %v1136 = vpop.f32.mrb[0].mxu0
        %1137 = vmatprep.mubr.f32.mxu0 0.0
        %1138 = vmatmul.mubr.f32.gmra.mrb[0].mxu0 %v1052
        %v1139 = vpop.f32.mrb[0].mxu0
        %v1140 = vadd.f32 0.0, %v1139
        %v1141 = vpop.f32.mrb[0].mxu0
        %1142 = vmatprep.mubr.f32.mxu0 0.0
        %1143 = vmatmul.mubr.f32.gmra.mrb[0].mxu0 %v1055
        %v1144 = vpop.f32.mrb[0].mxu0
        %v1145 = vadd.f32 0.0, %v1144
        %v1146 = vpop.f32.mrb[0].mxu0
        %1147 = vmatprep.mubr.f32.mxu0 0.0
        %1148 = vmatmul.mubr.f32.gmra.mrb[0].mxu0 %v1058
        %v1149 = vpop.f32.mrb[0].mxu0
        %v1150 = vadd.f32 0.0, %v1149
        %v1151 = vpop.f32.mrb[0].mxu0
        %1152 = vdwg.mxu0
        %v1153 = vadd.f32 %v1032, %v1130
        %v1154 = vadd.f32 %v1033, %v1135
        %v1155 = vadd.f32 %v1034, %v1140
        %v1156 = vadd.f32 %v1035, %v1145
        %v1157 = vadd.f32 %v1036, %v1150
        %v1158 = vld [vmem:[%s314 + $0xf] sm:$0xff]
        %v1159 = vld [vmem:[%s314 + $0x17] sm:$0xff]
        %v1160 = vld [vmem:[%s314 + $0x1f] sm:$0xff]
        %v1161 = vld [vmem:[%s314 + $0x27] sm:$0xff]
        %v1162 = vld [vmem:[%s314 + $0x2f] sm:$0x1f]
        %s1163 = scalar_lea.vmem %s1, 112
        %v1164 = vld [vmem:[%s1163] sm:$0xff]
        %v1165 = vld [vmem:[%s1163 + $0x8] sm:$0x3]
        %v1167 = vsel %vm335, %v1158, 0
        %v1170 = vsel %vm335, %v1159, 0
        %v1173 = vsel %vm335, %v1160, 0
        %v1176 = vsel %vm335, %v1161, 0
        %v1179 = vsel %vm335, %v1162, 0
        %v1182 = vsel %vm351, %v1165, 0
        %1184 = vmatprep.subr.mxu0 0.0
        %1185 = vmatpush1.msra.mxu0 %v1164
        %1186 = vmatprep.subr.mxu0 0.0
        %1187 = vmatpush1.msra.mxu0 %v1182
        %1188 = vmatprep.subr.mxu0 0.0
        %1189 = vmatpush1.msra.mxu0 0.0
        %1190 = vmatprep.subr.mxu0 0.0
        %1191 = vmatpush1.msra.mxu0 0.0
        %1192 = vmatprep.subr.mxu0 0.0
        %1193 = vmatpush1.msra.mxu0 0.0
        %1194 = vmatprep.subr.mxu0 0.0
        %1195 = vmatpush1.msra.mxu0 0.0
        %1196 = vmatprep.subr.mxu0 0.0
        %1197 = vmatpush1.msra.mxu0 0.0
        %1198 = vmatprep.subr.mxu0 0.0
        %1199 = vmatpush1.msra.mxu0 0.0
        %1200 = vmatprep.subr.mxu0 0.0
        %1201 = vmatpush1.msra.mxu0 0.0
        %1202 = vmatprep.subr.mxu0 0.0
        %1203 = vmatpush1.msra.mxu0 0.0
        %1204 = vmatprep.subr.mxu0 0.0
        %1205 = vmatpush1.msra.mxu0 0.0
        %1206 = vmatprep.subr.mxu0 0.0
        %1207 = vmatpush1.msra.mxu0 0.0
        %1208 = vmatprep.subr.mxu0 0.0
        %1209 = vmatpush1.msra.mxu0 0.0
        %1210 = vmatprep.subr.mxu0 0.0
        %1211 = vmatpush1.msra.mxu0 0.0
        %1212 = vmatprep.subr.mxu0 0.0
        %1213 = vmatpush1.msra.mxu0 0.0
        %1214 = vmatprep.subr.mxu0 0.0
        %1215 = vmatpush1.msra.mxu0 0.0
        %1216 = vmatprep.subr.mxu0 0.0
        %1217 = vmatpush1.msra.mxu0 0.0
        %1218 = vmatprep.subr.mxu0 0.0
        %1219 = vmatpush1.msra.mxu0 0.0
        %1220 = vmatprep.subr.mxu0 0.0
        %1221 = vmatpush1.msra.mxu0 0.0
        %1222 = vmatprep.subr.mxu0 0.0
        %1223 = vmatpush1.msra.mxu0 0.0
        %1224 = vmatprep.subr.mxu0 0.0
        %1225 = vmatpush1.msra.mxu0 0.0
        %1226 = vmatprep.subr.mxu0 0.0
        %1227 = vmatpush1.msra.mxu0 0.0
        %1228 = vmatprep.subr.mxu0 0.0
        %1229 = vmatpush1.msra.mxu0 0.0
        %1230 = vmatprep.subr.mxu0 0.0
        %1231 = vmatpush1.msra.mxu0 0.0
        %1232 = vmatprep.subr.mxu0 0.0
        %1233 = vmatpush1.msra.mxu0 0.0
        %1234 = vmatprep.subr.mxu0 0.0
        %1235 = vmatpush1.msra.mxu0 0.0
        %1236 = vmatprep.subr.mxu0 0.0
        %1237 = vmatpush1.msra.mxu0 0.0
        %1238 = vmatprep.subr.mxu0 0.0
        %1239 = vmatpush1.msra.mxu0 0.0
        %1240 = vmatprep.subr.mxu0 0.0
        %1241 = vmatpush1.msra.mxu0 0.0
        %1242 = vmatprep.subr.mxu0 0.0
        %1243 = vmatpush1.msra.mxu0 0.0
        %1244 = vmatprep.subr.mxu0 0.0
        %1245 = vmatpush1.msra.mxu0 0.0
        %1246 = vmatprep.subr.mxu0 0.0
        %1247 = vmatpush1.msra.mxu0 0.0
        %1248 = vmatprep.mubr.f32.mxu0 0.0
        %1249 = vmatmul.mubr.f32.gmra.mrb[0].mxu0 %v1167
        %v1250 = vpop.f32.mrb[0].mxu0
        %v1251 = vadd.f32 0.0, %v1250
        %v1252 = vpop.f32.mrb[0].mxu0
        %1253 = vmatprep.mubr.f32.mxu0 0.0
        %1254 = vmatmul.mubr.f32.gmra.mrb[0].mxu0 %v1170
        %v1255 = vpop.f32.mrb[0].mxu0
        %v1256 = vadd.f32 0.0, %v1255
        %v1257 = vpop.f32.mrb[0].mxu0
        %1258 = vmatprep.mubr.f32.mxu0 0.0
        %1259 = vmatmul.mubr.f32.gmra.mrb[0].mxu0 %v1173
        %v1260 = vpop.f32.mrb[0].mxu0
        %v1261 = vadd.f32 0.0, %v1260
        %v1262 = vpop.f32.mrb[0].mxu0
        %1263 = vmatprep.mubr.f32.mxu0 0.0
        %1264 = vmatmul.mubr.f32.gmra.mrb[0].mxu0 %v1176
        %v1265 = vpop.f32.mrb[0].mxu0
        %v1266 = vadd.f32 0.0, %v1265
        %v1267 = vpop.f32.mrb[0].mxu0
        %1268 = vmatprep.mubr.f32.mxu0 0.0
        %1269 = vmatmul.mubr.f32.gmra.mrb[0].mxu0 %v1179
        %v1270 = vpop.f32.mrb[0].mxu0
        %v1271 = vadd.f32 0.0, %v1270
        %v1272 = vpop.f32.mrb[0].mxu0
        %1273 = vdwg.mxu0
        %v1274 = vadd.f32 %v1153, %v1251
        %v1275 = vadd.f32 %v1154, %v1256
        %v1276 = vadd.f32 %v1155, %v1261
        %v1277 = vadd.f32 %v1156, %v1266
        %v1278 = vadd.f32 %v1157, %v1271
        %v1279 = vld [vmem:[%s314 + $0x10] sm:$0xff]
        %v1280 = vld [vmem:[%s314 + $0x18] sm:$0xff]
        %v1281 = vld [vmem:[%s314 + $0x20] sm:$0xff]
        %v1282 = vld [vmem:[%s314 + $0x28] sm:$0xff]
        %v1283 = vld [vmem:[%s314 + $0x30] sm:$0x1f]
        %s1284 = scalar_lea.vmem %s1, 128
        %v1285 = vld [vmem:[%s1284] sm:$0xff]
        %v1286 = vld [vmem:[%s1284 + $0x8] sm:$0x3]
        %v1288 = vsel %vm335, %v1279, 0
        %v1291 = vsel %vm335, %v1280, 0
        %v1294 = vsel %vm335, %v1281, 0
        %v1297 = vsel %vm335, %v1282, 0
        %v1300 = vsel %vm335, %v1283, 0
        %v1303 = vsel %vm351, %v1286, 0
        %1305 = vmatprep.subr.mxu0 0.0
        %1306 = vmatpush1.msra.mxu0 %v1285
        %1307 = vmatprep.subr.mxu0 0.0
        %1308 = vmatpush1.msra.mxu0 %v1303
        %1309 = vmatprep.subr.mxu0 0.0
        %1310 = vmatpush1.msra.mxu0 0.0
        %1311 = vmatprep.subr.mxu0 0.0
        %1312 = vmatpush1.msra.mxu0 0.0
        %1313 = vmatprep.subr.mxu0 0.0
        %1314 = vmatpush1.msra.mxu0 0.0
        %1315 = vmatprep.subr.mxu0 0.0
        %1316 = vmatpush1.msra.mxu0 0.0
        %1317 = vmatprep.subr.mxu0 0.0
        %1318 = vmatpush1.msra.mxu0 0.0
        %1319 = vmatprep.subr.mxu0 0.0
        %1320 = vmatpush1.msra.mxu0 0.0
        %1321 = vmatprep.subr.mxu0 0.0
        %1322 = vmatpush1.msra.mxu0 0.0
        %1323 = vmatprep.subr.mxu0 0.0
        %1324 = vmatpush1.msra.mxu0 0.0
        %1325 = vmatprep.subr.mxu0 0.0
        %1326 = vmatpush1.msra.mxu0 0.0
        %1327 = vmatprep.subr.mxu0 0.0
        %1328 = vmatpush1.msra.mxu0 0.0
        %1329 = vmatprep.subr.mxu0 0.0
        %1330 = vmatpush1.msra.mxu0 0.0
        %1331 = vmatprep.subr.mxu0 0.0
        %1332 = vmatpush1.msra.mxu0 0.0
        %1333 = vmatprep.subr.mxu0 0.0
        %1334 = vmatpush1.msra.mxu0 0.0
        %1335 = vmatprep.subr.mxu0 0.0
        %1336 = vmatpush1.msra.mxu0 0.0
        %1337 = vmatprep.subr.mxu0 0.0
        %1338 = vmatpush1.msra.mxu0 0.0
        %1339 = vmatprep.subr.mxu0 0.0
        %1340 = vmatpush1.msra.mxu0 0.0
        %1341 = vmatprep.subr.mxu0 0.0
        %1342 = vmatpush1.msra.mxu0 0.0
        %1343 = vmatprep.subr.mxu0 0.0
        %1344 = vmatpush1.msra.mxu0 0.0
        %1345 = vmatprep.subr.mxu0 0.0
        %1346 = vmatpush1.msra.mxu0 0.0
        %1347 = vmatprep.subr.mxu0 0.0
        %1348 = vmatpush1.msra.mxu0 0.0
        %1349 = vmatprep.subr.mxu0 0.0
        %1350 = vmatpush1.msra.mxu0 0.0
        %1351 = vmatprep.subr.mxu0 0.0
        %1352 = vmatpush1.msra.mxu0 0.0
        %1353 = vmatprep.subr.mxu0 0.0
        %1354 = vmatpush1.msra.mxu0 0.0
        %1355 = vmatprep.subr.mxu0 0.0
        %1356 = vmatpush1.msra.mxu0 0.0
        %1357 = vmatprep.subr.mxu0 0.0
        %1358 = vmatpush1.msra.mxu0 0.0
        %1359 = vmatprep.subr.mxu0 0.0
        %1360 = vmatpush1.msra.mxu0 0.0
        %1361 = vmatprep.subr.mxu0 0.0
        %1362 = vmatpush1.msra.mxu0 0.0
        %1363 = vmatprep.subr.mxu0 0.0
        %1364 = vmatpush1.msra.mxu0 0.0
        %1365 = vmatprep.subr.mxu0 0.0
        %1366 = vmatpush1.msra.mxu0 0.0
        %1367 = vmatprep.subr.mxu0 0.0
        %1368 = vmatpush1.msra.mxu0 0.0
        %1369 = vmatprep.mubr.f32.mxu0 0.0
        %1370 = vmatmul.mubr.f32.gmra.mrb[0].mxu0 %v1288
        %v1371 = vpop.f32.mrb[0].mxu0
        %v1372 = vadd.f32 0.0, %v1371
        %v1373 = vpop.f32.mrb[0].mxu0
        %1374 = vmatprep.mubr.f32.mxu0 0.0
        %1375 = vmatmul.mubr.f32.gmra.mrb[0].mxu0 %v1291
        %v1376 = vpop.f32.mrb[0].mxu0
        %v1377 = vadd.f32 0.0, %v1376
        %v1378 = vpop.f32.mrb[0].mxu0
        %1379 = vmatprep.mubr.f32.mxu0 0.0
        %1380 = vmatmul.mubr.f32.gmra.mrb[0].mxu0 %v1294
        %v1381 = vpop.f32.mrb[0].mxu0
        %v1382 = vadd.f32 0.0, %v1381
        %v1383 = vpop.f32.mrb[0].mxu0
        %1384 = vmatprep.mubr.f32.mxu0 0.0
        %1385 = vmatmul.mubr.f32.gmra.mrb[0].mxu0 %v1297
        %v1386 = vpop.f32.mrb[0].mxu0
        %v1387 = vadd.f32 0.0, %v1386
        %v1388 = vpop.f32.mrb[0].mxu0
        %1389 = vmatprep.mubr.f32.mxu0 0.0
        %1390 = vmatmul.mubr.f32.gmra.mrb[0].mxu0 %v1300
        %v1391 = vpop.f32.mrb[0].mxu0
        %v1392 = vadd.f32 0.0, %v1391
        %v1393 = vpop.f32.mrb[0].mxu0
        %1394 = vdwg.mxu0
        %v1395 = vadd.f32 %v1274, %v1372
        %v1396 = vadd.f32 %v1275, %v1377
        %v1397 = vadd.f32 %v1276, %v1382
        %v1398 = vadd.f32 %v1277, %v1387
        %v1399 = vadd.f32 %v1278, %v1392
        %v1400 = vld [vmem:[%s2] sm:$0x1]
        %v1402 = vlaneseq
        %v1403 = vshrl.u32 %v1402, 7
        %v1404 = vsub.s32 0, %v1403
        %v1405 = vrot.slane %v1400, %v1404
        %v1407 = vadd.f32 %v1395, %v1405
        %v1408 = vadd.f32 %v1396, %v1405
        %v1409 = vadd.f32 %v1397, %v1405
        %v1410 = vadd.f32 %v1398, %v1405
        %v1411 = vadd.f32 %v1399, %v1405
        %vm1412 = vcmp.ge.f32.partialorder %v1407, 0.0
        %vm1413 = vcmp.ge.f32.partialorder %v1408, 0.0
        %vm1414 = vcmp.ge.f32.partialorder %v1409, 0.0
        %vm1415 = vcmp.ge.f32.partialorder %v1410, 0.0
        %vm1416 = vcmp.ge.f32.partialorder %v1411, 0.0
        %s1417 = sld [smem:[#allocation2]]
        %v1418 = vstv %s1417
        %v1419 = vmul.f32 %v1418, %v1407
        %v1420 = vmul.f32 %v1418, %v1408
        %v1421 = vmul.f32 %v1418, %v1409
        %v1422 = vmul.f32 %v1418, %v1410
        %v1423 = vmul.f32 %v1418, %v1411
        %v1424 = vsel %vm1412, %v1407, %v1419
        %v1425 = vsel %vm1413, %v1408, %v1420
        %v1426 = vsel %vm1414, %v1409, %v1421
        %v1427 = vsel %vm1415, %v1410, %v1422
        %v1428 = vsel %vm1416, %v1411, %v1423
        %v1429 = vld [vmem:[%s3] sm:$0xff]
        %v1430 = vld [vmem:[%s3 + $0x8] sm:$0xff]
        %s1431 = scalar_lea.vmem %s3, 16
        %v1432 = vld [vmem:[%s1431] sm:$0xff]
        %v1433 = vld [vmem:[%s1431 + $0x8] sm:$0xff]
        %vm1437 = vcmask 1046528
        %v1438 = vrot.slane %v1424, 1
        %v1439 = vrot.slane %v1425, 1
        %v1440 = vsel %vm1437, %v1438, %v1439
        %v1441 = vrot.slane %v1426, 1
        %v1442 = vsel %vm1437, %v1439, %v1441
        %vm1443 = vcmask 130048
        %v1444 = vsel %vm1443, %v1440, 0
        %v1446 = vsel %vm1443, %v1442, 0
        %v1448 = vsel %vm1443, %v1441, 0
        %1450 = vmatprep.subr.mxu0 0.0
        %1451 = vmatpush1.msra.mxu0 %v1432
        %1452 = vmatprep.subr.mxu0 0.0
        %1453 = vmatpush1.msra.mxu0 %v1433
        %1454 = vmatprep.subr.mxu0 0.0
        %1455 = vmatpush1.msra.mxu0 0.0
        %1456 = vmatprep.subr.mxu0 0.0
        %1457 = vmatpush1.msra.mxu0 0.0
        %1458 = vmatprep.subr.mxu0 0.0
        %1459 = vmatpush1.msra.mxu0 0.0
        %1460 = vmatprep.subr.mxu0 0.0
        %1461 = vmatpush1.msra.mxu0 0.0
        %1462 = vmatprep.subr.mxu0 0.0
        %1463 = vmatpush1.msra.mxu0 0.0
        %1464 = vmatprep.subr.mxu0 0.0
        %1465 = vmatpush1.msra.mxu0 0.0
        %1466 = vmatprep.subr.mxu0 0.0
        %1467 = vmatpush1.msra.mxu0 0.0
        %1468 = vmatprep.subr.mxu0 0.0
        %1469 = vmatpush1.msra.mxu0 0.0
        %1470 = vmatprep.subr.mxu0 0.0
        %1471 = vmatpush1.msra.mxu0 0.0
        %1472 = vmatprep.subr.mxu0 0.0
        %1473 = vmatpush1.msra.mxu0 0.0
        %1474 = vmatprep.subr.mxu0 0.0
        %1475 = vmatpush1.msra.mxu0 0.0
        %1476 = vmatprep.subr.mxu0 0.0
        %1477 = vmatpush1.msra.mxu0 0.0
        %1478 = vmatprep.subr.mxu0 0.0
        %1479 = vmatpush1.msra.mxu0 0.0
        %1480 = vmatprep.subr.mxu0 0.0
        %1481 = vmatpush1.msra.mxu0 0.0
        %1482 = vmatprep.subr.mxu0 0.0
        %1483 = vmatpush1.msra.mxu0 0.0
        %1484 = vmatprep.subr.mxu0 0.0
        %1485 = vmatpush1.msra.mxu0 0.0
        %1486 = vmatprep.subr.mxu0 0.0
        %1487 = vmatpush1.msra.mxu0 0.0
        %1488 = vmatprep.subr.mxu0 0.0
        %1489 = vmatpush1.msra.mxu0 0.0
        %1490 = vmatprep.subr.mxu0 0.0
        %1491 = vmatpush1.msra.mxu0 0.0
        %1492 = vmatprep.subr.mxu0 0.0
        %1493 = vmatpush1.msra.mxu0 0.0
        %1494 = vmatprep.subr.mxu0 0.0
        %1495 = vmatpush1.msra.mxu0 0.0
        %1496 = vmatprep.subr.mxu0 0.0
        %1497 = vmatpush1.msra.mxu0 0.0
        %1498 = vmatprep.subr.mxu0 0.0
        %1499 = vmatpush1.msra.mxu0 0.0
        %1500 = vmatprep.subr.mxu0 0.0
        %1501 = vmatpush1.msra.mxu0 0.0
        %1502 = vmatprep.subr.mxu0 0.0
        %1503 = vmatpush1.msra.mxu0 0.0
        %1504 = vmatprep.subr.mxu0 0.0
        %1505 = vmatpush1.msra.mxu0 0.0
        %1506 = vmatprep.subr.mxu0 0.0
        %1507 = vmatpush1.msra.mxu0 0.0
        %1508 = vmatprep.subr.mxu0 0.0
        %1509 = vmatpush1.msra.mxu0 0.0
        %1510 = vmatprep.subr.mxu0 0.0
        %1511 = vmatpush1.msra.mxu0 0.0
        %1512 = vmatprep.subr.mxu0 0.0
        %1513 = vmatpush1.msra.mxu0 0.0
        %1514 = vmatprep.mubr.f32.mxu0 0.0
        %1515 = vmatmul.mubr.f32.gmra.mrb[0].mxu0 %v1444
        %v1516 = vpop.f32.mrb[0].mxu0
        %v1517 = vadd.f32 0.0, %v1516
        %v1518 = vpop.f32.mrb[0].mxu0
        %1519 = vmatprep.mubr.f32.mxu0 0.0
        %1520 = vmatmul.mubr.f32.gmra.mrb[0].mxu0 %v1446
        %v1521 = vpop.f32.mrb[0].mxu0
        %v1522 = vadd.f32 0.0, %v1521
        %v1523 = vpop.f32.mrb[0].mxu0
        %1524 = vmatprep.mubr.f32.mxu0 0.0
        %1525 = vmatmul.mubr.f32.gmra.mrb[0].mxu0 %v1448
        %v1526 = vpop.f32.mrb[0].mxu0
        %v1527 = vadd.f32 0.0, %v1526
        %v1528 = vpop.f32.mrb[0].mxu0
        %1529 = vdwg.mxu0
        %v1530 = vsel %vm1443, %v1424, 0
        %v1532 = vsel %vm1443, %v1425, 0
        %v1534 = vsel %vm1443, %v1426, 0
        %1536 = vmatprep.subr.mxu0 0.0
        %1537 = vmatpush1.msra.mxu0 %v1429
        %1538 = vmatprep.subr.mxu0 0.0
        %1539 = vmatpush1.msra.mxu0 %v1430
        %1540 = vmatprep.subr.mxu0 0.0
        %1541 = vmatpush1.msra.mxu0 0.0
        %1542 = vmatprep.subr.mxu0 0.0
        %1543 = vmatpush1.msra.mxu0 0.0
        %1544 = vmatprep.subr.mxu0 0.0
        %1545 = vmatpush1.msra.mxu0 0.0
        %1546 = vmatprep.subr.mxu0 0.0
        %1547 = vmatpush1.msra.mxu0 0.0
        %1548 = vmatprep.subr.mxu0 0.0
        %1549 = vmatpush1.msra.mxu0 0.0
        %1550 = vmatprep.subr.mxu0 0.0
        %1551 = vmatpush1.msra.mxu0 0.0
        %1552 = vmatprep.subr.mxu0 0.0
        %1553 = vmatpush1.msra.mxu0 0.0
        %1554 = vmatprep.subr.mxu0 0.0
        %1555 = vmatpush1.msra.mxu0 0.0
        %1556 = vmatprep.subr.mxu0 0.0
        %1557 = vmatpush1.msra.mxu0 0.0
        %1558 = vmatprep.subr.mxu0 0.0
        %1559 = vmatpush1.msra.mxu0 0.0
        %1560 = vmatprep.subr.mxu0 0.0
        %1561 = vmatpush1.msra.mxu0 0.0
        %1562 = vmatprep.subr.mxu0 0.0
        %1563 = vmatpush1.msra.mxu0 0.0
        %1564 = vmatprep.subr.mxu0 0.0
        %1565 = vmatpush1.msra.mxu0 0.0
        %1566 = vmatprep.subr.mxu0 0.0
        %1567 = vmatpush1.msra.mxu0 0.0
        %1568 = vmatprep.subr.mxu0 0.0
        %1569 = vmatpush1.msra.mxu0 0.0
        %1570 = vmatprep.subr.mxu0 0.0
        %1571 = vmatpush1.msra.mxu0 0.0
        %1572 = vmatprep.subr.mxu0 0.0
        %1573 = vmatpush1.msra.mxu0 0.0
        %1574 = vmatprep.subr.mxu0 0.0
        %1575 = vmatpush1.msra.mxu0 0.0
        %1576 = vmatprep.subr.mxu0 0.0
        %1577 = vmatpush1.msra.mxu0 0.0
        %1578 = vmatprep.subr.mxu0 0.0
        %1579 = vmatpush1.msra.mxu0 0.0
        %1580 = vmatprep.subr.mxu0 0.0
        %1581 = vmatpush1.msra.mxu0 0.0
        %1582 = vmatprep.subr.mxu0 0.0
        %1583 = vmatpush1.msra.mxu0 0.0
        %1584 = vmatprep.subr.mxu0 0.0
        %1585 = vmatpush1.msra.mxu0 0.0
        %1586 = vmatprep.subr.mxu0 0.0
        %1587 = vmatpush1.msra.mxu0 0.0
        %1588 = vmatprep.subr.mxu0 0.0
        %1589 = vmatpush1.msra.mxu0 0.0
        %1590 = vmatprep.subr.mxu0 0.0
        %1591 = vmatpush1.msra.mxu0 0.0
        %1592 = vmatprep.subr.mxu0 0.0
        %1593 = vmatpush1.msra.mxu0 0.0
        %1594 = vmatprep.subr.mxu0 0.0
        %1595 = vmatpush1.msra.mxu0 0.0
        %1596 = vmatprep.subr.mxu0 0.0
        %1597 = vmatpush1.msra.mxu0 0.0
        %1598 = vmatprep.subr.mxu0 0.0
        %1599 = vmatpush1.msra.mxu0 0.0
        %1600 = vmatprep.mubr.f32.mxu0 0.0
        %1601 = vmatmul.mubr.f32.gmra.mrb[0].mxu0 %v1530
        %v1602 = vpop.f32.mrb[0].mxu0
        %v1603 = vadd.f32 %v1517, %v1602
        %v1604 = vpop.f32.mrb[0].mxu0
        %1605 = vmatprep.mubr.f32.mxu0 0.0
        %1606 = vmatmul.mubr.f32.gmra.mrb[0].mxu0 %v1532
        %v1607 = vpop.f32.mrb[0].mxu0
        %v1608 = vadd.f32 %v1522, %v1607
        %v1609 = vpop.f32.mrb[0].mxu0
        %1610 = vmatprep.mubr.f32.mxu0 0.0
        %1611 = vmatmul.mubr.f32.gmra.mrb[0].mxu0 %v1534
        %v1612 = vpop.f32.mrb[0].mxu0
        %v1613 = vadd.f32 %v1527, %v1612
        %v1614 = vpop.f32.mrb[0].mxu0
        %1615 = vdwg.mxu0
        %s1616 = scalar_lea.vmem %s3, 32
        %v1617 = vld [vmem:[%s1616] sm:$0xff]
        %v1618 = vld [vmem:[%s1616 + $0x8] sm:$0xff]
        %vm1619 = vcmask 1045504
        %v1620 = vrot.slane %v1424, 2
        %v1621 = vrot.slane %v1425, 2
        %v1622 = vsel %vm1619, %v1620, %v1621
        %v1623 = vrot.slane %v1426, 2
        %v1624 = vsel %vm1619, %v1621, %v1623
        %v1625 = vsel %vm1443, %v1622, 0
        %v1627 = vsel %vm1443, %v1624, 0
        %v1629 = vsel %vm1443, %v1623, 0
        %1631 = vmatprep.subr.mxu0 0.0
        %1632 = vmatpush1.msra.mxu0 %v1617
        %1633 = vmatprep.subr.mxu0 0.0
        %1634 = vmatpush1.msra.mxu0 %v1618
        %1635 = vmatprep.subr.mxu0 0.0
        %1636 = vmatpush1.msra.mxu0 0.0
        %1637 = vmatprep.subr.mxu0 0.0
        %1638 = vmatpush1.msra.mxu0 0.0
        %1639 = vmatprep.subr.mxu0 0.0
        %1640 = vmatpush1.msra.mxu0 0.0
        %1641 = vmatprep.subr.mxu0 0.0
        %1642 = vmatpush1.msra.mxu0 0.0
        %1643 = vmatprep.subr.mxu0 0.0
        %1644 = vmatpush1.msra.mxu0 0.0
        %1645 = vmatprep.subr.mxu0 0.0
        %1646 = vmatpush1.msra.mxu0 0.0
        %1647 = vmatprep.subr.mxu0 0.0
        %1648 = vmatpush1.msra.mxu0 0.0
        %1649 = vmatprep.subr.mxu0 0.0
        %1650 = vmatpush1.msra.mxu0 0.0
        %1651 = vmatprep.subr.mxu0 0.0
        %1652 = vmatpush1.msra.mxu0 0.0
        %1653 = vmatprep.subr.mxu0 0.0
        %1654 = vmatpush1.msra.mxu0 0.0
        %1655 = vmatprep.subr.mxu0 0.0
        %1656 = vmatpush1.msra.mxu0 0.0
        %1657 = vmatprep.subr.mxu0 0.0
        %1658 = vmatpush1.msra.mxu0 0.0
        %1659 = vmatprep.subr.mxu0 0.0
        %1660 = vmatpush1.msra.mxu0 0.0
        %1661 = vmatprep.subr.mxu0 0.0
        %1662 = vmatpush1.msra.mxu0 0.0
        %1663 = vmatprep.subr.mxu0 0.0
        %1664 = vmatpush1.msra.mxu0 0.0
        %1665 = vmatprep.subr.mxu0 0.0
        %1666 = vmatpush1.msra.mxu0 0.0
        %1667 = vmatprep.subr.mxu0 0.0
        %1668 = vmatpush1.msra.mxu0 0.0
        %1669 = vmatprep.subr.mxu0 0.0
        %1670 = vmatpush1.msra.mxu0 0.0
        %1671 = vmatprep.subr.mxu0 0.0
        %1672 = vmatpush1.msra.mxu0 0.0
        %1673 = vmatprep.subr.mxu0 0.0
        %1674 = vmatpush1.msra.mxu0 0.0
        %1675 = vmatprep.subr.mxu0 0.0
        %1676 = vmatpush1.msra.mxu0 0.0
        %1677 = vmatprep.subr.mxu0 0.0
        %1678 = vmatpush1.msra.mxu0 0.0
        %1679 = vmatprep.subr.mxu0 0.0
        %1680 = vmatpush1.msra.mxu0 0.0
        %1681 = vmatprep.subr.mxu0 0.0
        %1682 = vmatpush1.msra.mxu0 0.0
        %1683 = vmatprep.subr.mxu0 0.0
        %1684 = vmatpush1.msra.mxu0 0.0
        %1685 = vmatprep.subr.mxu0 0.0
        %1686 = vmatpush1.msra.mxu0 0.0
        %1687 = vmatprep.subr.mxu0 0.0
        %1688 = vmatpush1.msra.mxu0 0.0
        %1689 = vmatprep.subr.mxu0 0.0
        %1690 = vmatpush1.msra.mxu0 0.0
        %1691 = vmatprep.subr.mxu0 0.0
        %1692 = vmatpush1.msra.mxu0 0.0
        %1693 = vmatprep.subr.mxu0 0.0
        %1694 = vmatpush1.msra.mxu0 0.0
        %1695 = vmatprep.mubr.f32.mxu0 0.0
        %1696 = vmatmul.mubr.f32.gmra.mrb[0].mxu0 %v1625
        %v1697 = vpop.f32.mrb[0].mxu0
        %v1698 = vadd.f32 0.0, %v1697
        %v1699 = vpop.f32.mrb[0].mxu0
        %1700 = vmatprep.mubr.f32.mxu0 0.0
        %1701 = vmatmul.mubr.f32.gmra.mrb[0].mxu0 %v1627
        %v1702 = vpop.f32.mrb[0].mxu0
        %v1703 = vadd.f32 0.0, %v1702
        %v1704 = vpop.f32.mrb[0].mxu0
        %1705 = vmatprep.mubr.f32.mxu0 0.0
        %1706 = vmatmul.mubr.f32.gmra.mrb[0].mxu0 %v1629
        %v1707 = vpop.f32.mrb[0].mxu0
        %v1708 = vadd.f32 0.0, %v1707
        %v1709 = vpop.f32.mrb[0].mxu0
        %1710 = vdwg.mxu0
        %v1711 = vadd.f32 %v1603, %v1698
        %v1712 = vadd.f32 %v1608, %v1703
        %v1713 = vadd.f32 %v1613, %v1708
        %s1714 = scalar_lea.vmem %s3, 48
        %v1715 = vld [vmem:[%s1714] sm:$0xff]
        %v1716 = vld [vmem:[%s1714 + $0x8] sm:$0xff]
        %vm1718 = vcmask 1040384
        %v1719 = vrot.slane %v1424, 7
        %v1720 = vrot.slane %v1425, 7
        %v1721 = vsel %vm1718, %v1719, %v1720
        %v1722 = vrot.slane %v1426, 7
        %v1723 = vsel %vm1718, %v1720, %v1722
        %v1724 = vrot.slane %v1427, 7
        %v1725 = vsel %vm1718, %v1722, %v1724
        %v1726 = vsel %vm1443, %v1721, 0
        %v1728 = vsel %vm1443, %v1723, 0
        %v1730 = vsel %vm1443, %v1725, 0
        %1732 = vmatprep.subr.mxu0 0.0
        %1733 = vmatpush1.msra.mxu0 %v1715
        %1734 = vmatprep.subr.mxu0 0.0
        %1735 = vmatpush1.msra.mxu0 %v1716
        %1736 = vmatprep.subr.mxu0 0.0
        %1737 = vmatpush1.msra.mxu0 0.0
        %1738 = vmatprep.subr.mxu0 0.0
        %1739 = vmatpush1.msra.mxu0 0.0
        %1740 = vmatprep.subr.mxu0 0.0
        %1741 = vmatpush1.msra.mxu0 0.0
        %1742 = vmatprep.subr.mxu0 0.0
        %1743 = vmatpush1.msra.mxu0 0.0
        %1744 = vmatprep.subr.mxu0 0.0
        %1745 = vmatpush1.msra.mxu0 0.0
        %1746 = vmatprep.subr.mxu0 0.0
        %1747 = vmatpush1.msra.mxu0 0.0
        %1748 = vmatprep.subr.mxu0 0.0
        %1749 = vmatpush1.msra.mxu0 0.0
        %1750 = vmatprep.subr.mxu0 0.0
        %1751 = vmatpush1.msra.mxu0 0.0
        %1752 = vmatprep.subr.mxu0 0.0
        %1753 = vmatpush1.msra.mxu0 0.0
        %1754 = vmatprep.subr.mxu0 0.0
        %1755 = vmatpush1.msra.mxu0 0.0
        %1756 = vmatprep.subr.mxu0 0.0
        %1757 = vmatpush1.msra.mxu0 0.0
        %1758 = vmatprep.subr.mxu0 0.0
        %1759 = vmatpush1.msra.mxu0 0.0
        %1760 = vmatprep.subr.mxu0 0.0
        %1761 = vmatpush1.msra.mxu0 0.0
        %1762 = vmatprep.subr.mxu0 0.0
        %1763 = vmatpush1.msra.mxu0 0.0
        %1764 = vmatprep.subr.mxu0 0.0
        %1765 = vmatpush1.msra.mxu0 0.0
        %1766 = vmatprep.subr.mxu0 0.0
        %1767 = vmatpush1.msra.mxu0 0.0
        %1768 = vmatprep.subr.mxu0 0.0
        %1769 = vmatpush1.msra.mxu0 0.0
        %1770 = vmatprep.subr.mxu0 0.0
        %1771 = vmatpush1.msra.mxu0 0.0
        %1772 = vmatprep.subr.mxu0 0.0
        %1773 = vmatpush1.msra.mxu0 0.0
        %1774 = vmatprep.subr.mxu0 0.0
        %1775 = vmatpush1.msra.mxu0 0.0
        %1776 = vmatprep.subr.mxu0 0.0
        %1777 = vmatpush1.msra.mxu0 0.0
        %1778 = vmatprep.subr.mxu0 0.0
        %1779 = vmatpush1.msra.mxu0 0.0
        %1780 = vmatprep.subr.mxu0 0.0
        %1781 = vmatpush1.msra.mxu0 0.0
        %1782 = vmatprep.subr.mxu0 0.0
        %1783 = vmatpush1.msra.mxu0 0.0
        %1784 = vmatprep.subr.mxu0 0.0
        %1785 = vmatpush1.msra.mxu0 0.0
        %1786 = vmatprep.subr.mxu0 0.0
        %1787 = vmatpush1.msra.mxu0 0.0
        %1788 = vmatprep.subr.mxu0 0.0
        %1789 = vmatpush1.msra.mxu0 0.0
        %1790 = vmatprep.subr.mxu0 0.0
        %1791 = vmatpush1.msra.mxu0 0.0
        %1792 = vmatprep.subr.mxu0 0.0
        %1793 = vmatpush1.msra.mxu0 0.0
        %1794 = vmatprep.subr.mxu0 0.0
        %1795 = vmatpush1.msra.mxu0 0.0
        %1796 = vmatprep.mubr.f32.mxu0 0.0
        %1797 = vmatmul.mubr.f32.gmra.mrb[0].mxu0 %v1726
        %v1798 = vpop.f32.mrb[0].mxu0
        %v1799 = vadd.f32 0.0, %v1798
        %v1800 = vpop.f32.mrb[0].mxu0
        %1801 = vmatprep.mubr.f32.mxu0 0.0
        %1802 = vmatmul.mubr.f32.gmra.mrb[0].mxu0 %v1728
        %v1803 = vpop.f32.mrb[0].mxu0
        %v1804 = vadd.f32 0.0, %v1803
        %v1805 = vpop.f32.mrb[0].mxu0
        %1806 = vmatprep.mubr.f32.mxu0 0.0
        %1807 = vmatmul.mubr.f32.gmra.mrb[0].mxu0 %v1730
        %v1808 = vpop.f32.mrb[0].mxu0
        %v1809 = vadd.f32 0.0, %v1808
        %v1810 = vpop.f32.mrb[0].mxu0
        %1811 = vdwg.mxu0
        %v1812 = vadd.f32 %v1711, %v1799
        %v1813 = vadd.f32 %v1712, %v1804
        %v1814 = vadd.f32 %v1713, %v1809
        %s1815 = scalar_lea.vmem %s3, 64
        %v1816 = vld [vmem:[%s1815] sm:$0xff]
        %v1817 = vld [vmem:[%s1815 + $0x8] sm:$0xff]
        %v1818 = vsel %vm1443, %v1427, 0
        %1820 = vmatprep.subr.mxu0 0.0
        %1821 = vmatpush1.msra.mxu0 %v1816
        %1822 = vmatprep.subr.mxu0 0.0
        %1823 = vmatpush1.msra.mxu0 %v1817
        %1824 = vmatprep.subr.mxu0 0.0
        %1825 = vmatpush1.msra.mxu0 0.0
        %1826 = vmatprep.subr.mxu0 0.0
        %1827 = vmatpush1.msra.mxu0 0.0
        %1828 = vmatprep.subr.mxu0 0.0
        %1829 = vmatpush1.msra.mxu0 0.0
        %1830 = vmatprep.subr.mxu0 0.0
        %1831 = vmatpush1.msra.mxu0 0.0
        %1832 = vmatprep.subr.mxu0 0.0
        %1833 = vmatpush1.msra.mxu0 0.0
        %1834 = vmatprep.subr.mxu0 0.0
        %1835 = vmatpush1.msra.mxu0 0.0
        %1836 = vmatprep.subr.mxu0 0.0
        %1837 = vmatpush1.msra.mxu0 0.0
        %1838 = vmatprep.subr.mxu0 0.0
        %1839 = vmatpush1.msra.mxu0 0.0
        %1840 = vmatprep.subr.mxu0 0.0
        %1841 = vmatpush1.msra.mxu0 0.0
        %1842 = vmatprep.subr.mxu0 0.0
        %1843 = vmatpush1.msra.mxu0 0.0
        %1844 = vmatprep.subr.mxu0 0.0
        %1845 = vmatpush1.msra.mxu0 0.0
        %1846 = vmatprep.subr.mxu0 0.0
        %1847 = vmatpush1.msra.mxu0 0.0
        %1848 = vmatprep.subr.mxu0 0.0
        %1849 = vmatpush1.msra.mxu0 0.0
        %1850 = vmatprep.subr.mxu0 0.0
        %1851 = vmatpush1.msra.mxu0 0.0
        %1852 = vmatprep.subr.mxu0 0.0
        %1853 = vmatpush1.msra.mxu0 0.0
        %1854 = vmatprep.subr.mxu0 0.0
        %1855 = vmatpush1.msra.mxu0 0.0
        %1856 = vmatprep.subr.mxu0 0.0
        %1857 = vmatpush1.msra.mxu0 0.0
        %1858 = vmatprep.subr.mxu0 0.0
        %1859 = vmatpush1.msra.mxu0 0.0
        %1860 = vmatprep.subr.mxu0 0.0
        %1861 = vmatpush1.msra.mxu0 0.0
        %1862 = vmatprep.subr.mxu0 0.0
        %1863 = vmatpush1.msra.mxu0 0.0
        %1864 = vmatprep.subr.mxu0 0.0
        %1865 = vmatpush1.msra.mxu0 0.0
        %1866 = vmatprep.subr.mxu0 0.0
        %1867 = vmatpush1.msra.mxu0 0.0
        %1868 = vmatprep.subr.mxu0 0.0
        %1869 = vmatpush1.msra.mxu0 0.0
        %1870 = vmatprep.subr.mxu0 0.0
        %1871 = vmatpush1.msra.mxu0 0.0
        %1872 = vmatprep.subr.mxu0 0.0
        %1873 = vmatpush1.msra.mxu0 0.0
        %1874 = vmatprep.subr.mxu0 0.0
        %1875 = vmatpush1.msra.mxu0 0.0
        %1876 = vmatprep.subr.mxu0 0.0
        %1877 = vmatpush1.msra.mxu0 0.0
        %1878 = vmatprep.subr.mxu0 0.0
        %1879 = vmatpush1.msra.mxu0 0.0
        %1880 = vmatprep.subr.mxu0 0.0
        %1881 = vmatpush1.msra.mxu0 0.0
        %1882 = vmatprep.subr.mxu0 0.0
        %1883 = vmatpush1.msra.mxu0 0.0
        %1884 = vmatprep.mubr.f32.mxu0 0.0
        %1885 = vmatmul.mubr.f32.gmra.mrb[0].mxu0 %v1532
        %v1886 = vpop.f32.mrb[0].mxu0
        %v1887 = vadd.f32 0.0, %v1886
        %v1888 = vpop.f32.mrb[0].mxu0
        %1889 = vmatprep.mubr.f32.mxu0 0.0
        %1890 = vmatmul.mubr.f32.gmra.mrb[0].mxu0 %v1534
        %v1891 = vpop.f32.mrb[0].mxu0
        %v1892 = vadd.f32 0.0, %v1891
        %v1893 = vpop.f32.mrb[0].mxu0
        %1894 = vmatprep.mubr.f32.mxu0 0.0
        %1895 = vmatmul.mubr.f32.gmra.mrb[0].mxu0 %v1818
        %v1896 = vpop.f32.mrb[0].mxu0
        %v1897 = vadd.f32 0.0, %v1896
        %v1898 = vpop.f32.mrb[0].mxu0
        %1899 = vdwg.mxu0
        %v1900 = vadd.f32 %v1812, %v1887
        %v1901 = vadd.f32 %v1813, %v1892
        %v1902 = vadd.f32 %v1814, %v1897
        %s1903 = scalar_lea.vmem %s3, 80
        %v1904 = vld [vmem:[%s1903] sm:$0xff]
        %v1905 = vld [vmem:[%s1903 + $0x8] sm:$0xff]
        %v1906 = vrot.slane %v1427, 1
        %v1907 = vsel %vm1437, %v1441, %v1906
        %v1908 = vsel %vm1443, %v1907, 0
        %v1910 = vsel %vm1443, %v1906, 0
        %1912 = vmatprep.subr.mxu0 0.0
        %1913 = vmatpush1.msra.mxu0 %v1904
        %1914 = vmatprep.subr.mxu0 0.0
        %1915 = vmatpush1.msra.mxu0 %v1905
        %1916 = vmatprep.subr.mxu0 0.0
        %1917 = vmatpush1.msra.mxu0 0.0
        %1918 = vmatprep.subr.mxu0 0.0
        %1919 = vmatpush1.msra.mxu0 0.0
        %1920 = vmatprep.subr.mxu0 0.0
        %1921 = vmatpush1.msra.mxu0 0.0
        %1922 = vmatprep.subr.mxu0 0.0
        %1923 = vmatpush1.msra.mxu0 0.0
        %1924 = vmatprep.subr.mxu0 0.0
        %1925 = vmatpush1.msra.mxu0 0.0
        %1926 = vmatprep.subr.mxu0 0.0
        %1927 = vmatpush1.msra.mxu0 0.0
        %1928 = vmatprep.subr.mxu0 0.0
        %1929 = vmatpush1.msra.mxu0 0.0
        %1930 = vmatprep.subr.mxu0 0.0
        %1931 = vmatpush1.msra.mxu0 0.0
        %1932 = vmatprep.subr.mxu0 0.0
        %1933 = vmatpush1.msra.mxu0 0.0
        %1934 = vmatprep.subr.mxu0 0.0
        %1935 = vmatpush1.msra.mxu0 0.0
        %1936 = vmatprep.subr.mxu0 0.0
        %1937 = vmatpush1.msra.mxu0 0.0
        %1938 = vmatprep.subr.mxu0 0.0
        %1939 = vmatpush1.msra.mxu0 0.0
        %1940 = vmatprep.subr.mxu0 0.0
        %1941 = vmatpush1.msra.mxu0 0.0
        %1942 = vmatprep.subr.mxu0 0.0
        %1943 = vmatpush1.msra.mxu0 0.0
        %1944 = vmatprep.subr.mxu0 0.0
        %1945 = vmatpush1.msra.mxu0 0.0
        %1946 = vmatprep.subr.mxu0 0.0
        %1947 = vmatpush1.msra.mxu0 0.0
        %1948 = vmatprep.subr.mxu0 0.0
        %1949 = vmatpush1.msra.mxu0 0.0
        %1950 = vmatprep.subr.mxu0 0.0
        %1951 = vmatpush1.msra.mxu0 0.0
        %1952 = vmatprep.subr.mxu0 0.0
        %1953 = vmatpush1.msra.mxu0 0.0
        %1954 = vmatprep.subr.mxu0 0.0
        %1955 = vmatpush1.msra.mxu0 0.0
        %1956 = vmatprep.subr.mxu0 0.0
        %1957 = vmatpush1.msra.mxu0 0.0
        %1958 = vmatprep.subr.mxu0 0.0
        %1959 = vmatpush1.msra.mxu0 0.0
        %1960 = vmatprep.subr.mxu0 0.0
        %1961 = vmatpush1.msra.mxu0 0.0
        %1962 = vmatprep.subr.mxu0 0.0
        %1963 = vmatpush1.msra.mxu0 0.0
        %1964 = vmatprep.subr.mxu0 0.0
        %1965 = vmatpush1.msra.mxu0 0.0
        %1966 = vmatprep.subr.mxu0 0.0
        %1967 = vmatpush1.msra.mxu0 0.0
        %1968 = vmatprep.subr.mxu0 0.0
        %1969 = vmatpush1.msra.mxu0 0.0
        %1970 = vmatprep.subr.mxu0 0.0
        %1971 = vmatpush1.msra.mxu0 0.0
        %1972 = vmatprep.subr.mxu0 0.0
        %1973 = vmatpush1.msra.mxu0 0.0
        %1974 = vmatprep.subr.mxu0 0.0
        %1975 = vmatpush1.msra.mxu0 0.0
        %1976 = vmatprep.mubr.f32.mxu0 0.0
        %1977 = vmatmul.mubr.f32.gmra.mrb[0].mxu0 %v1446
        %v1978 = vpop.f32.mrb[0].mxu0
        %v1979 = vadd.f32 0.0, %v1978
        %v1980 = vpop.f32.mrb[0].mxu0
        %1981 = vmatprep.mubr.f32.mxu0 0.0
        %1982 = vmatmul.mubr.f32.gmra.mrb[0].mxu0 %v1908
        %v1983 = vpop.f32.mrb[0].mxu0
        %v1984 = vadd.f32 0.0, %v1983
        %v1985 = vpop.f32.mrb[0].mxu0
        %1986 = vmatprep.mubr.f32.mxu0 0.0
        %1987 = vmatmul.mubr.f32.gmra.mrb[0].mxu0 %v1910
        %v1988 = vpop.f32.mrb[0].mxu0
        %v1989 = vadd.f32 0.0, %v1988
        %v1990 = vpop.f32.mrb[0].mxu0
        %1991 = vdwg.mxu0
        %v1992 = vadd.f32 %v1900, %v1979
        %v1993 = vadd.f32 %v1901, %v1984
        %v1994 = vadd.f32 %v1902, %v1989
        %s1995 = scalar_lea.vmem %s3, 96
        %v1996 = vld [vmem:[%s1995] sm:$0xff]
        %v1997 = vld [vmem:[%s1995 + $0x8] sm:$0xff]
        %v1999 = vrot.slane %v1425, 6
        %v2000 = vrot.slane %v1426, 6
        %v2001 = vsel %vm351, %v1999, %v2000
        %v2002 = vrot.slane %v1427, 6
        %v2003 = vsel %vm351, %v2000, %v2002
        %v2004 = vrot.slane %v1428, 6
        %v2005 = vsel %vm351, %v2002, %v2004
        %v2006 = vsel %vm1443, %v2001, 0
        %v2008 = vsel %vm1443, %v2003, 0
        %v2010 = vsel %vm1443, %v2005, 0
        %2012 = vmatprep.subr.mxu0 0.0
        %2013 = vmatpush1.msra.mxu0 %v1996
        %2014 = vmatprep.subr.mxu0 0.0
        %2015 = vmatpush1.msra.mxu0 %v1997
        %2016 = vmatprep.subr.mxu0 0.0
        %2017 = vmatpush1.msra.mxu0 0.0
        %2018 = vmatprep.subr.mxu0 0.0
        %2019 = vmatpush1.msra.mxu0 0.0
        %2020 = vmatprep.subr.mxu0 0.0
        %2021 = vmatpush1.msra.mxu0 0.0
        %2022 = vmatprep.subr.mxu0 0.0
        %2023 = vmatpush1.msra.mxu0 0.0
        %2024 = vmatprep.subr.mxu0 0.0
        %2025 = vmatpush1.msra.mxu0 0.0
        %2026 = vmatprep.subr.mxu0 0.0
        %2027 = vmatpush1.msra.mxu0 0.0
        %2028 = vmatprep.subr.mxu0 0.0
        %2029 = vmatpush1.msra.mxu0 0.0
        %2030 = vmatprep.subr.mxu0 0.0
        %2031 = vmatpush1.msra.mxu0 0.0
        %2032 = vmatprep.subr.mxu0 0.0
        %2033 = vmatpush1.msra.mxu0 0.0
        %2034 = vmatprep.subr.mxu0 0.0
        %2035 = vmatpush1.msra.mxu0 0.0
        %2036 = vmatprep.subr.mxu0 0.0
        %2037 = vmatpush1.msra.mxu0 0.0
        %2038 = vmatprep.subr.mxu0 0.0
        %2039 = vmatpush1.msra.mxu0 0.0
        %2040 = vmatprep.subr.mxu0 0.0
        %2041 = vmatpush1.msra.mxu0 0.0
        %2042 = vmatprep.subr.mxu0 0.0
        %2043 = vmatpush1.msra.mxu0 0.0
        %2044 = vmatprep.subr.mxu0 0.0
        %2045 = vmatpush1.msra.mxu0 0.0
        %2046 = vmatprep.subr.mxu0 0.0
        %2047 = vmatpush1.msra.mxu0 0.0
        %2048 = vmatprep.subr.mxu0 0.0
        %2049 = vmatpush1.msra.mxu0 0.0
        %2050 = vmatprep.subr.mxu0 0.0
        %2051 = vmatpush1.msra.mxu0 0.0
        %2052 = vmatprep.subr.mxu0 0.0
        %2053 = vmatpush1.msra.mxu0 0.0
        %2054 = vmatprep.subr.mxu0 0.0
        %2055 = vmatpush1.msra.mxu0 0.0
        %2056 = vmatprep.subr.mxu0 0.0
        %2057 = vmatpush1.msra.mxu0 0.0
        %2058 = vmatprep.subr.mxu0 0.0
        %2059 = vmatpush1.msra.mxu0 0.0
        %2060 = vmatprep.subr.mxu0 0.0
        %2061 = vmatpush1.msra.mxu0 0.0
        %2062 = vmatprep.subr.mxu0 0.0
        %2063 = vmatpush1.msra.mxu0 0.0
        %2064 = vmatprep.subr.mxu0 0.0
        %2065 = vmatpush1.msra.mxu0 0.0
        %2066 = vmatprep.subr.mxu0 0.0
        %2067 = vmatpush1.msra.mxu0 0.0
        %2068 = vmatprep.subr.mxu0 0.0
        %2069 = vmatpush1.msra.mxu0 0.0
        %2070 = vmatprep.subr.mxu0 0.0
        %2071 = vmatpush1.msra.mxu0 0.0
        %2072 = vmatprep.subr.mxu0 0.0
        %2073 = vmatpush1.msra.mxu0 0.0
        %2074 = vmatprep.subr.mxu0 0.0
        %2075 = vmatpush1.msra.mxu0 0.0
        %2076 = vmatprep.mubr.f32.mxu0 0.0
        %2077 = vmatmul.mubr.f32.gmra.mrb[0].mxu0 %v2006
        %v2078 = vpop.f32.mrb[0].mxu0
        %v2079 = vadd.f32 0.0, %v2078
        %v2080 = vpop.f32.mrb[0].mxu0
        %2081 = vmatprep.mubr.f32.mxu0 0.0
        %2082 = vmatmul.mubr.f32.gmra.mrb[0].mxu0 %v2008
        %v2083 = vpop.f32.mrb[0].mxu0
        %v2084 = vadd.f32 0.0, %v2083
        %v2085 = vpop.f32.mrb[0].mxu0
        %2086 = vmatprep.mubr.f32.mxu0 0.0
        %2087 = vmatmul.mubr.f32.gmra.mrb[0].mxu0 %v2010
        %v2088 = vpop.f32.mrb[0].mxu0
        %v2089 = vadd.f32 0.0, %v2088
        %v2090 = vpop.f32.mrb[0].mxu0
        %2091 = vdwg.mxu0
        %v2092 = vadd.f32 %v1992, %v2079
        %v2093 = vadd.f32 %v1993, %v2084
        %v2094 = vadd.f32 %v1994, %v2089
        %s2095 = scalar_lea.vmem %s3, 112
        %v2096 = vld [vmem:[%s2095] sm:$0xff]
        %v2097 = vld [vmem:[%s2095 + $0x8] sm:$0xff]
        %v2098 = vrot.slane %v1428, 7
        %v2099 = vsel %vm1718, %v1724, %v2098
        %v2100 = vsel %vm1443, %v2099, 0
        %2102 = vmatprep.subr.mxu0 0.0
        %2103 = vmatpush1.msra.mxu0 %v2096
        %2104 = vmatprep.subr.mxu0 0.0
        %2105 = vmatpush1.msra.mxu0 %v2097
        %2106 = vmatprep.subr.mxu0 0.0
        %2107 = vmatpush1.msra.mxu0 0.0
        %2108 = vmatprep.subr.mxu0 0.0
        %2109 = vmatpush1.msra.mxu0 0.0
        %2110 = vmatprep.subr.mxu0 0.0
        %2111 = vmatpush1.msra.mxu0 0.0
        %2112 = vmatprep.subr.mxu0 0.0
        %2113 = vmatpush1.msra.mxu0 0.0
        %2114 = vmatprep.subr.mxu0 0.0
        %2115 = vmatpush1.msra.mxu0 0.0
        %2116 = vmatprep.subr.mxu0 0.0
        %2117 = vmatpush1.msra.mxu0 0.0
        %2118 = vmatprep.subr.mxu0 0.0
        %2119 = vmatpush1.msra.mxu0 0.0
        %2120 = vmatprep.subr.mxu0 0.0
        %2121 = vmatpush1.msra.mxu0 0.0
        %2122 = vmatprep.subr.mxu0 0.0
        %2123 = vmatpush1.msra.mxu0 0.0
        %2124 = vmatprep.subr.mxu0 0.0
        %2125 = vmatpush1.msra.mxu0 0.0
        %2126 = vmatprep.subr.mxu0 0.0
        %2127 = vmatpush1.msra.mxu0 0.0
        %2128 = vmatprep.subr.mxu0 0.0
        %2129 = vmatpush1.msra.mxu0 0.0
        %2130 = vmatprep.subr.mxu0 0.0
        %2131 = vmatpush1.msra.mxu0 0.0
        %2132 = vmatprep.subr.mxu0 0.0
        %2133 = vmatpush1.msra.mxu0 0.0
        %2134 = vmatprep.subr.mxu0 0.0
        %2135 = vmatpush1.msra.mxu0 0.0
        %2136 = vmatprep.subr.mxu0 0.0
        %2137 = vmatpush1.msra.mxu0 0.0
        %2138 = vmatprep.subr.mxu0 0.0
        %2139 = vmatpush1.msra.mxu0 0.0
        %2140 = vmatprep.subr.mxu0 0.0
        %2141 = vmatpush1.msra.mxu0 0.0
        %2142 = vmatprep.subr.mxu0 0.0
        %2143 = vmatpush1.msra.mxu0 0.0
        %2144 = vmatprep.subr.mxu0 0.0
        %2145 = vmatpush1.msra.mxu0 0.0
        %2146 = vmatprep.subr.mxu0 0.0
        %2147 = vmatpush1.msra.mxu0 0.0
        %2148 = vmatprep.subr.mxu0 0.0
        %2149 = vmatpush1.msra.mxu0 0.0
        %2150 = vmatprep.subr.mxu0 0.0
        %2151 = vmatpush1.msra.mxu0 0.0
        %2152 = vmatprep.subr.mxu0 0.0
        %2153 = vmatpush1.msra.mxu0 0.0
        %2154 = vmatprep.subr.mxu0 0.0
        %2155 = vmatpush1.msra.mxu0 0.0
        %2156 = vmatprep.subr.mxu0 0.0
        %2157 = vmatpush1.msra.mxu0 0.0
        %2158 = vmatprep.subr.mxu0 0.0
        %2159 = vmatpush1.msra.mxu0 0.0
        %2160 = vmatprep.subr.mxu0 0.0
        %2161 = vmatpush1.msra.mxu0 0.0
        %2162 = vmatprep.subr.mxu0 0.0
        %2163 = vmatpush1.msra.mxu0 0.0
        %2164 = vmatprep.subr.mxu0 0.0
        %2165 = vmatpush1.msra.mxu0 0.0
        %2166 = vmatprep.mubr.f32.mxu0 0.0
        %2167 = vmatmul.mubr.f32.gmra.mrb[0].mxu0 %v1728
        %v2168 = vpop.f32.mrb[0].mxu0
        %v2169 = vadd.f32 0.0, %v2168
        %v2170 = vpop.f32.mrb[0].mxu0
        %2171 = vmatprep.mubr.f32.mxu0 0.0
        %2172 = vmatmul.mubr.f32.gmra.mrb[0].mxu0 %v1730
        %v2173 = vpop.f32.mrb[0].mxu0
        %v2174 = vadd.f32 0.0, %v2173
        %v2175 = vpop.f32.mrb[0].mxu0
        %2176 = vmatprep.mubr.f32.mxu0 0.0
        %2177 = vmatmul.mubr.f32.gmra.mrb[0].mxu0 %v2100
        %v2178 = vpop.f32.mrb[0].mxu0
        %v2179 = vadd.f32 0.0, %v2178
        %v2180 = vpop.f32.mrb[0].mxu0
        %2181 = vdwg.mxu0
        %v2182 = vadd.f32 %v2092, %v2169
        %v2183 = vadd.f32 %v2093, %v2174
        %v2184 = vadd.f32 %v2094, %v2179
        %s2185 = scalar_lea.vmem %s3, 128
        %v2186 = vld [vmem:[%s2185] sm:$0xff]
        %v2187 = vld [vmem:[%s2185 + $0x8] sm:$0xff]
        %v2188 = vsel %vm1443, %v1428, 0
        %2190 = vmatprep.subr.mxu0 0.0
        %2191 = vmatpush1.msra.mxu0 %v2186
        %2192 = vmatprep.subr.mxu0 0.0
        %2193 = vmatpush1.msra.mxu0 %v2187
        %2194 = vmatprep.subr.mxu0 0.0
        %2195 = vmatpush1.msra.mxu0 0.0
        %2196 = vmatprep.subr.mxu0 0.0
        %2197 = vmatpush1.msra.mxu0 0.0
        %2198 = vmatprep.subr.mxu0 0.0
        %2199 = vmatpush1.msra.mxu0 0.0
        %2200 = vmatprep.subr.mxu0 0.0
        %2201 = vmatpush1.msra.mxu0 0.0
        %2202 = vmatprep.subr.mxu0 0.0
        %2203 = vmatpush1.msra.mxu0 0.0
        %2204 = vmatprep.subr.mxu0 0.0
        %2205 = vmatpush1.msra.mxu0 0.0
        %2206 = vmatprep.subr.mxu0 0.0
        %2207 = vmatpush1.msra.mxu0 0.0
        %2208 = vmatprep.subr.mxu0 0.0
        %2209 = vmatpush1.msra.mxu0 0.0
        %2210 = vmatprep.subr.mxu0 0.0
        %2211 = vmatpush1.msra.mxu0 0.0
        %2212 = vmatprep.subr.mxu0 0.0
        %2213 = vmatpush1.msra.mxu0 0.0
        %2214 = vmatprep.subr.mxu0 0.0
        %2215 = vmatpush1.msra.mxu0 0.0
        %2216 = vmatprep.subr.mxu0 0.0
        %2217 = vmatpush1.msra.mxu0 0.0
        %2218 = vmatprep.subr.mxu0 0.0
        %2219 = vmatpush1.msra.mxu0 0.0
        %2220 = vmatprep.subr.mxu0 0.0
        %2221 = vmatpush1.msra.mxu0 0.0
        %2222 = vmatprep.subr.mxu0 0.0
        %2223 = vmatpush1.msra.mxu0 0.0
        %2224 = vmatprep.subr.mxu0 0.0
        %2225 = vmatpush1.msra.mxu0 0.0
        %2226 = vmatprep.subr.mxu0 0.0
        %2227 = vmatpush1.msra.mxu0 0.0
        %2228 = vmatprep.subr.mxu0 0.0
        %2229 = vmatpush1.msra.mxu0 0.0
        %2230 = vmatprep.subr.mxu0 0.0
        %2231 = vmatpush1.msra.mxu0 0.0
        %2232 = vmatprep.subr.mxu0 0.0
        %2233 = vmatpush1.msra.mxu0 0.0
        %2234 = vmatprep.subr.mxu0 0.0
        %2235 = vmatpush1.msra.mxu0 0.0
        %2236 = vmatprep.subr.mxu0 0.0
        %2237 = vmatpush1.msra.mxu0 0.0
        %2238 = vmatprep.subr.mxu0 0.0
        %2239 = vmatpush1.msra.mxu0 0.0
        %2240 = vmatprep.subr.mxu0 0.0
        %2241 = vmatpush1.msra.mxu0 0.0
        %2242 = vmatprep.subr.mxu0 0.0
        %2243 = vmatpush1.msra.mxu0 0.0
        %2244 = vmatprep.subr.mxu0 0.0
        %2245 = vmatpush1.msra.mxu0 0.0
        %2246 = vmatprep.subr.mxu0 0.0
        %2247 = vmatpush1.msra.mxu0 0.0
        %2248 = vmatprep.subr.mxu0 0.0
        %2249 = vmatpush1.msra.mxu0 0.0
        %2250 = vmatprep.subr.mxu0 0.0
        %2251 = vmatpush1.msra.mxu0 0.0
        %2252 = vmatprep.subr.mxu0 0.0
        %2253 = vmatpush1.msra.mxu0 0.0
        %2254 = vmatprep.mubr.f32.mxu0 0.0
        %2255 = vmatmul.mubr.f32.gmra.mrb[0].mxu0 %v1534
        %v2256 = vpop.f32.mrb[0].mxu0
        %v2257 = vadd.f32 0.0, %v2256
        %v2258 = vpop.f32.mrb[0].mxu0
        %2259 = vmatprep.mubr.f32.mxu0 0.0
        %2260 = vmatmul.mubr.f32.gmra.mrb[0].mxu0 %v1818
        %v2261 = vpop.f32.mrb[0].mxu0
        %v2262 = vadd.f32 0.0, %v2261
        %v2263 = vpop.f32.mrb[0].mxu0
        %2264 = vmatprep.mubr.f32.mxu0 0.0
        %2265 = vmatmul.mubr.f32.gmra.mrb[0].mxu0 %v2188
        %v2266 = vpop.f32.mrb[0].mxu0
        %v2267 = vadd.f32 0.0, %v2266
        %v2268 = vpop.f32.mrb[0].mxu0
        %2269 = vdwg.mxu0
        %v2270 = vadd.f32 %v2182, %v2257
        %v2271 = vadd.f32 %v2183, %v2262
        %v2272 = vadd.f32 %v2184, %v2267
        %v2273 = vld [vmem:[%s4] sm:$0x1]
        %v2275 = vlaneseq
        %v2276 = vshrl.u32 %v2275, 7
        %v2277 = vsub.s32 0, %v2276
        %v2278 = vrot.slane %v2273, %v2277
        %v2280 = vadd.f32 %v2270, %v2278
        %v2281 = vadd.f32 %v2271, %v2278
        %v2282 = vadd.f32 %v2272, %v2278
        %vm2283 = vcmp.ge.f32.partialorder %v2280, 0.0
        %vm2284 = vcmp.ge.f32.partialorder %v2281, 0.0
        %vm2285 = vcmp.ge.f32.partialorder %v2282, 0.0
        %s2286 = sld [smem:[#allocation2 + $0x1]]
        %v2287 = vstv %s2286
        %v2288 = vmul.f32 %v2287, %v2280
        %v2289 = vmul.f32 %v2287, %v2281
        %v2290 = vmul.f32 %v2287, %v2282
        %v2291 = vsel %vm2283, %v2280, %v2288
        %v2292 = vsel %vm2284, %v2281, %v2289
        %v2293 = vsel %vm2285, %v2282, %v2290
        %v2294 = vld [vmem:[%s5] sm:$0xff]
        %v2295 = vld [vmem:[%s5 + $0x8] sm:$0xff]
        %v2296 = vld [vmem:[%s5 + $0x10] sm:$0xff]
        %v2297 = vld [vmem:[%s5 + $0x18] sm:$0xff]
        %v2298 = vld [vmem:[%s6] sm:$0x1]
        %v2300 = vlaneseq
        %v2301 = vshrl.u32 %v2300, 7
        %v2302 = vsub.s32 0, %v2301
        %v2303 = vrot.slane %v2298, %v2302
        %vm2305 = vcmask 261120
        %v2307 = vsel %vm2305, %v2291, 0
        %v2310 = vsel %vm2305, %v2292, 0
        %v2313 = vsel %vm2305, %v2293, 0
        %2315 = vmatprep.subr.mxu0 0.0
        %2316 = vmatpush1.msra.mxu0 %v2294
        %2317 = vmatprep.subr.mxu0 0.0
        %2318 = vmatpush1.msra.mxu0 %v2295
        %2319 = vmatprep.subr.mxu0 0.0
        %2320 = vmatpush1.msra.mxu0 %v2296
        %2321 = vmatprep.subr.mxu0 0.0
        %2322 = vmatpush1.msra.mxu0 %v2297
        %2323 = vmatprep.subr.mxu0 0.0
        %2324 = vmatpush1.msra.mxu0 0.0
        %2325 = vmatprep.subr.mxu0 0.0
        %2326 = vmatpush1.msra.mxu0 0.0
        %2327 = vmatprep.subr.mxu0 0.0
        %2328 = vmatpush1.msra.mxu0 0.0
        %2329 = vmatprep.subr.mxu0 0.0
        %2330 = vmatpush1.msra.mxu0 0.0
        %2331 = vmatprep.subr.mxu0 0.0
        %2332 = vmatpush1.msra.mxu0 0.0
        %2333 = vmatprep.subr.mxu0 0.0
        %2334 = vmatpush1.msra.mxu0 0.0
        %2335 = vmatprep.subr.mxu0 0.0
        %2336 = vmatpush1.msra.mxu0 0.0
        %2337 = vmatprep.subr.mxu0 0.0
        %2338 = vmatpush1.msra.mxu0 0.0
        %2339 = vmatprep.subr.mxu0 0.0
        %2340 = vmatpush1.msra.mxu0 0.0
        %2341 = vmatprep.subr.mxu0 0.0
        %2342 = vmatpush1.msra.mxu0 0.0
        %2343 = vmatprep.subr.mxu0 0.0
        %2344 = vmatpush1.msra.mxu0 0.0
        %2345 = vmatprep.subr.mxu0 0.0
        %2346 = vmatpush1.msra.mxu0 0.0
        %2347 = vmatprep.subr.mxu0 0.0
        %2348 = vmatpush1.msra.mxu0 0.0
        %2349 = vmatprep.subr.mxu0 0.0
        %2350 = vmatpush1.msra.mxu0 0.0
        %2351 = vmatprep.subr.mxu0 0.0
        %2352 = vmatpush1.msra.mxu0 0.0
        %2353 = vmatprep.subr.mxu0 0.0
        %2354 = vmatpush1.msra.mxu0 0.0
        %2355 = vmatprep.subr.mxu0 0.0
        %2356 = vmatpush1.msra.mxu0 0.0
        %2357 = vmatprep.subr.mxu0 0.0
        %2358 = vmatpush1.msra.mxu0 0.0
        %2359 = vmatprep.subr.mxu0 0.0
        %2360 = vmatpush1.msra.mxu0 0.0
        %2361 = vmatprep.subr.mxu0 0.0
        %2362 = vmatpush1.msra.mxu0 0.0
        %2363 = vmatprep.subr.mxu0 0.0
        %2364 = vmatpush1.msra.mxu0 0.0
        %2365 = vmatprep.subr.mxu0 0.0
        %2366 = vmatpush1.msra.mxu0 0.0
        %2367 = vmatprep.subr.mxu0 0.0
        %2368 = vmatpush1.msra.mxu0 0.0
        %2369 = vmatprep.subr.mxu0 0.0
        %2370 = vmatpush1.msra.mxu0 0.0
        %2371 = vmatprep.subr.mxu0 0.0
        %2372 = vmatpush1.msra.mxu0 0.0
        %2373 = vmatprep.subr.mxu0 0.0
        %2374 = vmatpush1.msra.mxu0 0.0
        %2375 = vmatprep.subr.mxu0 0.0
        %2376 = vmatpush1.msra.mxu0 0.0
        %2377 = vmatprep.subr.mxu0 0.0
        %2378 = vmatpush1.msra.mxu0 0.0
        %2379 = vmatprep.mubr.f32.mxu0 0.0
        %2380 = vmatmul.mubr.f32.gmra.mrb[0].mxu0 %v2307
        %v2381 = vpop.f32.mrb[0].mxu0
        %v2382 = vadd.f32 %v2303, %v2381
        %v2383 = vpop.f32.mrb[0].mxu0
        %2384 = vmatprep.mubr.f32.mxu0 0.0
        %2385 = vmatmul.mubr.f32.gmra.mrb[0].mxu0 %v2310
        %v2386 = vpop.f32.mrb[0].mxu0
        %v2387 = vadd.f32 %v2303, %v2386
        %v2388 = vpop.f32.mrb[0].mxu0
        %2389 = vmatprep.mubr.f32.mxu0 0.0
        %2390 = vmatmul.mubr.f32.gmra.mrb[0].mxu0 %v2313
        %v2391 = vpop.f32.mrb[0].mxu0
        %v2392 = vadd.f32 %v2303, %v2391
        %v2393 = vpop.f32.mrb[0].mxu0
        %2394 = vdwg.mxu0
        %2398 = vrot.lane.b32.xlu0 %v2382, 127
        %v2399 = vpop.permute.xlu0 %2398
        %2400 = vrot.lane.b32.xlu0 %v2387, 127
        %v2401 = vpop.permute.xlu0 %2400
        %2402 = vrot.lane.b32.xlu0 %v2392, 127
        %v2403 = vpop.permute.xlu0 %2402
        %v2407 = vsub.f32 %v2382, %v2399
        %v2408 = vsub.f32 %v2387, %v2401
        %v2409 = vsub.f32 %v2392, %v2403
        %v2410 = vmul.f32 %v2407, 1.442695
        %v2411 = vpow.pop %v2410
        %v2412 = vmul.f32 %v2408, 1.442695
        %v2413 = vpow.pop %v2412
        %v2414 = vmul.f32 %v2409, 1.442695
        %v2415 = vpow.pop %v2414
        %v2416 = vadd.f32 %v2411, 1.0
        %v2417 = vadd.f32 %v2413, 1.0
        %v2418 = vadd.f32 %v2415, 1.0
        %v2419 = vrcp.pop %v2416
        %v2420 = vmul.f32 1.0, %v2419
        %v2421 = vrcp.pop %v2417
        %v2422 = vmul.f32 1.0, %v2421
        %v2423 = vrcp.pop %v2418
        %v2424 = vmul.f32 1.0, %v2423
        %v2425 = vsub.f32 1.0, %v2420
        %v2426 = vsub.f32 1.0, %v2422
        %v2427 = vsub.f32 1.0, %v2424
        %2431 = vrot.lane.b32.xlu0 %v2420, 1
        %v2432 = vpop.permute.xlu0 %2431
        %2433 = vrot.lane.b32.xlu0 %v2422, 1
        %v2434 = vpop.permute.xlu0 %2433
        %2435 = vrot.lane.b32.xlu0 %v2424, 1
        %v2436 = vpop.permute.xlu0 %2435
        %vm2440 = vcmask 7168
        %v2441 = vsel %vm2440, %v2425, %v2432
        %v2442 = vsel %vm2440, %v2426, %v2434
        %v2443 = vsel %vm2440, %v2427, %v2436
        %vm2444 = vcmask 15360
        %v2445 = vsel %vm2444, %v2441, %v2382
        %v2446 = vsel %vm2444, %v2442, %v2387
        %v2447 = vsel %vm2444, %v2443, %v2392
        %vm2448 = vcmask 48128
        %2449 = vst.msk [vmem:[%s319] sm:$0xff] %vm2448, %v2445
        %2450 = vst.msk [vmem:[%s319 + $0x8] sm:$0xff] %vm2448, %v2446
        %vm2451 = vcmask 45056
        %2452 = vst.msk [vmem:[%s319 + $0x10] sm:$0x1f] %vm2451, %v2447
        %p2453 = scmp.lt.s32.totalorder %s20, 1
        %s2454 = scalar_select %p2453, %s20, 1
        %s2455 = smul.addr %s2454, 3
        %s2456 = smul.addr %s2455, 8
        %s2457 = scalar_lea.vmem %s8, %s2456
        // Predicated region
        $region57: #{pnet_forward.3} parent=51 // pred_check
          %p2458 = pneg %p211
        $region58: #{pnet_forward.3} parent=51 // pred_check_branch
          %2460 = sbr.rel (%p2458) target = $region60
        $region59: #{pnet_forward.3} parent=51 // pred_region
          _
        $region60: #{pnet_forward.3} parent=51 // pred_fallthru
          _
      $region52: #{pnet_forward.3} parent=5 // pred_fallthru
        _
      %p2461 = scmp.le.s32.totalorder 2, %s15
      // Predicated region
      $region61: #{pnet_forward.3} parent=5 // pred_check
        %p2462 = pneg %p2461
      $region62: #{pnet_forward.3} parent=5 // pred_check_branch
        %2464 = sbr.rel (%p2462) target = $region64
      $region63: #{pnet_forward.3} parent=5 // pred_region
        %s2465 = ssub.s32 %s15, 2
        // Predicated region
        $region65: #{pnet_forward.3} parent=63 // pred_check
          %p2466 = pneg %p217
        $region66: #{pnet_forward.3} parent=63 // pred_check_branch
          %2468 = sbr.rel (%p2466) target = $region68
        $region67: #{pnet_forward.3} parent=63 // pred_region
          %p2469 = scmp.lt.s32.totalorder %s21, 1
          %s2470 = scalar_select %p2469, %s21, 1
          %s2471 = smul.addr %s2470, 3
          %s2472 = smul.addr %s2471, 8
          %s2473 = scalar_lea.vmem %s8, %s2472
        $region68: #{pnet_forward.3} parent=63 // pred_fallthru
          _
      $region64: #{pnet_forward.3} parent=5 // pred_fallthru
        _
    $region6: #{pnet_forward.3} parent=1 // loop_footer
      %s19 = sadd.s32 1, %s15
    $region7: #{pnet_forward.3} parent=1 // loop_footer_branch
      %14 = sbr.rel target = $region3
    $region8: #{pnet_forward.3} parent=1 // loop_exit
      _
    %2474 = vsyncpa [#allocation3], 1
    %s2475 = scalar_lea.sflag [#allocation3], 1
    %2476 = vsyncpa %s2475, 1

// kernel: pnet_forward.2
$region0: #{pnet_forward.2}
  #allocation0 [shape = 'u32[]', space=smem, size = 0x4, offset = 0x4, fixed_abs, tag = 'smem constant byte address 0x4 - core index']
  #allocation1 [shape = 'u32[144,128]{1,0:T(1,128)}', space=vmem, size = 0x12000, scoped, tag = 'internal scratch']
  #allocation2 [shape = 'f32[1]{0:T(128)S(6)}', space=smem, size = 0x200, scoped, tag = 'scoped memory for pnet_forward.2']
  %s0 = inlined_call_operand.vmem [shape: f32[2,258,3], index: 0, kind: input, shape index: {}]
  %s1 = inlined_call_operand.vmem [shape: f32[9,3,10], index: 1, kind: input, shape index: {}]
  %s2 = inlined_call_operand.vmem [shape: f32[1,10], index: 2, kind: input, shape index: {}]
  %s3 = inlined_call_operand.<no memory space> [shape: f32[1], index: 3, kind: input, shape index: {}]
  %s4 = inlined_call_operand.vmem [shape: f32[2,224,10], index: 4, kind: output, shape index: {}]
  %s5 = sld [smem:[#allocation0]]
  $region49: #{pnet_forward.2} parent=0
    _
  %s7 = ssub.s32 1, %s5
  %s8 = scalar_select 0, %s7, %s5
  %9 = sst [smem:[#allocation2]] %s3
  loop: start=0, step=1, limit=4
  $region2: #{pnet_forward.2} parent=0 // loop_pre_header
    _
  $region3: #{pnet_forward.2} parent=0 // loop_header
    %s11 = sphi 0, %s15
    %p12 = scmp.ge.s32.totalorder %s11, 4
    %s21 = sphi 0, %s23
    %s24 = sphi 0, %s21
    %s25 = sphi 0, %s24
    %s41 = sphi 0, %s25
    %s45 = sphi 0, %s45
    %s47 = sphi 0, %s45
    %s48 = sphi 0, %s47
    %s62 = sphi 0, %s48
    %s66 = sphi 0, %s66
    %s68 = sphi 0, %s66
    %s69 = sphi 0, %s68
    %s83 = sphi 0, %s69
    %s87 = sphi 0, %s87
    %s89 = sphi 0, %s87
    %s90 = sphi 0, %s89
    %s104 = sphi 0, %s90
    %s110 = sphi 0, %s112
    %s113 = sphi 0, %s110
    %s114 = sphi 0, %s113
    %s130 = sphi 0, %s114
  $region4: #{pnet_forward.2} parent=0 // loop_header_branch
    %14 = sbr.rel (%p12) target = $region8
  $region5: #{pnet_forward.2} parent=0 // loop_body
    %s16 = ssub.s32 %s11, 1
    %s17 = ssub.s32 %s11, 2
    %s18 = sadd.s32 %s11, 1
    %s19 = ssub.s32 %s11, %s18
    %p20 = scmp.eq.s32.totalorder %s19, 0
    %s22 = sadd.s32 %s21, 1
    %s23 = scalar_select %p20, %s21, %s22
    %p26 = pneg %p20
    %p27 = scmp.eq.s32.totalorder %s11, 1
    %p28 = por %p26, %p27
    %p29 = scmp.ne.s32.totalorder %s21, %s24
    %p30 = scmp.eq.s32.totalorder %s11, 0
    %p31 = por %p29, %p30
    %p32 = scmp.ne.s32.totalorder %s21, %s24
    %p33 = scmp.eq.s32.totalorder %s16, 1
    %p34 = por %p32, %p33
    %p35 = scmp.ne.s32.totalorder %s24, %s25
    %p36 = scmp.eq.s32.totalorder %s16, 0
    %p37 = por %p35, %p36
    %p38 = scmp.ne.s32.totalorder %s24, %s25
    %p39 = scmp.eq.s32.totalorder %s17, 1
    %p40 = por %p38, %p39
    %p42 = scmp.ne.s32.totalorder %s25, %s41
    %p43 = scmp.eq.s32.totalorder %s17, 0
    %p44 = por %p42, %p43
    %s46 = sadd.s32 %s45, 1
    %p49 = scmp.eq.s32.totalorder %s11, 1
    %p50 = scmp.ne.s32.totalorder %s45, %s47
    %p51 = scmp.eq.s32.totalorder %s11, 0
    %p52 = por %p50, %p51
    %p53 = scmp.ne.s32.totalorder %s45, %s47
    %p54 = scmp.eq.s32.totalorder %s16, 1
    %p55 = por %p53, %p54
    %p56 = scmp.ne.s32.totalorder %s47, %s48
    %p57 = scmp.eq.s32.totalorder %s16, 0
    %p58 = por %p56, %p57
    %p59 = scmp.ne.s32.totalorder %s47, %s48
    %p60 = scmp.eq.s32.totalorder %s17, 1
    %p61 = por %p59, %p60
    %p63 = scmp.ne.s32.totalorder %s48, %s62
    %p64 = scmp.eq.s32.totalorder %s17, 0
    %p65 = por %p63, %p64
    %s67 = sadd.s32 %s66, 1
    %p70 = scmp.eq.s32.totalorder %s11, 1
    %p71 = scmp.ne.s32.totalorder %s66, %s68
    %p72 = scmp.eq.s32.totalorder %s11, 0
    %p73 = por %p71, %p72
    %p74 = scmp.ne.s32.totalorder %s66, %s68
    %p75 = scmp.eq.s32.totalorder %s16, 1
    %p76 = por %p74, %p75
    %p77 = scmp.ne.s32.totalorder %s68, %s69
    %p78 = scmp.eq.s32.totalorder %s16, 0
    %p79 = por %p77, %p78
    %p80 = scmp.ne.s32.totalorder %s68, %s69
    %p81 = scmp.eq.s32.totalorder %s17, 1
    %p82 = por %p80, %p81
    %p84 = scmp.ne.s32.totalorder %s69, %s83
    %p85 = scmp.eq.s32.totalorder %s17, 0
    %p86 = por %p84, %p85
    %s88 = sadd.s32 %s87, 1
    %p91 = scmp.eq.s32.totalorder %s11, 1
    %p92 = scmp.ne.s32.totalorder %s87, %s89
    %p93 = scmp.eq.s32.totalorder %s11, 0
    %p94 = por %p92, %p93
    %p95 = scmp.ne.s32.totalorder %s87, %s89
    %p96 = scmp.eq.s32.totalorder %s16, 1
    %p97 = por %p95, %p96
    %p98 = scmp.ne.s32.totalorder %s89, %s90
    %p99 = scmp.eq.s32.totalorder %s16, 0
    %p100 = por %p98, %p99
    %p101 = scmp.ne.s32.totalorder %s89, %s90
    %p102 = scmp.eq.s32.totalorder %s17, 1
    %p103 = por %p101, %p102
    %p105 = scmp.ne.s32.totalorder %s90, %s104
    %p106 = scmp.eq.s32.totalorder %s17, 0
    %p107 = por %p105, %p106
    %s108 = ssub.s32 %s11, %s18
    %p109 = scmp.eq.s32.totalorder %s108, 0
    %s111 = sadd.s32 %s110, 1
    %s112 = scalar_select %p109, %s110, %s111
    %p115 = pneg %p109
    %p116 = scmp.eq.s32.totalorder %s11, 1
    %p117 = por %p115, %p116
    %p118 = scmp.ne.s32.totalorder %s110, %s113
    %p119 = scmp.eq.s32.totalorder %s11, 0
    %p120 = por %p118, %p119
    %p121 = scmp.ne.s32.totalorder %s110, %s113
    %p122 = scmp.eq.s32.totalorder %s16, 1
    %p123 = por %p121, %p122
    %p124 = scmp.ne.s32.totalorder %s113, %s114
    %p125 = scmp.eq.s32.totalorder %s16, 0
    %p126 = por %p124, %p125
    %p127 = scmp.ne.s32.totalorder %s113, %s114
    %p128 = scmp.eq.s32.totalorder %s17, 1
    %p129 = por %p127, %p128
    %p131 = scmp.ne.s32.totalorder %s114, %s130
    %p132 = scmp.eq.s32.totalorder %s17, 0
    %p133 = por %p131, %p132
    %p134 = scmp.le.s32.totalorder 1, %s11
    %p135 = scmp.lt.s32.totalorder %s11, 3
    %p136 = pnand %p134, %p135
    %p137 = pneg %p136
    // Predicated region
    $region9: #{pnet_forward.2} parent=5 // pred_check
      _
    $region10: #{pnet_forward.2} parent=5 // pred_check_branch
      %139 = sbr.rel (%p136) target = $region12
    $region11: #{pnet_forward.2} parent=5 // pred_region
      %s140 = ssub.s32 %s11, 1
      // Predicated region
      $region13: #{pnet_forward.2} parent=11 // pred_check
        %p141 = pneg %p58
      $region14: #{pnet_forward.2} parent=11 // pred_check_branch
        %143 = sbr.rel (%p141) target = $region16
      $region15: #{pnet_forward.2} parent=11 // pred_region
        _
      $region16: #{pnet_forward.2} parent=11 // pred_fallthru
        _
      // Predicated region
      $region17: #{pnet_forward.2} parent=11 // pred_check
        %p144 = pneg %p79
      $region18: #{pnet_forward.2} parent=11 // pred_check_branch
        %146 = sbr.rel (%p144) target = $region20
      $region19: #{pnet_forward.2} parent=11 // pred_region
        _
      $region20: #{pnet_forward.2} parent=11 // pred_fallthru
        _
      // Predicated region
      $region21: #{pnet_forward.2} parent=11 // pred_check
        %p147 = pneg %p100
      $region22: #{pnet_forward.2} parent=11 // pred_check_branch
        %149 = sbr.rel (%p147) target = $region24
      $region23: #{pnet_forward.2} parent=11 // pred_region
        _
      $region24: #{pnet_forward.2} parent=11 // pred_fallthru
        _
    $region12: #{pnet_forward.2} parent=5 // pred_fallthru
      _
    %p150 = scmp.lt.s32.totalorder %s11, 2
    // Predicated region
    $region25: #{pnet_forward.2} parent=5 // pred_check
      %p151 = pneg %p150
    $region26: #{pnet_forward.2} parent=5 // pred_check_branch
      %153 = sbr.rel (%p151) target = $region28
    $region27: #{pnet_forward.2} parent=5 // pred_region
      // Predicated region
      $region29: #{pnet_forward.2} parent=27 // pred_check
        %p154 = pneg %p31
      $region30: #{pnet_forward.2} parent=27 // pred_check_branch
        %156 = sbr.rel (%p154) target = $region32
      $region31: #{pnet_forward.2} parent=27 // pred_region
        %p157 = scmp.lt.s32.totalorder %s11, 1
        %s158 = scalar_select %p157, %s11, 1
        %s159 = smul.addr %s158, 33
        %s160 = smul.addr %s159, 8
        %s161 = scalar_lea.vmem %s0, %s160
      $region32: #{pnet_forward.2} parent=27 // pred_fallthru
        _
    $region28: #{pnet_forward.2} parent=5 // pred_fallthru
      _
    %p162 = scmp.le.s32.totalorder 1, %s11
    %p163 = scmp.lt.s32.totalorder %s11, 3
    %p164 = pnand %p162, %p163
    %p165 = pneg %p164
    // Predicated region
    $region33: #{pnet_forward.2} parent=5 // pred_check
      _
    $region34: #{pnet_forward.2} parent=5 // pred_check_branch
      %167 = sbr.rel (%p164) target = $region36
    $region35: #{pnet_forward.2} parent=5 // pred_region
      %s168 = ssub.s32 %s11, 1
      %p169 = scmp.lt.s32.totalorder %s16, 1
      %s170 = scalar_select %p169, %s16, 1
      %s171 = smul.addr %s170, 33
      %s172 = smul.addr %s171, 8
      %s173 = scalar_lea.vmem %s0, %s172
      %p174 = pneg %p37
      %p175 = pneg %p34
      %p176 = pneg %p58
      %p177 = pneg %p55
      %p178 = pneg %p79
      %p179 = pneg %p76
      %p180 = pneg %p100
      %p181 = pneg %p97
      %p182 = pneg %p126
      %p183 = pneg %p123
      %p184 = scmp.lt.s32.totalorder %s16, 1
      %s185 = scalar_select %p184, %s16, 1
      %s186 = smul.addr %s185, 28
      %s187 = smul.addr %s186, 8
      %s188 = scalar_lea.vmem %s4, %s187
      %p189 = scmp.lt.s32.totalorder %s16, 1
      %s190 = scalar_select %p189, %s16, 1
      %s191 = smul.addr %s190, 33
      %s192 = smul.addr %s191, 8
      %s193 = scalar_lea.vmem %s0, %s192
      %p194 = scmp.lt.s32.totalorder %s16, 1
      %s195 = scalar_select %p194, %s16, 1
      %s196 = smul.addr %s195, 28
      %s197 = smul.addr %s196, 8
      %s198 = scalar_lea.vmem %s4, %s197
      %v199 = vld [vmem:[%s193] sm:$0xff]
      %v200 = vld [vmem:[%s193 + $0x8] sm:$0xff]
      %v201 = vld [vmem:[%s193 + $0x10] sm:$0xff]
      %v202 = vld [vmem:[%s193 + $0x18] sm:$0xff]
      %v203 = vld [vmem:[%s193 + $0x20] sm:$0xff]
      %v204 = vld [vmem:[%s193 + $0x28] sm:$0xff]
      %v205 = vld [vmem:[%s193 + $0x30] sm:$0xff]
      %v206 = vld [vmem:[%s193 + $0x38] sm:$0xff]
      %v207 = vld [vmem:[%s193 + $0x40] sm:$0xff]
      %v208 = vld [vmem:[%s193 + $0x48] sm:$0xff]
      %v209 = vld [vmem:[%s193 + $0x50] sm:$0xff]
      %v210 = vld [vmem:[%s193 + $0x58] sm:$0xff]
      %v211 = vld [vmem:[%s193 + $0x60] sm:$0xff]
      %v212 = vld [vmem:[%s193 + $0x68] sm:$0xff]
      %v213 = vld [vmem:[%s193 + $0x70] sm:$0xff]
      %v214 = vld [vmem:[%s193 + $0x78] sm:$0xff]
      %v215 = vld [vmem:[%s193 + $0x80] sm:$0xff]
      %v216 = vld [vmem:[%s193 + $0x88] sm:$0xff]
      %v217 = vld [vmem:[%s193 + $0x90] sm:$0xff]
      %v218 = vld [vmem:[%s193 + $0x98] sm:$0xff]
      %v219 = vld [vmem:[%s193 + $0xa0] sm:$0xff]
      %v220 = vld [vmem:[%s193 + $0xa8] sm:$0xff]
      %v221 = vld [vmem:[%s193 + $0xb0] sm:$0xff]
      %v222 = vld [vmem:[%s193 + $0xb8] sm:$0xff]
      %v223 = vld [vmem:[%s193 + $0xc0] sm:$0xff]
      %v224 = vld [vmem:[%s193 + $0xc8] sm:$0xff]
      %v225 = vld [vmem:[%s193 + $0xd0] sm:$0xff]
      %v226 = vld [vmem:[%s193 + $0xd8] sm:$0xff]
      %v227 = vld [vmem:[%s1] sm:$0x7]
      %v228 = vld [vmem:[%s193 + $0x1] sm:$0xff]
      %v229 = vld [vmem:[%s193 + $0x9] sm:$0xff]
      %v230 = vld [vmem:[%s193 + $0x11] sm:$0xff]
      %v231 = vld [vmem:[%s193 + $0x19] sm:$0xff]
      %v232 = vld [vmem:[%s193 + $0x21] sm:$0xff]
      %v233 = vld [vmem:[%s193 + $0x29] sm:$0xff]
      %v234 = vld [vmem:[%s193 + $0x31] sm:$0xff]
      %v235 = vld [vmem:[%s193 + $0x39] sm:$0xff]
      %v236 = vld [vmem:[%s193 + $0x41] sm:$0xff]
      %v237 = vld [vmem:[%s193 + $0x49] sm:$0xff]
      %v238 = vld [vmem:[%s193 + $0x51] sm:$0xff]
      %v239 = vld [vmem:[%s193 + $0x59] sm:$0xff]
      %v240 = vld [vmem:[%s193 + $0x61] sm:$0xff]
      %v241 = vld [vmem:[%s193 + $0x69] sm:$0xff]
      %v242 = vld [vmem:[%s193 + $0x71] sm:$0xff]
      %v243 = vld [vmem:[%s193 + $0x79] sm:$0xff]
      %v244 = vld [vmem:[%s193 + $0x81] sm:$0xff]
      %v245 = vld [vmem:[%s193 + $0x89] sm:$0xff]
      %v246 = vld [vmem:[%s193 + $0x91] sm:$0xff]
      %v247 = vld [vmem:[%s193 + $0x99] sm:$0xff]
      %v248 = vld [vmem:[%s193 + $0xa1] sm:$0xff]
      %v249 = vld [vmem:[%s193 + $0xa9] sm:$0xff]
      %v250 = vld [vmem:[%s193 + $0xb1] sm:$0xff]
      %v251 = vld [vmem:[%s193 + $0xb9] sm:$0xff]
      %v252 = vld [vmem:[%s193 + $0xc1] sm:$0xff]
      %v253 = vld [vmem:[%s193 + $0xc9] sm:$0xff]
      %v254 = vld [vmem:[%s193 + $0xd1] sm:$0xff]
      %v255 = vld [vmem:[%s193 + $0xd9] sm:$0xff]
      %s256 = scalar_lea.vmem %s1, 4
      %v257 = vld [vmem:[%s256] sm:$0x7]
      %vm258 = vcmask 23552
      %v260 = vsel %vm258, %v228, 0
      %v263 = vsel %vm258, %v229, 0
      %v266 = vsel %vm258, %v230, 0
      %v269 = vsel %vm258, %v231, 0
      %v272 = vsel %vm258, %v232, 0
      %v275 = vsel %vm258, %v233, 0
      %v278 = vsel %vm258, %v234, 0
      %v281 = vsel %vm258, %v235, 0
      %v284 = vsel %vm258, %v236, 0
      %v287 = vsel %vm258, %v237, 0
      %v290 = vsel %vm258, %v238, 0
      %v293 = vsel %vm258, %v239, 0
      %v296 = vsel %vm258, %v240, 0
      %v299 = vsel %vm258, %v241, 0
      %v302 = vsel %vm258, %v242, 0
      %v305 = vsel %vm258, %v243, 0
      %v308 = vsel %vm258, %v244, 0
      %v311 = vsel %vm258, %v245, 0
      %v314 = vsel %vm258, %v246, 0
      %v317 = vsel %vm258, %v247, 0
      %v320 = vsel %vm258, %v248, 0
      %v323 = vsel %vm258, %v249, 0
      %v326 = vsel %vm258, %v250, 0
      %v329 = vsel %vm258, %v251, 0
      %v332 = vsel %vm258, %v252, 0
      %v335 = vsel %vm258, %v253, 0
      %v338 = vsel %vm258, %v254, 0
      %v341 = vsel %vm258, %v255, 0
      %vm343 = vcmask 1042432
      %v345 = vsel %vm343, %v257, 0
      %347 = vmatprep.subr.mxu0 0.0
      %348 = vmatpush1.msra.mxu0 %v345
      %349 = vmatprep.subr.mxu0 0.0
      %350 = vmatpush1.msra.mxu0 0.0
      %351 = vmatprep.subr.mxu0 0.0
      %352 = vmatpush1.msra.mxu0 0.0
      %353 = vmatprep.subr.mxu0 0.0
      %354 = vmatpush1.msra.mxu0 0.0
      %355 = vmatprep.subr.mxu0 0.0
      %356 = vmatpush1.msra.mxu0 0.0
      %357 = vmatprep.subr.mxu0 0.0
      %358 = vmatpush1.msra.mxu0 0.0
      %359 = vmatprep.subr.mxu0 0.0
      %360 = vmatpush1.msra.mxu0 0.0
      %361 = vmatprep.subr.mxu0 0.0
      %362 = vmatpush1.msra.mxu0 0.0
      %363 = vmatprep.subr.mxu0 0.0
      %364 = vmatpush1.msra.mxu0 0.0
      %365 = vmatprep.subr.mxu0 0.0
      %366 = vmatpush1.msra.mxu0 0.0
      %367 = vmatprep.subr.mxu0 0.0
      %368 = vmatpush1.msra.mxu0 0.0
      %369 = vmatprep.subr.mxu0 0.0
      %370 = vmatpush1.msra.mxu0 0.0
      %371 = vmatprep.subr.mxu0 0.0
      %372 = vmatpush1.msra.mxu0 0.0
      %373 = vmatprep.subr.mxu0 0.0
      %374 = vmatpush1.msra.mxu0 0.0
      %375 = vmatprep.subr.mxu0 0.0
      %376 = vmatpush1.msra.mxu0 0.0
      %377 = vmatprep.subr.mxu0 0.0
      %378 = vmatpush1.msra.mxu0 0.0
      %379 = vmatprep.subr.mxu0 0.0
      %380 = vmatpush1.msra.mxu0 0.0
      %381 = vmatprep.subr.mxu0 0.0
      %382 = vmatpush1.msra.mxu0 0.0
      %383 = vmatprep.subr.mxu0 0.0
      %384 = vmatpush1.msra.mxu0 0.0
      %385 = vmatprep.subr.mxu0 0.0
      %386 = vmatpush1.msra.mxu0 0.0
      %387 = vmatprep.subr.mxu0 0.0
      %388 = vmatpush1.msra.mxu0 0.0
      %389 = vmatprep.subr.mxu0 0.0
      %390 = vmatpush1.msra.mxu0 0.0
      %391 = vmatprep.subr.mxu0 0.0
      %392 = vmatpush1.msra.mxu0 0.0
      %393 = vmatprep.subr.mxu0 0.0
      %394 = vmatpush1.msra.mxu0 0.0
      %395 = vmatprep.subr.mxu0 0.0
      %396 = vmatpush1.msra.mxu0 0.0
      %397 = vmatprep.subr.mxu0 0.0
      %398 = vmatpush1.msra.mxu0 0.0
      %399 = vmatprep.subr.mxu0 0.0
      %400 = vmatpush1.msra.mxu0 0.0
      %401 = vmatprep.subr.mxu0 0.0
      %402 = vmatpush1.msra.mxu0 0.0
      %403 = vmatprep.subr.mxu0 0.0
      %404 = vmatpush1.msra.mxu0 0.0
      %405 = vmatprep.subr.mxu0 0.0
      %406 = vmatpush1.msra.mxu0 0.0
      %407 = vmatprep.subr.mxu0 0.0
      %408 = vmatpush1.msra.mxu0 0.0
      %409 = vmatprep.subr.mxu0 0.0
      %410 = vmatpush1.msra.mxu0 0.0
      %411 = vmatprep.mubr.f32.mxu0 0.0
      %412 = vmatmul.mubr.f32.gmra.mrb[0].mxu0 %v260
      %v413 = vpop.f32.mrb[0].mxu0
      %v414 = vadd.f32 0.0, %v413
      %v415 = vpop.f32.mrb[0].mxu0
      %416 = vmatprep.mubr.f32.mxu0 0.0
      %417 = vmatmul.mubr.f32.gmra.mrb[0].mxu0 %v263
      %v418 = vpop.f32.mrb[0].mxu0
      %v419 = vadd.f32 0.0, %v418
      %v420 = vpop.f32.mrb[0].mxu0
      %421 = vmatprep.mubr.f32.mxu0 0.0
      %422 = vmatmul.mubr.f32.gmra.mrb[0].mxu0 %v266
      %v423 = vpop.f32.mrb[0].mxu0
      %v424 = vadd.f32 0.0, %v423
      %v425 = vpop.f32.mrb[0].mxu0
      %426 = vmatprep.mubr.f32.mxu0 0.0
      %427 = vmatmul.mubr.f32.gmra.mrb[0].mxu0 %v269
      %v428 = vpop.f32.mrb[0].mxu0
      %v429 = vadd.f32 0.0, %v428
      %v430 = vpop.f32.mrb[0].mxu0
      %431 = vmatprep.mubr.f32.mxu0 0.0
      %432 = vmatmul.mubr.f32.gmra.mrb[0].mxu0 %v272
      %v433 = vpop.f32.mrb[0].mxu0
      %v434 = vadd.f32 0.0, %v433
      %v435 = vpop.f32.mrb[0].mxu0
      %436 = vmatprep.mubr.f32.mxu0 0.0
      %437 = vmatmul.mubr.f32.gmra.mrb[0].mxu0 %v275
      %v438 = vpop.f32.mrb[0].mxu0
      %v439 = vadd.f32 0.0, %v438
      %v440 = vpop.f32.mrb[0].mxu0
      %441 = vmatprep.mubr.f32.mxu0 0.0
      %442 = vmatmul.mubr.f32.gmra.mrb[0].mxu0 %v278
      %v443 = vpop.f32.mrb[0].mxu0
      %v444 = vadd.f32 0.0, %v443
      %v445 = vpop.f32.mrb[0].mxu0
      %446 = vmatprep.mubr.f32.mxu0 0.0
      %447 = vmatmul.mubr.f32.gmra.mrb[0].mxu0 %v281
      %v448 = vpop.f32.mrb[0].mxu0
      %v449 = vadd.f32 0.0, %v448
      %v450 = vpop.f32.mrb[0].mxu0
      %451 = vmatprep.mubr.f32.mxu0 0.0
      %452 = vmatmul.mubr.f32.gmra.mrb[0].mxu0 %v284
      %v453 = vpop.f32.mrb[0].mxu0
      %v454 = vadd.f32 0.0, %v453
      %v455 = vpop.f32.mrb[0].mxu0
      %456 = vmatprep.mubr.f32.mxu0 0.0
      %457 = vmatmul.mubr.f32.gmra.mrb[0].mxu0 %v287
      %v458 = vpop.f32.mrb[0].mxu0
      %v459 = vadd.f32 0.0, %v458
      %v460 = vpop.f32.mrb[0].mxu0
      %461 = vmatprep.mubr.f32.mxu0 0.0
      %462 = vmatmul.mubr.f32.gmra.mrb[0].mxu0 %v290
      %v463 = vpop.f32.mrb[0].mxu0
      %v464 = vadd.f32 0.0, %v463
      %v465 = vpop.f32.mrb[0].mxu0
      %466 = vmatprep.mubr.f32.mxu0 0.0
      %467 = vmatmul.mubr.f32.gmra.mrb[0].mxu0 %v293
      %v468 = vpop.f32.mrb[0].mxu0
      %v469 = vadd.f32 0.0, %v468
      %v470 = vpop.f32.mrb[0].mxu0
      %471 = vmatprep.mubr.f32.mxu0 0.0
      %472 = vmatmul.mubr.f32.gmra.mrb[0].mxu0 %v296
      %v473 = vpop.f32.mrb[0].mxu0
      %v474 = vadd.f32 0.0, %v473
      %v475 = vpop.f32.mrb[0].mxu0
      %476 = vmatprep.mubr.f32.mxu0 0.0
      %477 = vmatmul.mubr.f32.gmra.mrb[0].mxu0 %v299
      %v478 = vpop.f32.mrb[0].mxu0
      %v479 = vadd.f32 0.0, %v478
      %v480 = vpop.f32.mrb[0].mxu0
      %481 = vmatprep.mubr.f32.mxu0 0.0
      %482 = vmatmul.mubr.f32.gmra.mrb[0].mxu0 %v302
      %v483 = vpop.f32.mrb[0].mxu0
      %v484 = vadd.f32 0.0, %v483
      %v485 = vpop.f32.mrb[0].mxu0
      %486 = vmatprep.mubr.f32.mxu0 0.0
      %487 = vmatmul.mubr.f32.gmra.mrb[0].mxu0 %v305
      %v488 = vpop.f32.mrb[0].mxu0
      %v489 = vadd.f32 0.0, %v488
      %v490 = vpop.f32.mrb[0].mxu0
      %491 = vmatprep.mubr.f32.mxu0 0.0
      %492 = vmatmul.mubr.f32.gmra.mrb[0].mxu0 %v308
      %v493 = vpop.f32.mrb[0].mxu0
      %v494 = vadd.f32 0.0, %v493
      %v495 = vpop.f32.mrb[0].mxu0
      %496 = vmatprep.mubr.f32.mxu0 0.0
      %497 = vmatmul.mubr.f32.gmra.mrb[0].mxu0 %v311
      %v498 = vpop.f32.mrb[0].mxu0
      %v499 = vadd.f32 0.0, %v498
      %v500 = vpop.f32.mrb[0].mxu0
      %501 = vmatprep.mubr.f32.mxu0 0.0
      %502 = vmatmul.mubr.f32.gmra.mrb[0].mxu0 %v314
      %v503 = vpop.f32.mrb[0].mxu0
      %v504 = vadd.f32 0.0, %v503
      %v505 = vpop.f32.mrb[0].mxu0
      %506 = vmatprep.mubr.f32.mxu0 0.0
      %507 = vmatmul.mubr.f32.gmra.mrb[0].mxu0 %v317
      %v508 = vpop.f32.mrb[0].mxu0
      %v509 = vadd.f32 0.0, %v508
      %v510 = vpop.f32.mrb[0].mxu0
      %511 = vmatprep.mubr.f32.mxu0 0.0
      %512 = vmatmul.mubr.f32.gmra.mrb[0].mxu0 %v320
      %v513 = vpop.f32.mrb[0].mxu0
      %v514 = vadd.f32 0.0, %v513
      %v515 = vpop.f32.mrb[0].mxu0
      %516 = vmatprep.mubr.f32.mxu0 0.0
      %517 = vmatmul.mubr.f32.gmra.mrb[0].mxu0 %v323
      %v518 = vpop.f32.mrb[0].mxu0
      %v519 = vadd.f32 0.0, %v518
      %v520 = vpop.f32.mrb[0].mxu0
      %521 = vmatprep.mubr.f32.mxu0 0.0
      %522 = vmatmul.mubr.f32.gmra.mrb[0].mxu0 %v326
      %v523 = vpop.f32.mrb[0].mxu0
      %v524 = vadd.f32 0.0, %v523
      %v525 = vpop.f32.mrb[0].mxu0
      %526 = vmatprep.mubr.f32.mxu0 0.0
      %527 = vmatmul.mubr.f32.gmra.mrb[0].mxu0 %v329
      %v528 = vpop.f32.mrb[0].mxu0
      %v529 = vadd.f32 0.0, %v528
      %v530 = vpop.f32.mrb[0].mxu0
      %531 = vmatprep.mubr.f32.mxu0 0.0
      %532 = vmatmul.mubr.f32.gmra.mrb[0].mxu0 %v332
      %v533 = vpop.f32.mrb[0].mxu0
      %v534 = vadd.f32 0.0, %v533
      %v535 = vpop.f32.mrb[0].mxu0
      %536 = vmatprep.mubr.f32.mxu0 0.0
      %537 = vmatmul.mubr.f32.gmra.mrb[0].mxu0 %v335
      %v538 = vpop.f32.mrb[0].mxu0
      %v539 = vadd.f32 0.0, %v538
      %v540 = vpop.f32.mrb[0].mxu0
      %541 = vmatprep.mubr.f32.mxu0 0.0
      %542 = vmatmul.mubr.f32.gmra.mrb[0].mxu0 %v338
      %v543 = vpop.f32.mrb[0].mxu0
      %v544 = vadd.f32 0.0, %v543
      %v545 = vpop.f32.mrb[0].mxu0
      %546 = vmatprep.mubr.f32.mxu0 0.0
      %547 = vmatmul.mubr.f32.gmra.mrb[0].mxu0 %v341
      %v548 = vpop.f32.mrb[0].mxu0
      %v549 = vadd.f32 0.0, %v548
      %v550 = vpop.f32.mrb[0].mxu0
      %551 = vdwg.mxu0
      %v553 = vsel %vm258, %v199, 0
      %v556 = vsel %vm258, %v200, 0
      %v559 = vsel %vm258, %v201, 0
      %v562 = vsel %vm258, %v202, 0
      %v565 = vsel %vm258, %v203, 0
      %v568 = vsel %vm258, %v204, 0
      %v571 = vsel %vm258, %v205, 0
      %v574 = vsel %vm258, %v206, 0
      %v577 = vsel %vm258, %v207, 0
      %v580 = vsel %vm258, %v208, 0
      %v583 = vsel %vm258, %v209, 0
      %v586 = vsel %vm258, %v210, 0
      %v589 = vsel %vm258, %v211, 0
      %v592 = vsel %vm258, %v212, 0
      %v595 = vsel %vm258, %v213, 0
      %v598 = vsel %vm258, %v214, 0
      %v601 = vsel %vm258, %v215, 0
      %v604 = vsel %vm258, %v216, 0
      %v607 = vsel %vm258, %v217, 0
      %v610 = vsel %vm258, %v218, 0
      %v613 = vsel %vm258, %v219, 0
      %v616 = vsel %vm258, %v220, 0
      %v619 = vsel %vm258, %v221, 0
      %v622 = vsel %vm258, %v222, 0
      %v625 = vsel %vm258, %v223, 0
      %v628 = vsel %vm258, %v224, 0
      %v631 = vsel %vm258, %v225, 0
      %v634 = vsel %vm258, %v226, 0
      %v637 = vsel %vm343, %v227, 0
      %639 = vmatprep.subr.mxu0 0.0
      %640 = vmatpush1.msra.mxu0 %v637
      %641 = vmatprep.subr.mxu0 0.0
      %642 = vmatpush1.msra.mxu0 0.0
      %643 = vmatprep.subr.mxu0 0.0
      %644 = vmatpush1.msra.mxu0 0.0
      %645 = vmatprep.subr.mxu0 0.0
      %646 = vmatpush1.msra.mxu0 0.0
      %647 = vmatprep.subr.mxu0 0.0
      %648 = vmatpush1.msra.mxu0 0.0
      %649 = vmatprep.subr.mxu0 0.0
      %650 = vmatpush1.msra.mxu0 0.0
      %651 = vmatprep.subr.mxu0 0.0
      %652 = vmatpush1.msra.mxu0 0.0
      %653 = vmatprep.subr.mxu0 0.0
      %654 = vmatpush1.msra.mxu0 0.0
      %655 = vmatprep.subr.mxu0 0.0
      %656 = vmatpush1.msra.mxu0 0.0
      %657 = vmatprep.subr.mxu0 0.0
      %658 = vmatpush1.msra.mxu0 0.0
      %659 = vmatprep.subr.mxu0 0.0
      %660 = vmatpush1.msra.mxu0 0.0
      %661 = vmatprep.subr.mxu0 0.0
      %662 = vmatpush1.msra.mxu0 0.0
      %663 = vmatprep.subr.mxu0 0.0
      %664 = vmatpush1.msra.mxu0 0.0
      %665 = vmatprep.subr.mxu0 0.0
      %666 = vmatpush1.msra.mxu0 0.0
      %667 = vmatprep.subr.mxu0 0.0
      %668 = vmatpush1.msra.mxu0 0.0
      %669 = vmatprep.subr.mxu0 0.0
      %670 = vmatpush1.msra.mxu0 0.0
      %671 = vmatprep.subr.mxu0 0.0
      %672 = vmatpush1.msra.mxu0 0.0
      %673 = vmatprep.subr.mxu0 0.0
      %674 = vmatpush1.msra.mxu0 0.0
      %675 = vmatprep.subr.mxu0 0.0
      %676 = vmatpush1.msra.mxu0 0.0
      %677 = vmatprep.subr.mxu0 0.0
      %678 = vmatpush1.msra.mxu0 0.0
      %679 = vmatprep.subr.mxu0 0.0
      %680 = vmatpush1.msra.mxu0 0.0
      %681 = vmatprep.subr.mxu0 0.0
      %682 = vmatpush1.msra.mxu0 0.0
      %683 = vmatprep.subr.mxu0 0.0
      %684 = vmatpush1.msra.mxu0 0.0
      %685 = vmatprep.subr.mxu0 0.0
      %686 = vmatpush1.msra.mxu0 0.0
      %687 = vmatprep.subr.mxu0 0.0
      %688 = vmatpush1.msra.mxu0 0.0
      %689 = vmatprep.subr.mxu0 0.0
      %690 = vmatpush1.msra.mxu0 0.0
      %691 = vmatprep.subr.mxu0 0.0
      %692 = vmatpush1.msra.mxu0 0.0
      %693 = vmatprep.subr.mxu0 0.0
      %694 = vmatpush1.msra.mxu0 0.0
      %695 = vmatprep.subr.mxu0 0.0
      %696 = vmatpush1.msra.mxu0 0.0
      %697 = vmatprep.subr.mxu0 0.0
      %698 = vmatpush1.msra.mxu0 0.0
      %699 = vmatprep.subr.mxu0 0.0
      %700 = vmatpush1.msra.mxu0 0.0
      %701 = vmatprep.subr.mxu0 0.0
      %702 = vmatpush1.msra.mxu0 0.0
      %703 = vmatprep.mubr.f32.mxu0 0.0
      %704 = vmatmul.mubr.f32.gmra.mrb[0].mxu0 %v553
      %v705 = vpop.f32.mrb[0].mxu0
      %v706 = vadd.f32 %v414, %v705
      %v707 = vpop.f32.mrb[0].mxu0
      %708 = vmatprep.mubr.f32.mxu0 0.0
      %709 = vmatmul.mubr.f32.gmra.mrb[0].mxu0 %v556
      %v710 = vpop.f32.mrb[0].mxu0
      %v711 = vadd.f32 %v419, %v710
      %v712 = vpop.f32.mrb[0].mxu0
      %713 = vmatprep.mubr.f32.mxu0 0.0
      %714 = vmatmul.mubr.f32.gmra.mrb[0].mxu0 %v559
      %v715 = vpop.f32.mrb[0].mxu0
      %v716 = vadd.f32 %v424, %v715
      %v717 = vpop.f32.mrb[0].mxu0
      %718 = vmatprep.mubr.f32.mxu0 0.0
      %719 = vmatmul.mubr.f32.gmra.mrb[0].mxu0 %v562
      %v720 = vpop.f32.mrb[0].mxu0
      %v721 = vadd.f32 %v429, %v720
      %v722 = vpop.f32.mrb[0].mxu0
      %723 = vmatprep.mubr.f32.mxu0 0.0
      %724 = vmatmul.mubr.f32.gmra.mrb[0].mxu0 %v565
      %v725 = vpop.f32.mrb[0].mxu0
      %v726 = vadd.f32 %v434, %v725
      %v727 = vpop.f32.mrb[0].mxu0
      %728 = vmatprep.mubr.f32.mxu0 0.0
      %729 = vmatmul.mubr.f32.gmra.mrb[0].mxu0 %v568
      %v730 = vpop.f32.mrb[0].mxu0
      %v731 = vadd.f32 %v439, %v730
      %v732 = vpop.f32.mrb[0].mxu0
      %733 = vmatprep.mubr.f32.mxu0 0.0
      %734 = vmatmul.mubr.f32.gmra.mrb[0].mxu0 %v571
      %v735 = vpop.f32.mrb[0].mxu0
      %v736 = vadd.f32 %v444, %v735
      %v737 = vpop.f32.mrb[0].mxu0
      %738 = vmatprep.mubr.f32.mxu0 0.0
      %739 = vmatmul.mubr.f32.gmra.mrb[0].mxu0 %v574
      %v740 = vpop.f32.mrb[0].mxu0
      %v741 = vadd.f32 %v449, %v740
      %v742 = vpop.f32.mrb[0].mxu0
      %743 = vmatprep.mubr.f32.mxu0 0.0
      %744 = vmatmul.mubr.f32.gmra.mrb[0].mxu0 %v577
      %v745 = vpop.f32.mrb[0].mxu0
      %v746 = vadd.f32 %v454, %v745
      %v747 = vpop.f32.mrb[0].mxu0
      %748 = vmatprep.mubr.f32.mxu0 0.0
      %749 = vmatmul.mubr.f32.gmra.mrb[0].mxu0 %v580
      %v750 = vpop.f32.mrb[0].mxu0
      %v751 = vadd.f32 %v459, %v750
      %v752 = vpop.f32.mrb[0].mxu0
      %753 = vmatprep.mubr.f32.mxu0 0.0
      %754 = vmatmul.mubr.f32.gmra.mrb[0].mxu0 %v583
      %v755 = vpop.f32.mrb[0].mxu0
      %v756 = vadd.f32 %v464, %v755
      %v757 = vpop.f32.mrb[0].mxu0
      %758 = vmatprep.mubr.f32.mxu0 0.0
      %759 = vmatmul.mubr.f32.gmra.mrb[0].mxu0 %v586
      %v760 = vpop.f32.mrb[0].mxu0
      %v761 = vadd.f32 %v469, %v760
      %v762 = vpop.f32.mrb[0].mxu0
      %763 = vmatprep.mubr.f32.mxu0 0.0
      %764 = vmatmul.mubr.f32.gmra.mrb[0].mxu0 %v589
      %v765 = vpop.f32.mrb[0].mxu0
      %v766 = vadd.f32 %v474, %v765
      %v767 = vpop.f32.mrb[0].mxu0
      %768 = vmatprep.mubr.f32.mxu0 0.0
      %769 = vmatmul.mubr.f32.gmra.mrb[0].mxu0 %v592
      %v770 = vpop.f32.mrb[0].mxu0
      %v771 = vadd.f32 %v479, %v770
      %v772 = vpop.f32.mrb[0].mxu0
      %773 = vmatprep.mubr.f32.mxu0 0.0
      %774 = vmatmul.mubr.f32.gmra.mrb[0].mxu0 %v595
      %v775 = vpop.f32.mrb[0].mxu0
      %v776 = vadd.f32 %v484, %v775
      %v777 = vpop.f32.mrb[0].mxu0
      %778 = vmatprep.mubr.f32.mxu0 0.0
      %779 = vmatmul.mubr.f32.gmra.mrb[0].mxu0 %v598
      %v780 = vpop.f32.mrb[0].mxu0
      %v781 = vadd.f32 %v489, %v780
      %v782 = vpop.f32.mrb[0].mxu0
      %783 = vmatprep.mubr.f32.mxu0 0.0
      %784 = vmatmul.mubr.f32.gmra.mrb[0].mxu0 %v601
      %v785 = vpop.f32.mrb[0].mxu0
      %v786 = vadd.f32 %v494, %v785
      %v787 = vpop.f32.mrb[0].mxu0
      %788 = vmatprep.mubr.f32.mxu0 0.0
      %789 = vmatmul.mubr.f32.gmra.mrb[0].mxu0 %v604
      %v790 = vpop.f32.mrb[0].mxu0
      %v791 = vadd.f32 %v499, %v790
      %v792 = vpop.f32.mrb[0].mxu0
      %793 = vmatprep.mubr.f32.mxu0 0.0
      %794 = vmatmul.mubr.f32.gmra.mrb[0].mxu0 %v607
      %v795 = vpop.f32.mrb[0].mxu0
      %v796 = vadd.f32 %v504, %v795
      %v797 = vpop.f32.mrb[0].mxu0
      %798 = vmatprep.mubr.f32.mxu0 0.0
      %799 = vmatmul.mubr.f32.gmra.mrb[0].mxu0 %v610
      %v800 = vpop.f32.mrb[0].mxu0
      %v801 = vadd.f32 %v509, %v800
      %v802 = vpop.f32.mrb[0].mxu0
      %803 = vmatprep.mubr.f32.mxu0 0.0
      %804 = vmatmul.mubr.f32.gmra.mrb[0].mxu0 %v613
      %v805 = vpop.f32.mrb[0].mxu0
      %v806 = vadd.f32 %v514, %v805
      %v807 = vpop.f32.mrb[0].mxu0
      %808 = vmatprep.mubr.f32.mxu0 0.0
      %809 = vmatmul.mubr.f32.gmra.mrb[0].mxu0 %v616
      %v810 = vpop.f32.mrb[0].mxu0
      %v811 = vadd.f32 %v519, %v810
      %v812 = vpop.f32.mrb[0].mxu0
      %813 = vmatprep.mubr.f32.mxu0 0.0
      %814 = vmatmul.mubr.f32.gmra.mrb[0].mxu0 %v619
      %v815 = vpop.f32.mrb[0].mxu0
      %v816 = vadd.f32 %v524, %v815
      %v817 = vpop.f32.mrb[0].mxu0
      %818 = vmatprep.mubr.f32.mxu0 0.0
      %819 = vmatmul.mubr.f32.gmra.mrb[0].mxu0 %v622
      %v820 = vpop.f32.mrb[0].mxu0
      %v821 = vadd.f32 %v529, %v820
      %v822 = vpop.f32.mrb[0].mxu0
      %823 = vmatprep.mubr.f32.mxu0 0.0
      %824 = vmatmul.mubr.f32.gmra.mrb[0].mxu0 %v625
      %v825 = vpop.f32.mrb[0].mxu0
      %v826 = vadd.f32 %v534, %v825
      %v827 = vpop.f32.mrb[0].mxu0
      %828 = vmatprep.mubr.f32.mxu0 0.0
      %829 = vmatmul.mubr.f32.gmra.mrb[0].mxu0 %v628
      %v830 = vpop.f32.mrb[0].mxu0
      %v831 = vadd.f32 %v539, %v830
      %v832 = vpop.f32.mrb[0].mxu0
      %833 = vmatprep.mubr.f32.mxu0 0.0
      %834 = vmatmul.mubr.f32.gmra.mrb[0].mxu0 %v631
      %v835 = vpop.f32.mrb[0].mxu0
      %v836 = vadd.f32 %v544, %v835
      %v837 = vpop.f32.mrb[0].mxu0
      %838 = vmatprep.mubr.f32.mxu0 0.0
      %839 = vmatmul.mubr.f32.gmra.mrb[0].mxu0 %v634
      %v840 = vpop.f32.mrb[0].mxu0
      %v841 = vadd.f32 %v549, %v840
      %v842 = vpop.f32.mrb[0].mxu0
      %843 = vdwg.mxu0
      %v844 = vld [vmem:[%s193 + $0x2] sm:$0xff]
      %v845 = vld [vmem:[%s193 + $0xa] sm:$0xff]
      %v846 = vld [vmem:[%s193 + $0x12] sm:$0xff]
      %v847 = vld [vmem:[%s193 + $0x1a] sm:$0xff]
      %v848 = vld [vmem:[%s193 + $0x22] sm:$0xff]
      %v849 = vld [vmem:[%s193 + $0x2a] sm:$0xff]
      %v850 = vld [vmem:[%s193 + $0x32] sm:$0xff]
      %v851 = vld [vmem:[%s193 + $0x3a] sm:$0xff]
      %v852 = vld [vmem:[%s193 + $0x42] sm:$0xff]
      %v853 = vld [vmem:[%s193 + $0x4a] sm:$0xff]
      %v854 = vld [vmem:[%s193 + $0x52] sm:$0xff]
      %v855 = vld [vmem:[%s193 + $0x5a] sm:$0xff]
      %v856 = vld [vmem:[%s193 + $0x62] sm:$0xff]
      %v857 = vld [vmem:[%s193 + $0x6a] sm:$0xff]
      %v858 = vld [vmem:[%s193 + $0x72] sm:$0xff]
      %v859 = vld [vmem:[%s193 + $0x7a] sm:$0xff]
      %v860 = vld [vmem:[%s193 + $0x82] sm:$0xff]
      %v861 = vld [vmem:[%s193 + $0x8a] sm:$0xff]
      %v862 = vld [vmem:[%s193 + $0x92] sm:$0xff]
      %v863 = vld [vmem:[%s193 + $0x9a] sm:$0xff]
      %v864 = vld [vmem:[%s193 + $0xa2] sm:$0xff]
      %v865 = vld [vmem:[%s193 + $0xaa] sm:$0xff]
      %v866 = vld [vmem:[%s193 + $0xb2] sm:$0xff]
      %v867 = vld [vmem:[%s193 + $0xba] sm:$0xff]
      %v868 = vld [vmem:[%s193 + $0xc2] sm:$0xff]
      %v869 = vld [vmem:[%s193 + $0xca] sm:$0xff]
      %v870 = vld [vmem:[%s193 + $0xd2] sm:$0xff]
      %v871 = vld [vmem:[%s193 + $0xda] sm:$0xff]
      %s872 = scalar_lea.vmem %s1, 8
      %v873 = vld [vmem:[%s872] sm:$0x7]
      %v875 = vsel %vm258, %v844, 0
      %v878 = vsel %vm258, %v845, 0
      %v881 = vsel %vm258, %v846, 0
      %v884 = vsel %vm258, %v847, 0
      %v887 = vsel %vm258, %v848, 0
      %v890 = vsel %vm258, %v849, 0
      %v893 = vsel %vm258, %v850, 0
      %v896 = vsel %vm258, %v851, 0
      %v899 = vsel %vm258, %v852, 0
      %v902 = vsel %vm258, %v853, 0
      %v905 = vsel %vm258, %v854, 0
      %v908 = vsel %vm258, %v855, 0
      %v911 = vsel %vm258, %v856, 0
      %v914 = vsel %vm258, %v857, 0
      %v917 = vsel %vm258, %v858, 0
      %v920 = vsel %vm258, %v859, 0
      %v923 = vsel %vm258, %v860, 0
      %v926 = vsel %vm258, %v861, 0
      %v929 = vsel %vm258, %v862, 0
      %v932 = vsel %vm258, %v863, 0
      %v935 = vsel %vm258, %v864, 0
      %v938 = vsel %vm258, %v865, 0
      %v941 = vsel %vm258, %v866, 0
      %v944 = vsel %vm258, %v867, 0
      %v947 = vsel %vm258, %v868, 0
      %v950 = vsel %vm258, %v869, 0
      %v953 = vsel %vm258, %v870, 0
      %v956 = vsel %vm258, %v871, 0
      %v959 = vsel %vm343, %v873, 0
      %961 = vmatprep.subr.mxu0 0.0
      %962 = vmatpush1.msra.mxu0 %v959
      %963 = vmatprep.subr.mxu0 0.0
      %964 = vmatpush1.msra.mxu0 0.0
      %965 = vmatprep.subr.mxu0 0.0
      %966 = vmatpush1.msra.mxu0 0.0
      %967 = vmatprep.subr.mxu0 0.0
      %968 = vmatpush1.msra.mxu0 0.0
      %969 = vmatprep.subr.mxu0 0.0
      %970 = vmatpush1.msra.mxu0 0.0
      %971 = vmatprep.subr.mxu0 0.0
      %972 = vmatpush1.msra.mxu0 0.0
      %973 = vmatprep.subr.mxu0 0.0
      %974 = vmatpush1.msra.mxu0 0.0
      %975 = vmatprep.subr.mxu0 0.0
      %976 = vmatpush1.msra.mxu0 0.0
      %977 = vmatprep.subr.mxu0 0.0
      %978 = vmatpush1.msra.mxu0 0.0
      %979 = vmatprep.subr.mxu0 0.0
      %980 = vmatpush1.msra.mxu0 0.0
      %981 = vmatprep.subr.mxu0 0.0
      %982 = vmatpush1.msra.mxu0 0.0
      %983 = vmatprep.subr.mxu0 0.0
      %984 = vmatpush1.msra.mxu0 0.0
      %985 = vmatprep.subr.mxu0 0.0
      %986 = vmatpush1.msra.mxu0 0.0
      %987 = vmatprep.subr.mxu0 0.0
      %988 = vmatpush1.msra.mxu0 0.0
      %989 = vmatprep.subr.mxu0 0.0
      %990 = vmatpush1.msra.mxu0 0.0
      %991 = vmatprep.subr.mxu0 0.0
      %992 = vmatpush1.msra.mxu0 0.0
      %993 = vmatprep.subr.mxu0 0.0
      %994 = vmatpush1.msra.mxu0 0.0
      %995 = vmatprep.subr.mxu0 0.0
      %996 = vmatpush1.msra.mxu0 0.0
      %997 = vmatprep.subr.mxu0 0.0
      %998 = vmatpush1.msra.mxu0 0.0
      %999 = vmatprep.subr.mxu0 0.0
      %1000 = vmatpush1.msra.mxu0 0.0
      %1001 = vmatprep.subr.mxu0 0.0
      %1002 = vmatpush1.msra.mxu0 0.0
      %1003 = vmatprep.subr.mxu0 0.0
      %1004 = vmatpush1.msra.mxu0 0.0
      %1005 = vmatprep.subr.mxu0 0.0
      %1006 = vmatpush1.msra.mxu0 0.0
      %1007 = vmatprep.subr.mxu0 0.0
      %1008 = vmatpush1.msra.mxu0 0.0
      %1009 = vmatprep.subr.mxu0 0.0
      %1010 = vmatpush1.msra.mxu0 0.0
      %1011 = vmatprep.subr.mxu0 0.0
      %1012 = vmatpush1.msra.mxu0 0.0
      %1013 = vmatprep.subr.mxu0 0.0
      %1014 = vmatpush1.msra.mxu0 0.0
      %1015 = vmatprep.subr.mxu0 0.0
      %1016 = vmatpush1.msra.mxu0 0.0
      %1017 = vmatprep.subr.mxu0 0.0
      %1018 = vmatpush1.msra.mxu0 0.0
      %1019 = vmatprep.subr.mxu0 0.0
      %1020 = vmatpush1.msra.mxu0 0.0
      %1021 = vmatprep.subr.mxu0 0.0
      %1022 = vmatpush1.msra.mxu0 0.0
      %1023 = vmatprep.subr.mxu0 0.0
      %1024 = vmatpush1.msra.mxu0 0.0
      %1025 = vmatprep.mubr.f32.mxu0 0.0
      %1026 = vmatmul.mubr.f32.gmra.mrb[0].mxu0 %v875
      %v1027 = vpop.f32.mrb[0].mxu0
      %v1028 = vadd.f32 0.0, %v1027
      %v1029 = vpop.f32.mrb[0].mxu0
      %1030 = vmatprep.mubr.f32.mxu0 0.0
      %1031 = vmatmul.mubr.f32.gmra.mrb[0].mxu0 %v878
      %v1032 = vpop.f32.mrb[0].mxu0
      %v1033 = vadd.f32 0.0, %v1032
      %v1034 = vpop.f32.mrb[0].mxu0
      %1035 = vmatprep.mubr.f32.mxu0 0.0
      %1036 = vmatmul.mubr.f32.gmra.mrb[0].mxu0 %v881
      %v1037 = vpop.f32.mrb[0].mxu0
      %v1038 = vadd.f32 0.0, %v1037
      %v1039 = vpop.f32.mrb[0].mxu0
      %1040 = vmatprep.mubr.f32.mxu0 0.0
      %1041 = vmatmul.mubr.f32.gmra.mrb[0].mxu0 %v884
      %v1042 = vpop.f32.mrb[0].mxu0
      %v1043 = vadd.f32 0.0, %v1042
      %v1044 = vpop.f32.mrb[0].mxu0
      %1045 = vmatprep.mubr.f32.mxu0 0.0
      %1046 = vmatmul.mubr.f32.gmra.mrb[0].mxu0 %v887
      %v1047 = vpop.f32.mrb[0].mxu0
      %v1048 = vadd.f32 0.0, %v1047
      %v1049 = vpop.f32.mrb[0].mxu0
      %1050 = vmatprep.mubr.f32.mxu0 0.0
      %1051 = vmatmul.mubr.f32.gmra.mrb[0].mxu0 %v890
      %v1052 = vpop.f32.mrb[0].mxu0
      %v1053 = vadd.f32 0.0, %v1052
      %v1054 = vpop.f32.mrb[0].mxu0
      %1055 = vmatprep.mubr.f32.mxu0 0.0
      %1056 = vmatmul.mubr.f32.gmra.mrb[0].mxu0 %v893
      %v1057 = vpop.f32.mrb[0].mxu0
      %v1058 = vadd.f32 0.0, %v1057
      %v1059 = vpop.f32.mrb[0].mxu0
      %1060 = vmatprep.mubr.f32.mxu0 0.0
      %1061 = vmatmul.mubr.f32.gmra.mrb[0].mxu0 %v896
      %v1062 = vpop.f32.mrb[0].mxu0
      %v1063 = vadd.f32 0.0, %v1062
      %v1064 = vpop.f32.mrb[0].mxu0
      %1065 = vmatprep.mubr.f32.mxu0 0.0
      %1066 = vmatmul.mubr.f32.gmra.mrb[0].mxu0 %v899
      %v1067 = vpop.f32.mrb[0].mxu0
      %v1068 = vadd.f32 0.0, %v1067
      %v1069 = vpop.f32.mrb[0].mxu0
      %1070 = vmatprep.mubr.f32.mxu0 0.0
      %1071 = vmatmul.mubr.f32.gmra.mrb[0].mxu0 %v902
      %v1072 = vpop.f32.mrb[0].mxu0
      %v1073 = vadd.f32 0.0, %v1072
      %v1074 = vpop.f32.mrb[0].mxu0
      %1075 = vmatprep.mubr.f32.mxu0 0.0
      %1076 = vmatmul.mubr.f32.gmra.mrb[0].mxu0 %v905
      %v1077 = vpop.f32.mrb[0].mxu0
      %v1078 = vadd.f32 0.0, %v1077
      %v1079 = vpop.f32.mrb[0].mxu0
      %1080 = vmatprep.mubr.f32.mxu0 0.0
      %1081 = vmatmul.mubr.f32.gmra.mrb[0].mxu0 %v908
      %v1082 = vpop.f32.mrb[0].mxu0
      %v1083 = vadd.f32 0.0, %v1082
      %v1084 = vpop.f32.mrb[0].mxu0
      %1085 = vmatprep.mubr.f32.mxu0 0.0
      %1086 = vmatmul.mubr.f32.gmra.mrb[0].mxu0 %v911
      %v1087 = vpop.f32.mrb[0].mxu0
      %v1088 = vadd.f32 0.0, %v1087
      %v1089 = vpop.f32.mrb[0].mxu0
      %1090 = vmatprep.mubr.f32.mxu0 0.0
      %1091 = vmatmul.mubr.f32.gmra.mrb[0].mxu0 %v914
      %v1092 = vpop.f32.mrb[0].mxu0
      %v1093 = vadd.f32 0.0, %v1092
      %v1094 = vpop.f32.mrb[0].mxu0
      %1095 = vmatprep.mubr.f32.mxu0 0.0
      %1096 = vmatmul.mubr.f32.gmra.mrb[0].mxu0 %v917
      %v1097 = vpop.f32.mrb[0].mxu0
      %v1098 = vadd.f32 0.0, %v1097
      %v1099 = vpop.f32.mrb[0].mxu0
      %1100 = vmatprep.mubr.f32.mxu0 0.0
      %1101 = vmatmul.mubr.f32.gmra.mrb[0].mxu0 %v920
      %v1102 = vpop.f32.mrb[0].mxu0
      %v1103 = vadd.f32 0.0, %v1102
      %v1104 = vpop.f32.mrb[0].mxu0
      %1105 = vmatprep.mubr.f32.mxu0 0.0
      %1106 = vmatmul.mubr.f32.gmra.mrb[0].mxu0 %v923
      %v1107 = vpop.f32.mrb[0].mxu0
      %v1108 = vadd.f32 0.0, %v1107
      %v1109 = vpop.f32.mrb[0].mxu0
      %1110 = vmatprep.mubr.f32.mxu0 0.0
      %1111 = vmatmul.mubr.f32.gmra.mrb[0].mxu0 %v926
      %v1112 = vpop.f32.mrb[0].mxu0
      %v1113 = vadd.f32 0.0, %v1112
      %v1114 = vpop.f32.mrb[0].mxu0
      %1115 = vmatprep.mubr.f32.mxu0 0.0
      %1116 = vmatmul.mubr.f32.gmra.mrb[0].mxu0 %v929
      %v1117 = vpop.f32.mrb[0].mxu0
      %v1118 = vadd.f32 0.0, %v1117
      %v1119 = vpop.f32.mrb[0].mxu0
      %1120 = vmatprep.mubr.f32.mxu0 0.0
      %1121 = vmatmul.mubr.f32.gmra.mrb[0].mxu0 %v932
      %v1122 = vpop.f32.mrb[0].mxu0
      %v1123 = vadd.f32 0.0, %v1122
      %v1124 = vpop.f32.mrb[0].mxu0
      %1125 = vmatprep.mubr.f32.mxu0 0.0
      %1126 = vmatmul.mubr.f32.gmra.mrb[0].mxu0 %v935
      %v1127 = vpop.f32.mrb[0].mxu0
      %v1128 = vadd.f32 0.0, %v1127
      %v1129 = vpop.f32.mrb[0].mxu0
      %1130 = vmatprep.mubr.f32.mxu0 0.0
      %1131 = vmatmul.mubr.f32.gmra.mrb[0].mxu0 %v938
      %v1132 = vpop.f32.mrb[0].mxu0
      %v1133 = vadd.f32 0.0, %v1132
      %v1134 = vpop.f32.mrb[0].mxu0
      %1135 = vmatprep.mubr.f32.mxu0 0.0
      %1136 = vmatmul.mubr.f32.gmra.mrb[0].mxu0 %v941
      %v1137 = vpop.f32.mrb[0].mxu0
      %v1138 = vadd.f32 0.0, %v1137
      %v1139 = vpop.f32.mrb[0].mxu0
      %1140 = vmatprep.mubr.f32.mxu0 0.0
      %1141 = vmatmul.mubr.f32.gmra.mrb[0].mxu0 %v944
      %v1142 = vpop.f32.mrb[0].mxu0
      %v1143 = vadd.f32 0.0, %v1142
      %v1144 = vpop.f32.mrb[0].mxu0
      %1145 = vmatprep.mubr.f32.mxu0 0.0
      %1146 = vmatmul.mubr.f32.gmra.mrb[0].mxu0 %v947
      %v1147 = vpop.f32.mrb[0].mxu0
      %v1148 = vadd.f32 0.0, %v1147
      %v1149 = vpop.f32.mrb[0].mxu0
      %1150 = vmatprep.mubr.f32.mxu0 0.0
      %1151 = vmatmul.mubr.f32.gmra.mrb[0].mxu0 %v950
      %v1152 = vpop.f32.mrb[0].mxu0
      %v1153 = vadd.f32 0.0, %v1152
      %v1154 = vpop.f32.mrb[0].mxu0
      %1155 = vmatprep.mubr.f32.mxu0 0.0
      %1156 = vmatmul.mubr.f32.gmra.mrb[0].mxu0 %v953
      %v1157 = vpop.f32.mrb[0].mxu0
      %v1158 = vadd.f32 0.0, %v1157
      %v1159 = vpop.f32.mrb[0].mxu0
      %1160 = vmatprep.mubr.f32.mxu0 0.0
      %1161 = vmatmul.mubr.f32.gmra.mrb[0].mxu0 %v956
      %v1162 = vpop.f32.mrb[0].mxu0
      %v1163 = vadd.f32 0.0, %v1162
      %v1164 = vpop.f32.mrb[0].mxu0
      %1165 = vdwg.mxu0
      %v1166 = vadd.f32 %v706, %v1028
      %v1167 = vadd.f32 %v711, %v1033
      %v1168 = vadd.f32 %v716, %v1038
      %v1169 = vadd.f32 %v721, %v1043
      %v1170 = vadd.f32 %v726, %v1048
      %v1171 = vadd.f32 %v731, %v1053
      %v1172 = vadd.f32 %v736, %v1058
      %v1173 = vadd.f32 %v741, %v1063
      %v1174 = vadd.f32 %v746, %v1068
      %v1175 = vadd.f32 %v751, %v1073
      %v1176 = vadd.f32 %v756, %v1078
      %v1177 = vadd.f32 %v761, %v1083
      %v1178 = vadd.f32 %v766, %v1088
      %v1179 = vadd.f32 %v771, %v1093
      %v1180 = vadd.f32 %v776, %v1098
      %v1181 = vadd.f32 %v781, %v1103
      %v1182 = vadd.f32 %v786, %v1108
      %v1183 = vadd.f32 %v791, %v1113
      %v1184 = vadd.f32 %v796, %v1118
      %v1185 = vadd.f32 %v801, %v1123
      %v1186 = vadd.f32 %v806, %v1128
      %v1187 = vadd.f32 %v811, %v1133
      %v1188 = vadd.f32 %v816, %v1138
      %v1189 = vadd.f32 %v821, %v1143
      %v1190 = vadd.f32 %v826, %v1148
      %v1191 = vadd.f32 %v831, %v1153
      %v1192 = vadd.f32 %v836, %v1158
      %v1193 = vadd.f32 %v841, %v1163
      %v1194 = vld [vmem:[%s193 + $0x10] sm:$0xff]
      %v1195 = vld [vmem:[%s193 + $0x18] sm:$0xff]
      %v1196 = vld [vmem:[%s193 + $0x20] sm:$0xff]
      %v1197 = vld [vmem:[%s193 + $0x28] sm:$0xff]
      %v1198 = vld [vmem:[%s193 + $0x30] sm:$0xff]
      %v1199 = vld [vmem:[%s193 + $0x38] sm:$0xff]
      %v1200 = vld [vmem:[%s193 + $0x40] sm:$0xff]
      %v1201 = vld [vmem:[%s193 + $0x48] sm:$0xff]
      %v1202 = vld [vmem:[%s193 + $0x50] sm:$0xff]
      %v1203 = vld [vmem:[%s193 + $0x58] sm:$0xff]
      %v1204 = vld [vmem:[%s193 + $0x60] sm:$0xff]
      %v1205 = vld [vmem:[%s193 + $0x68] sm:$0xff]
      %v1206 = vld [vmem:[%s193 + $0x70] sm:$0xff]
      %v1207 = vld [vmem:[%s193 + $0x78] sm:$0xff]
      %v1208 = vld [vmem:[%s193 + $0x80] sm:$0xff]
      %v1209 = vld [vmem:[%s193 + $0x88] sm:$0xff]
      %v1210 = vld [vmem:[%s193 + $0x90] sm:$0xff]
      %v1211 = vld [vmem:[%s193 + $0x98] sm:$0xff]
      %v1212 = vld [vmem:[%s193 + $0xa0] sm:$0xff]
      %v1213 = vld [vmem:[%s193 + $0xa8] sm:$0xff]
      %v1214 = vld [vmem:[%s193 + $0xb0] sm:$0xff]
      %v1215 = vld [vmem:[%s193 + $0xb8] sm:$0xff]
      %v1216 = vld [vmem:[%s193 + $0xc0] sm:$0xff]
      %v1217 = vld [vmem:[%s193 + $0xc8] sm:$0xff]
      %v1218 = vld [vmem:[%s193 + $0xd0] sm:$0xff]
      %v1219 = vld [vmem:[%s193 + $0xd8] sm:$0xff]
      %v1220 = vld [vmem:[%s193 + $0xe0] sm:$0xff]
      %v1221 = vld [vmem:[%s193 + $0xe8] sm:$0xff]
      %s1222 = scalar_lea.vmem %s1, 12
      %v1223 = vld [vmem:[%s1222] sm:$0x7]
      %v1225 = vsel %vm258, %v1194, 0
      %v1228 = vsel %vm258, %v1195, 0
      %v1231 = vsel %vm258, %v1196, 0
      %v1234 = vsel %vm258, %v1197, 0
      %v1237 = vsel %vm258, %v1198, 0
      %v1240 = vsel %vm258, %v1199, 0
      %v1243 = vsel %vm258, %v1200, 0
      %v1246 = vsel %vm258, %v1201, 0
      %v1249 = vsel %vm258, %v1202, 0
      %v1252 = vsel %vm258, %v1203, 0
      %v1255 = vsel %vm258, %v1204, 0
      %v1258 = vsel %vm258, %v1205, 0
      %v1261 = vsel %vm258, %v1206, 0
      %v1264 = vsel %vm258, %v1207, 0
      %v1267 = vsel %vm258, %v1208, 0
      %v1270 = vsel %vm258, %v1209, 0
      %v1273 = vsel %vm258, %v1210, 0
      %v1276 = vsel %vm258, %v1211, 0
      %v1279 = vsel %vm258, %v1212, 0
      %v1282 = vsel %vm258, %v1213, 0
      %v1285 = vsel %vm258, %v1214, 0
      %v1288 = vsel %vm258, %v1215, 0
      %v1291 = vsel %vm258, %v1216, 0
      %v1294 = vsel %vm258, %v1217, 0
      %v1297 = vsel %vm258, %v1218, 0
      %v1300 = vsel %vm258, %v1219, 0
      %v1303 = vsel %vm258, %v1220, 0
      %v1306 = vsel %vm258, %v1221, 0
      %v1309 = vsel %vm343, %v1223, 0
      %1311 = vmatprep.subr.mxu0 0.0
      %1312 = vmatpush1.msra.mxu0 %v1309
      %1313 = vmatprep.subr.mxu0 0.0
      %1314 = vmatpush1.msra.mxu0 0.0
      %1315 = vmatprep.subr.mxu0 0.0
      %1316 = vmatpush1.msra.mxu0 0.0
      %1317 = vmatprep.subr.mxu0 0.0
      %1318 = vmatpush1.msra.mxu0 0.0
      %1319 = vmatprep.subr.mxu0 0.0
      %1320 = vmatpush1.msra.mxu0 0.0
      %1321 = vmatprep.subr.mxu0 0.0
      %1322 = vmatpush1.msra.mxu0 0.0
      %1323 = vmatprep.subr.mxu0 0.0
      %1324 = vmatpush1.msra.mxu0 0.0
      %1325 = vmatprep.subr.mxu0 0.0
      %1326 = vmatpush1.msra.mxu0 0.0
      %1327 = vmatprep.subr.mxu0 0.0
      %1328 = vmatpush1.msra.mxu0 0.0
      %1329 = vmatprep.subr.mxu0 0.0
      %1330 = vmatpush1.msra.mxu0 0.0
      %1331 = vmatprep.subr.mxu0 0.0
      %1332 = vmatpush1.msra.mxu0 0.0
      %1333 = vmatprep.subr.mxu0 0.0
      %1334 = vmatpush1.msra.mxu0 0.0
      %1335 = vmatprep.subr.mxu0 0.0
      %1336 = vmatpush1.msra.mxu0 0.0
      %1337 = vmatprep.subr.mxu0 0.0
      %1338 = vmatpush1.msra.mxu0 0.0
      %1339 = vmatprep.subr.mxu0 0.0
      %1340 = vmatpush1.msra.mxu0 0.0
      %1341 = vmatprep.subr.mxu0 0.0
      %1342 = vmatpush1.msra.mxu0 0.0
      %1343 = vmatprep.subr.mxu0 0.0
      %1344 = vmatpush1.msra.mxu0 0.0
      %1345 = vmatprep.subr.mxu0 0.0
      %1346 = vmatpush1.msra.mxu0 0.0
      %1347 = vmatprep.subr.mxu0 0.0
      %1348 = vmatpush1.msra.mxu0 0.0
      %1349 = vmatprep.subr.mxu0 0.0
      %1350 = vmatpush1.msra.mxu0 0.0
      %1351 = vmatprep.subr.mxu0 0.0
      %1352 = vmatpush1.msra.mxu0 0.0
      %1353 = vmatprep.subr.mxu0 0.0
      %1354 = vmatpush1.msra.mxu0 0.0
      %1355 = vmatprep.subr.mxu0 0.0
      %1356 = vmatpush1.msra.mxu0 0.0
      %1357 = vmatprep.subr.mxu0 0.0
      %1358 = vmatpush1.msra.mxu0 0.0
      %1359 = vmatprep.subr.mxu0 0.0
      %1360 = vmatpush1.msra.mxu0 0.0
      %1361 = vmatprep.subr.mxu0 0.0
      %1362 = vmatpush1.msra.mxu0 0.0
      %1363 = vmatprep.subr.mxu0 0.0
      %1364 = vmatpush1.msra.mxu0 0.0
      %1365 = vmatprep.subr.mxu0 0.0
      %1366 = vmatpush1.msra.mxu0 0.0
      %1367 = vmatprep.subr.mxu0 0.0
      %1368 = vmatpush1.msra.mxu0 0.0
      %1369 = vmatprep.subr.mxu0 0.0
      %1370 = vmatpush1.msra.mxu0 0.0
      %1371 = vmatprep.subr.mxu0 0.0
      %1372 = vmatpush1.msra.mxu0 0.0
      %1373 = vmatprep.subr.mxu0 0.0
      %1374 = vmatpush1.msra.mxu0 0.0
      %1375 = vmatprep.mubr.f32.mxu0 0.0
      %1376 = vmatmul.mubr.f32.gmra.mrb[0].mxu0 %v1225
      %v1377 = vpop.f32.mrb[0].mxu0
      %v1378 = vadd.f32 0.0, %v1377
      %v1379 = vpop.f32.mrb[0].mxu0
      %1380 = vmatprep.mubr.f32.mxu0 0.0
      %1381 = vmatmul.mubr.f32.gmra.mrb[0].mxu0 %v1228
      %v1382 = vpop.f32.mrb[0].mxu0
      %v1383 = vadd.f32 0.0, %v1382
      %v1384 = vpop.f32.mrb[0].mxu0
      %1385 = vmatprep.mubr.f32.mxu0 0.0
      %1386 = vmatmul.mubr.f32.gmra.mrb[0].mxu0 %v1231
      %v1387 = vpop.f32.mrb[0].mxu0
      %v1388 = vadd.f32 0.0, %v1387
      %v1389 = vpop.f32.mrb[0].mxu0
      %1390 = vmatprep.mubr.f32.mxu0 0.0
      %1391 = vmatmul.mubr.f32.gmra.mrb[0].mxu0 %v1234
      %v1392 = vpop.f32.mrb[0].mxu0
      %v1393 = vadd.f32 0.0, %v1392
      %v1394 = vpop.f32.mrb[0].mxu0
      %1395 = vmatprep.mubr.f32.mxu0 0.0
      %1396 = vmatmul.mubr.f32.gmra.mrb[0].mxu0 %v1237
      %v1397 = vpop.f32.mrb[0].mxu0
      %v1398 = vadd.f32 0.0, %v1397
      %v1399 = vpop.f32.mrb[0].mxu0
      %1400 = vmatprep.mubr.f32.mxu0 0.0
      %1401 = vmatmul.mubr.f32.gmra.mrb[0].mxu0 %v1240
      %v1402 = vpop.f32.mrb[0].mxu0
      %v1403 = vadd.f32 0.0, %v1402
      %v1404 = vpop.f32.mrb[0].mxu0
      %1405 = vmatprep.mubr.f32.mxu0 0.0
      %1406 = vmatmul.mubr.f32.gmra.mrb[0].mxu0 %v1243
      %v1407 = vpop.f32.mrb[0].mxu0
      %v1408 = vadd.f32 0.0, %v1407
      %v1409 = vpop.f32.mrb[0].mxu0
      %1410 = vmatprep.mubr.f32.mxu0 0.0
      %1411 = vmatmul.mubr.f32.gmra.mrb[0].mxu0 %v1246
      %v1412 = vpop.f32.mrb[0].mxu0
      %v1413 = vadd.f32 0.0, %v1412
      %v1414 = vpop.f32.mrb[0].mxu0
      %1415 = vmatprep.mubr.f32.mxu0 0.0
      %1416 = vmatmul.mubr.f32.gmra.mrb[0].mxu0 %v1249
      %v1417 = vpop.f32.mrb[0].mxu0
      %v1418 = vadd.f32 0.0, %v1417
      %v1419 = vpop.f32.mrb[0].mxu0
      %1420 = vmatprep.mubr.f32.mxu0 0.0
      %1421 = vmatmul.mubr.f32.gmra.mrb[0].mxu0 %v1252
      %v1422 = vpop.f32.mrb[0].mxu0
      %v1423 = vadd.f32 0.0, %v1422
      %v1424 = vpop.f32.mrb[0].mxu0
      %1425 = vmatprep.mubr.f32.mxu0 0.0
      %1426 = vmatmul.mubr.f32.gmra.mrb[0].mxu0 %v1255
      %v1427 = vpop.f32.mrb[0].mxu0
      %v1428 = vadd.f32 0.0, %v1427
      %v1429 = vpop.f32.mrb[0].mxu0
      %1430 = vmatprep.mubr.f32.mxu0 0.0
      %1431 = vmatmul.mubr.f32.gmra.mrb[0].mxu0 %v1258
      %v1432 = vpop.f32.mrb[0].mxu0
      %v1433 = vadd.f32 0.0, %v1432
      %v1434 = vpop.f32.mrb[0].mxu0
      %1435 = vmatprep.mubr.f32.mxu0 0.0
      %1436 = vmatmul.mubr.f32.gmra.mrb[0].mxu0 %v1261
      %v1437 = vpop.f32.mrb[0].mxu0
      %v1438 = vadd.f32 0.0, %v1437
      %v1439 = vpop.f32.mrb[0].mxu0
      %1440 = vmatprep.mubr.f32.mxu0 0.0
      %1441 = vmatmul.mubr.f32.gmra.mrb[0].mxu0 %v1264
      %v1442 = vpop.f32.mrb[0].mxu0
      %v1443 = vadd.f32 0.0, %v1442
      %v1444 = vpop.f32.mrb[0].mxu0
      %1445 = vmatprep.mubr.f32.mxu0 0.0
      %1446 = vmatmul.mubr.f32.gmra.mrb[0].mxu0 %v1267
      %v1447 = vpop.f32.mrb[0].mxu0
      %v1448 = vadd.f32 0.0, %v1447
      %v1449 = vpop.f32.mrb[0].mxu0
      %1450 = vmatprep.mubr.f32.mxu0 0.0
      %1451 = vmatmul.mubr.f32.gmra.mrb[0].mxu0 %v1270
      %v1452 = vpop.f32.mrb[0].mxu0
      %v1453 = vadd.f32 0.0, %v1452
      %v1454 = vpop.f32.mrb[0].mxu0
      %1455 = vmatprep.mubr.f32.mxu0 0.0
      %1456 = vmatmul.mubr.f32.gmra.mrb[0].mxu0 %v1273
      %v1457 = vpop.f32.mrb[0].mxu0
      %v1458 = vadd.f32 0.0, %v1457
      %v1459 = vpop.f32.mrb[0].mxu0
      %1460 = vmatprep.mubr.f32.mxu0 0.0
      %1461 = vmatmul.mubr.f32.gmra.mrb[0].mxu0 %v1276
      %v1462 = vpop.f32.mrb[0].mxu0
      %v1463 = vadd.f32 0.0, %v1462
      %v1464 = vpop.f32.mrb[0].mxu0
      %1465 = vmatprep.mubr.f32.mxu0 0.0
      %1466 = vmatmul.mubr.f32.gmra.mrb[0].mxu0 %v1279
      %v1467 = vpop.f32.mrb[0].mxu0
      %v1468 = vadd.f32 0.0, %v1467
      %v1469 = vpop.f32.mrb[0].mxu0
      %1470 = vmatprep.mubr.f32.mxu0 0.0
      %1471 = vmatmul.mubr.f32.gmra.mrb[0].mxu0 %v1282
      %v1472 = vpop.f32.mrb[0].mxu0
      %v1473 = vadd.f32 0.0, %v1472
      %v1474 = vpop.f32.mrb[0].mxu0
      %1475 = vmatprep.mubr.f32.mxu0 0.0
      %1476 = vmatmul.mubr.f32.gmra.mrb[0].mxu0 %v1285
      %v1477 = vpop.f32.mrb[0].mxu0
      %v1478 = vadd.f32 0.0, %v1477
      %v1479 = vpop.f32.mrb[0].mxu0
      %1480 = vmatprep.mubr.f32.mxu0 0.0
      %1481 = vmatmul.mubr.f32.gmra.mrb[0].mxu0 %v1288
      %v1482 = vpop.f32.mrb[0].mxu0
      %v1483 = vadd.f32 0.0, %v1482
      %v1484 = vpop.f32.mrb[0].mxu0
      %1485 = vmatprep.mubr.f32.mxu0 0.0
      %1486 = vmatmul.mubr.f32.gmra.mrb[0].mxu0 %v1291
      %v1487 = vpop.f32.mrb[0].mxu0
      %v1488 = vadd.f32 0.0, %v1487
      %v1489 = vpop.f32.mrb[0].mxu0
      %1490 = vmatprep.mubr.f32.mxu0 0.0
      %1491 = vmatmul.mubr.f32.gmra.mrb[0].mxu0 %v1294
      %v1492 = vpop.f32.mrb[0].mxu0
      %v1493 = vadd.f32 0.0, %v1492
      %v1494 = vpop.f32.mrb[0].mxu0
      %1495 = vmatprep.mubr.f32.mxu0 0.0
      %1496 = vmatmul.mubr.f32.gmra.mrb[0].mxu0 %v1297
      %v1497 = vpop.f32.mrb[0].mxu0
      %v1498 = vadd.f32 0.0, %v1497
      %v1499 = vpop.f32.mrb[0].mxu0
      %1500 = vmatprep.mubr.f32.mxu0 0.0
      %1501 = vmatmul.mubr.f32.gmra.mrb[0].mxu0 %v1300
      %v1502 = vpop.f32.mrb[0].mxu0
      %v1503 = vadd.f32 0.0, %v1502
      %v1504 = vpop.f32.mrb[0].mxu0
      %1505 = vmatprep.mubr.f32.mxu0 0.0
      %1506 = vmatmul.mubr.f32.gmra.mrb[0].mxu0 %v1303
      %v1507 = vpop.f32.mrb[0].mxu0
      %v1508 = vadd.f32 0.0, %v1507
      %v1509 = vpop.f32.mrb[0].mxu0
      %1510 = vmatprep.mubr.f32.mxu0 0.0
      %1511 = vmatmul.mubr.f32.gmra.mrb[0].mxu0 %v1306
      %v1512 = vpop.f32.mrb[0].mxu0
      %v1513 = vadd.f32 0.0, %v1512
      %v1514 = vpop.f32.mrb[0].mxu0
      %1515 = vdwg.mxu0
      %v1516 = vadd.f32 %v1166, %v1378
      %v1517 = vadd.f32 %v1167, %v1383
      %v1518 = vadd.f32 %v1168, %v1388
      %v1519 = vadd.f32 %v1169, %v1393
      %v1520 = vadd.f32 %v1170, %v1398
      %v1521 = vadd.f32 %v1171, %v1403
      %v1522 = vadd.f32 %v1172, %v1408
      %v1523 = vadd.f32 %v1173, %v1413
      %v1524 = vadd.f32 %v1174, %v1418
      %v1525 = vadd.f32 %v1175, %v1423
      %v1526 = vadd.f32 %v1176, %v1428
      %v1527 = vadd.f32 %v1177, %v1433
      %v1528 = vadd.f32 %v1178, %v1438
      %v1529 = vadd.f32 %v1179, %v1443
      %v1530 = vadd.f32 %v1180, %v1448
      %v1531 = vadd.f32 %v1181, %v1453
      %v1532 = vadd.f32 %v1182, %v1458
      %v1533 = vadd.f32 %v1183, %v1463
      %v1534 = vadd.f32 %v1184, %v1468
      %v1535 = vadd.f32 %v1185, %v1473
      %v1536 = vadd.f32 %v1186, %v1478
      %v1537 = vadd.f32 %v1187, %v1483
      %v1538 = vadd.f32 %v1188, %v1488
      %v1539 = vadd.f32 %v1189, %v1493
      %v1540 = vadd.f32 %v1190, %v1498
      %v1541 = vadd.f32 %v1191, %v1503
      %v1542 = vadd.f32 %v1192, %v1508
      %v1543 = vadd.f32 %v1193, %v1513
      %v1544 = vld [vmem:[%s193 + $0x11] sm:$0xff]
      %v1545 = vld [vmem:[%s193 + $0x19] sm:$0xff]
      %v1546 = vld [vmem:[%s193 + $0x21] sm:$0xff]
      %v1547 = vld [vmem:[%s193 + $0x29] sm:$0xff]
      %v1548 = vld [vmem:[%s193 + $0x31] sm:$0xff]
      %v1549 = vld [vmem:[%s193 + $0x39] sm:$0xff]
      %v1550 = vld [vmem:[%s193 + $0x41] sm:$0xff]
      %v1551 = vld [vmem:[%s193 + $0x49] sm:$0xff]
      %v1552 = vld [vmem:[%s193 + $0x51] sm:$0xff]
      %v1553 = vld [vmem:[%s193 + $0x59] sm:$0xff]
      %v1554 = vld [vmem:[%s193 + $0x61] sm:$0xff]
      %v1555 = vld [vmem:[%s193 + $0x69] sm:$0xff]
      %v1556 = vld [vmem:[%s193 + $0x71] sm:$0xff]
      %v1557 = vld [vmem:[%s193 + $0x79] sm:$0xff]
      %v1558 = vld [vmem:[%s193 + $0x81] sm:$0xff]
      %v1559 = vld [vmem:[%s193 + $0x89] sm:$0xff]
      %v1560 = vld [vmem:[%s193 + $0x91] sm:$0xff]
      %v1561 = vld [vmem:[%s193 + $0x99] sm:$0xff]
      %v1562 = vld [vmem:[%s193 + $0xa1] sm:$0xff]
      %v1563 = vld [vmem:[%s193 + $0xa9] sm:$0xff]
      %v1564 = vld [vmem:[%s193 + $0xb1] sm:$0xff]
      %v1565 = vld [vmem:[%s193 + $0xb9] sm:$0xff]
      %v1566 = vld [vmem:[%s193 + $0xc1] sm:$0xff]
      %v1567 = vld [vmem:[%s193 + $0xc9] sm:$0xff]
      %v1568 = vld [vmem:[%s193 + $0xd1] sm:$0xff]
      %v1569 = vld [vmem:[%s193 + $0xd9] sm:$0xff]
      %v1570 = vld [vmem:[%s193 + $0xe1] sm:$0xff]
      %v1571 = vld [vmem:[%s193 + $0xe9] sm:$0xff]
      %s1572 = scalar_lea.vmem %s1, 16
      %v1573 = vld [vmem:[%s1572] sm:$0x7]
      %v1575 = vsel %vm258, %v1544, 0
      %v1578 = vsel %vm258, %v1545, 0
      %v1581 = vsel %vm258, %v1546, 0
      %v1584 = vsel %vm258, %v1547, 0
      %v1587 = vsel %vm258, %v1548, 0
      %v1590 = vsel %vm258, %v1549, 0
      %v1593 = vsel %vm258, %v1550, 0
      %v1596 = vsel %vm258, %v1551, 0
      %v1599 = vsel %vm258, %v1552, 0
      %v1602 = vsel %vm258, %v1553, 0
      %v1605 = vsel %vm258, %v1554, 0
      %v1608 = vsel %vm258, %v1555, 0
      %v1611 = vsel %vm258, %v1556, 0
      %v1614 = vsel %vm258, %v1557, 0
      %v1617 = vsel %vm258, %v1558, 0
      %v1620 = vsel %vm258, %v1559, 0
      %v1623 = vsel %vm258, %v1560, 0
      %v1626 = vsel %vm258, %v1561, 0
      %v1629 = vsel %vm258, %v1562, 0
      %v1632 = vsel %vm258, %v1563, 0
      %v1635 = vsel %vm258, %v1564, 0
      %v1638 = vsel %vm258, %v1565, 0
      %v1641 = vsel %vm258, %v1566, 0
      %v1644 = vsel %vm258, %v1567, 0
      %v1647 = vsel %vm258, %v1568, 0
      %v1650 = vsel %vm258, %v1569, 0
      %v1653 = vsel %vm258, %v1570, 0
      %v1656 = vsel %vm258, %v1571, 0
      %v1659 = vsel %vm343, %v1573, 0
      %1661 = vmatprep.subr.mxu0 0.0
      %1662 = vmatpush1.msra.mxu0 %v1659
      %1663 = vmatprep.subr.mxu0 0.0
      %1664 = vmatpush1.msra.mxu0 0.0
      %1665 = vmatprep.subr.mxu0 0.0
      %1666 = vmatpush1.msra.mxu0 0.0
      %1667 = vmatprep.subr.mxu0 0.0
      %1668 = vmatpush1.msra.mxu0 0.0
      %1669 = vmatprep.subr.mxu0 0.0
      %1670 = vmatpush1.msra.mxu0 0.0
      %1671 = vmatprep.subr.mxu0 0.0
      %1672 = vmatpush1.msra.mxu0 0.0
      %1673 = vmatprep.subr.mxu0 0.0
      %1674 = vmatpush1.msra.mxu0 0.0
      %1675 = vmatprep.subr.mxu0 0.0
      %1676 = vmatpush1.msra.mxu0 0.0
      %1677 = vmatprep.subr.mxu0 0.0
      %1678 = vmatpush1.msra.mxu0 0.0
      %1679 = vmatprep.subr.mxu0 0.0
      %1680 = vmatpush1.msra.mxu0 0.0
      %1681 = vmatprep.subr.mxu0 0.0
      %1682 = vmatpush1.msra.mxu0 0.0
      %1683 = vmatprep.subr.mxu0 0.0
      %1684 = vmatpush1.msra.mxu0 0.0
      %1685 = vmatprep.subr.mxu0 0.0
      %1686 = vmatpush1.msra.mxu0 0.0
      %1687 = vmatprep.subr.mxu0 0.0
      %1688 = vmatpush1.msra.mxu0 0.0
      %1689 = vmatprep.subr.mxu0 0.0
      %1690 = vmatpush1.msra.mxu0 0.0
      %1691 = vmatprep.subr.mxu0 0.0
      %1692 = vmatpush1.msra.mxu0 0.0
      %1693 = vmatprep.subr.mxu0 0.0
      %1694 = vmatpush1.msra.mxu0 0.0
      %1695 = vmatprep.subr.mxu0 0.0
      %1696 = vmatpush1.msra.mxu0 0.0
      %1697 = vmatprep.subr.mxu0 0.0
      %1698 = vmatpush1.msra.mxu0 0.0
      %1699 = vmatprep.subr.mxu0 0.0
      %1700 = vmatpush1.msra.mxu0 0.0
      %1701 = vmatprep.subr.mxu0 0.0
      %1702 = vmatpush1.msra.mxu0 0.0
      %1703 = vmatprep.subr.mxu0 0.0
      %1704 = vmatpush1.msra.mxu0 0.0
      %1705 = vmatprep.subr.mxu0 0.0
      %1706 = vmatpush1.msra.mxu0 0.0
      %1707 = vmatprep.subr.mxu0 0.0
      %1708 = vmatpush1.msra.mxu0 0.0
      %1709 = vmatprep.subr.mxu0 0.0
      %1710 = vmatpush1.msra.mxu0 0.0
      %1711 = vmatprep.subr.mxu0 0.0
      %1712 = vmatpush1.msra.mxu0 0.0
      %1713 = vmatprep.subr.mxu0 0.0
      %1714 = vmatpush1.msra.mxu0 0.0
      %1715 = vmatprep.subr.mxu0 0.0
      %1716 = vmatpush1.msra.mxu0 0.0
      %1717 = vmatprep.subr.mxu0 0.0
      %1718 = vmatpush1.msra.mxu0 0.0
      %1719 = vmatprep.subr.mxu0 0.0
      %1720 = vmatpush1.msra.mxu0 0.0
      %1721 = vmatprep.subr.mxu0 0.0
      %1722 = vmatpush1.msra.mxu0 0.0
      %1723 = vmatprep.subr.mxu0 0.0
      %1724 = vmatpush1.msra.mxu0 0.0
      %1725 = vmatprep.mubr.f32.mxu0 0.0
      %1726 = vmatmul.mubr.f32.gmra.mrb[0].mxu0 %v1575
      %v1727 = vpop.f32.mrb[0].mxu0
      %v1728 = vadd.f32 0.0, %v1727
      %v1729 = vpop.f32.mrb[0].mxu0
      %1730 = vmatprep.mubr.f32.mxu0 0.0
      %1731 = vmatmul.mubr.f32.gmra.mrb[0].mxu0 %v1578
      %v1732 = vpop.f32.mrb[0].mxu0
      %v1733 = vadd.f32 0.0, %v1732
      %v1734 = vpop.f32.mrb[0].mxu0
      %1735 = vmatprep.mubr.f32.mxu0 0.0
      %1736 = vmatmul.mubr.f32.gmra.mrb[0].mxu0 %v1581
      %v1737 = vpop.f32.mrb[0].mxu0
      %v1738 = vadd.f32 0.0, %v1737
      %v1739 = vpop.f32.mrb[0].mxu0
      %1740 = vmatprep.mubr.f32.mxu0 0.0
      %1741 = vmatmul.mubr.f32.gmra.mrb[0].mxu0 %v1584
      %v1742 = vpop.f32.mrb[0].mxu0
      %v1743 = vadd.f32 0.0, %v1742
      %v1744 = vpop.f32.mrb[0].mxu0
      %1745 = vmatprep.mubr.f32.mxu0 0.0
      %1746 = vmatmul.mubr.f32.gmra.mrb[0].mxu0 %v1587
      %v1747 = vpop.f32.mrb[0].mxu0
      %v1748 = vadd.f32 0.0, %v1747
      %v1749 = vpop.f32.mrb[0].mxu0
      %1750 = vmatprep.mubr.f32.mxu0 0.0
      %1751 = vmatmul.mubr.f32.gmra.mrb[0].mxu0 %v1590
      %v1752 = vpop.f32.mrb[0].mxu0
      %v1753 = vadd.f32 0.0, %v1752
      %v1754 = vpop.f32.mrb[0].mxu0
      %1755 = vmatprep.mubr.f32.mxu0 0.0
      %1756 = vmatmul.mubr.f32.gmra.mrb[0].mxu0 %v1593
      %v1757 = vpop.f32.mrb[0].mxu0
      %v1758 = vadd.f32 0.0, %v1757
      %v1759 = vpop.f32.mrb[0].mxu0
      %1760 = vmatprep.mubr.f32.mxu0 0.0
      %1761 = vmatmul.mubr.f32.gmra.mrb[0].mxu0 %v1596
      %v1762 = vpop.f32.mrb[0].mxu0
      %v1763 = vadd.f32 0.0, %v1762
      %v1764 = vpop.f32.mrb[0].mxu0
      %1765 = vmatprep.mubr.f32.mxu0 0.0
      %1766 = vmatmul.mubr.f32.gmra.mrb[0].mxu0 %v1599
      %v1767 = vpop.f32.mrb[0].mxu0
      %v1768 = vadd.f32 0.0, %v1767
      %v1769 = vpop.f32.mrb[0].mxu0
      %1770 = vmatprep.mubr.f32.mxu0 0.0
      %1771 = vmatmul.mubr.f32.gmra.mrb[0].mxu0 %v1602
      %v1772 = vpop.f32.mrb[0].mxu0
      %v1773 = vadd.f32 0.0, %v1772
      %v1774 = vpop.f32.mrb[0].mxu0
      %1775 = vmatprep.mubr.f32.mxu0 0.0
      %1776 = vmatmul.mubr.f32.gmra.mrb[0].mxu0 %v1605
      %v1777 = vpop.f32.mrb[0].mxu0
      %v1778 = vadd.f32 0.0, %v1777
      %v1779 = vpop.f32.mrb[0].mxu0
      %1780 = vmatprep.mubr.f32.mxu0 0.0
      %1781 = vmatmul.mubr.f32.gmra.mrb[0].mxu0 %v1608
      %v1782 = vpop.f32.mrb[0].mxu0
      %v1783 = vadd.f32 0.0, %v1782
      %v1784 = vpop.f32.mrb[0].mxu0
      %1785 = vmatprep.mubr.f32.mxu0 0.0
      %1786 = vmatmul.mubr.f32.gmra.mrb[0].mxu0 %v1611
      %v1787 = vpop.f32.mrb[0].mxu0
      %v1788 = vadd.f32 0.0, %v1787
      %v1789 = vpop.f32.mrb[0].mxu0
      %1790 = vmatprep.mubr.f32.mxu0 0.0
      %1791 = vmatmul.mubr.f32.gmra.mrb[0].mxu0 %v1614
      %v1792 = vpop.f32.mrb[0].mxu0
      %v1793 = vadd.f32 0.0, %v1792
      %v1794 = vpop.f32.mrb[0].mxu0
      %1795 = vmatprep.mubr.f32.mxu0 0.0
      %1796 = vmatmul.mubr.f32.gmra.mrb[0].mxu0 %v1617
      %v1797 = vpop.f32.mrb[0].mxu0
      %v1798 = vadd.f32 0.0, %v1797
      %v1799 = vpop.f32.mrb[0].mxu0
      %1800 = vmatprep.mubr.f32.mxu0 0.0
      %1801 = vmatmul.mubr.f32.gmra.mrb[0].mxu0 %v1620
      %v1802 = vpop.f32.mrb[0].mxu0
      %v1803 = vadd.f32 0.0, %v1802
      %v1804 = vpop.f32.mrb[0].mxu0
      %1805 = vmatprep.mubr.f32.mxu0 0.0
      %1806 = vmatmul.mubr.f32.gmra.mrb[0].mxu0 %v1623
      %v1807 = vpop.f32.mrb[0].mxu0
      %v1808 = vadd.f32 0.0, %v1807
      %v1809 = vpop.f32.mrb[0].mxu0
      %1810 = vmatprep.mubr.f32.mxu0 0.0
      %1811 = vmatmul.mubr.f32.gmra.mrb[0].mxu0 %v1626
      %v1812 = vpop.f32.mrb[0].mxu0
      %v1813 = vadd.f32 0.0, %v1812
      %v1814 = vpop.f32.mrb[0].mxu0
      %1815 = vmatprep.mubr.f32.mxu0 0.0
      %1816 = vmatmul.mubr.f32.gmra.mrb[0].mxu0 %v1629
      %v1817 = vpop.f32.mrb[0].mxu0
      %v1818 = vadd.f32 0.0, %v1817
      %v1819 = vpop.f32.mrb[0].mxu0
      %1820 = vmatprep.mubr.f32.mxu0 0.0
      %1821 = vmatmul.mubr.f32.gmra.mrb[0].mxu0 %v1632
      %v1822 = vpop.f32.mrb[0].mxu0
      %v1823 = vadd.f32 0.0, %v1822
      %v1824 = vpop.f32.mrb[0].mxu0
      %1825 = vmatprep.mubr.f32.mxu0 0.0
      %1826 = vmatmul.mubr.f32.gmra.mrb[0].mxu0 %v1635
      %v1827 = vpop.f32.mrb[0].mxu0
      %v1828 = vadd.f32 0.0, %v1827
      %v1829 = vpop.f32.mrb[0].mxu0
      %1830 = vmatprep.mubr.f32.mxu0 0.0
      %1831 = vmatmul.mubr.f32.gmra.mrb[0].mxu0 %v1638
      %v1832 = vpop.f32.mrb[0].mxu0
      %v1833 = vadd.f32 0.0, %v1832
      %v1834 = vpop.f32.mrb[0].mxu0
      %1835 = vmatprep.mubr.f32.mxu0 0.0
      %1836 = vmatmul.mubr.f32.gmra.mrb[0].mxu0 %v1641
      %v1837 = vpop.f32.mrb[0].mxu0
      %v1838 = vadd.f32 0.0, %v1837
      %v1839 = vpop.f32.mrb[0].mxu0
      %1840 = vmatprep.mubr.f32.mxu0 0.0
      %1841 = vmatmul.mubr.f32.gmra.mrb[0].mxu0 %v1644
      %v1842 = vpop.f32.mrb[0].mxu0
      %v1843 = vadd.f32 0.0, %v1842
      %v1844 = vpop.f32.mrb[0].mxu0
      %1845 = vmatprep.mubr.f32.mxu0 0.0
      %1846 = vmatmul.mubr.f32.gmra.mrb[0].mxu0 %v1647
      %v1847 = vpop.f32.mrb[0].mxu0
      %v1848 = vadd.f32 0.0, %v1847
      %v1849 = vpop.f32.mrb[0].mxu0
      %1850 = vmatprep.mubr.f32.mxu0 0.0
      %1851 = vmatmul.mubr.f32.gmra.mrb[0].mxu0 %v1650
      %v1852 = vpop.f32.mrb[0].mxu0
      %v1853 = vadd.f32 0.0, %v1852
      %v1854 = vpop.f32.mrb[0].mxu0
      %1855 = vmatprep.mubr.f32.mxu0 0.0
      %1856 = vmatmul.mubr.f32.gmra.mrb[0].mxu0 %v1653
      %v1857 = vpop.f32.mrb[0].mxu0
      %v1858 = vadd.f32 0.0, %v1857
      %v1859 = vpop.f32.mrb[0].mxu0
      %1860 = vmatprep.mubr.f32.mxu0 0.0
      %1861 = vmatmul.mubr.f32.gmra.mrb[0].mxu0 %v1656
      %v1862 = vpop.f32.mrb[0].mxu0
      %v1863 = vadd.f32 0.0, %v1862
      %v1864 = vpop.f32.mrb[0].mxu0
      %1865 = vdwg.mxu0
      %v1866 = vadd.f32 %v1516, %v1728
      %v1867 = vadd.f32 %v1517, %v1733
      %v1868 = vadd.f32 %v1518, %v1738
      %v1869 = vadd.f32 %v1519, %v1743
      %v1870 = vadd.f32 %v1520, %v1748
      %v1871 = vadd.f32 %v1521, %v1753
      %v1872 = vadd.f32 %v1522, %v1758
      %v1873 = vadd.f32 %v1523, %v1763
      %v1874 = vadd.f32 %v1524, %v1768
      %v1875 = vadd.f32 %v1525, %v1773
      %v1876 = vadd.f32 %v1526, %v1778
      %v1877 = vadd.f32 %v1527, %v1783
      %v1878 = vadd.f32 %v1528, %v1788
      %v1879 = vadd.f32 %v1529, %v1793
      %v1880 = vadd.f32 %v1530, %v1798
      %v1881 = vadd.f32 %v1531, %v1803
      %v1882 = vadd.f32 %v1532, %v1808
      %v1883 = vadd.f32 %v1533, %v1813
      %v1884 = vadd.f32 %v1534, %v1818
      %v1885 = vadd.f32 %v1535, %v1823
      %v1886 = vadd.f32 %v1536, %v1828
      %v1887 = vadd.f32 %v1537, %v1833
      %v1888 = vadd.f32 %v1538, %v1838
      %v1889 = vadd.f32 %v1539, %v1843
      %v1890 = vadd.f32 %v1540, %v1848
      %v1891 = vadd.f32 %v1541, %v1853
      %v1892 = vadd.f32 %v1542, %v1858
      %v1893 = vadd.f32 %v1543, %v1863
      %v1894 = vld [vmem:[%s193 + $0x12] sm:$0xff]
      %v1895 = vld [vmem:[%s193 + $0x1a] sm:$0xff]
      %v1896 = vld [vmem:[%s193 + $0x22] sm:$0xff]
      %v1897 = vld [vmem:[%s193 + $0x2a] sm:$0xff]
      %v1898 = vld [vmem:[%s193 + $0x32] sm:$0xff]
      %v1899 = vld [vmem:[%s193 + $0x3a] sm:$0xff]
      %v1900 = vld [vmem:[%s193 + $0x42] sm:$0xff]
      %v1901 = vld [vmem:[%s193 + $0x4a] sm:$0xff]
      %v1902 = vld [vmem:[%s193 + $0x52] sm:$0xff]
      %v1903 = vld [vmem:[%s193 + $0x5a] sm:$0xff]
      %v1904 = vld [vmem:[%s193 + $0x62] sm:$0xff]
      %v1905 = vld [vmem:[%s193 + $0x6a] sm:$0xff]
      %v1906 = vld [vmem:[%s193 + $0x72] sm:$0xff]
      %v1907 = vld [vmem:[%s193 + $0x7a] sm:$0xff]
      %v1908 = vld [vmem:[%s193 + $0x82] sm:$0xff]
      %v1909 = vld [vmem:[%s193 + $0x8a] sm:$0xff]
      %v1910 = vld [vmem:[%s193 + $0x92] sm:$0xff]
      %v1911 = vld [vmem:[%s193 + $0x9a] sm:$0xff]
      %v1912 = vld [vmem:[%s193 + $0xa2] sm:$0xff]
      %v1913 = vld [vmem:[%s193 + $0xaa] sm:$0xff]
      %v1914 = vld [vmem:[%s193 + $0xb2] sm:$0xff]
      %v1915 = vld [vmem:[%s193 + $0xba] sm:$0xff]
      %v1916 = vld [vmem:[%s193 + $0xc2] sm:$0xff]
      %v1917 = vld [vmem:[%s193 + $0xca] sm:$0xff]
      %v1918 = vld [vmem:[%s193 + $0xd2] sm:$0xff]
      %v1919 = vld [vmem:[%s193 + $0xda] sm:$0xff]
      %v1920 = vld [vmem:[%s193 + $0xe2] sm:$0xff]
      %v1921 = vld [vmem:[%s193 + $0xea] sm:$0xff]
      %s1922 = scalar_lea.vmem %s1, 20
      %v1923 = vld [vmem:[%s1922] sm:$0x7]
      %v1925 = vsel %vm258, %v1894, 0
      %v1928 = vsel %vm258, %v1895, 0
      %v1931 = vsel %vm258, %v1896, 0
      %v1934 = vsel %vm258, %v1897, 0
      %v1937 = vsel %vm258, %v1898, 0
      %v1940 = vsel %vm258, %v1899, 0
      %v1943 = vsel %vm258, %v1900, 0
      %v1946 = vsel %vm258, %v1901, 0
      %v1949 = vsel %vm258, %v1902, 0
      %v1952 = vsel %vm258, %v1903, 0
      %v1955 = vsel %vm258, %v1904, 0
      %v1958 = vsel %vm258, %v1905, 0
      %v1961 = vsel %vm258, %v1906, 0
      %v1964 = vsel %vm258, %v1907, 0
      %v1967 = vsel %vm258, %v1908, 0
      %v1970 = vsel %vm258, %v1909, 0
      %v1973 = vsel %vm258, %v1910, 0
      %v1976 = vsel %vm258, %v1911, 0
      %v1979 = vsel %vm258, %v1912, 0
      %v1982 = vsel %vm258, %v1913, 0
      %v1985 = vsel %vm258, %v1914, 0
      %v1988 = vsel %vm258, %v1915, 0
      %v1991 = vsel %vm258, %v1916, 0
      %v1994 = vsel %vm258, %v1917, 0
      %v1997 = vsel %vm258, %v1918, 0
      %v2000 = vsel %vm258, %v1919, 0
      %v2003 = vsel %vm258, %v1920, 0
      %v2006 = vsel %vm258, %v1921, 0
      %v2009 = vsel %vm343, %v1923, 0
      %2011 = vmatprep.subr.mxu0 0.0
      %2012 = vmatpush1.msra.mxu0 %v2009
      %2013 = vmatprep.subr.mxu0 0.0
      %2014 = vmatpush1.msra.mxu0 0.0
      %2015 = vmatprep.subr.mxu0 0.0
      %2016 = vmatpush1.msra.mxu0 0.0
      %2017 = vmatprep.subr.mxu0 0.0
      %2018 = vmatpush1.msra.mxu0 0.0
      %2019 = vmatprep.subr.mxu0 0.0
      %2020 = vmatpush1.msra.mxu0 0.0
      %2021 = vmatprep.subr.mxu0 0.0
      %2022 = vmatpush1.msra.mxu0 0.0
      %2023 = vmatprep.subr.mxu0 0.0
      %2024 = vmatpush1.msra.mxu0 0.0
      %2025 = vmatprep.subr.mxu0 0.0
      %2026 = vmatpush1.msra.mxu0 0.0
      %2027 = vmatprep.subr.mxu0 0.0
      %2028 = vmatpush1.msra.mxu0 0.0
      %2029 = vmatprep.subr.mxu0 0.0
      %2030 = vmatpush1.msra.mxu0 0.0
      %2031 = vmatprep.subr.mxu0 0.0
      %2032 = vmatpush1.msra.mxu0 0.0
      %2033 = vmatprep.subr.mxu0 0.0
      %2034 = vmatpush1.msra.mxu0 0.0
      %2035 = vmatprep.subr.mxu0 0.0
      %2036 = vmatpush1.msra.mxu0 0.0
      %2037 = vmatprep.subr.mxu0 0.0
      %2038 = vmatpush1.msra.mxu0 0.0
      %2039 = vmatprep.subr.mxu0 0.0
      %2040 = vmatpush1.msra.mxu0 0.0
      %2041 = vmatprep.subr.mxu0 0.0
      %2042 = vmatpush1.msra.mxu0 0.0
      %2043 = vmatprep.subr.mxu0 0.0
      %2044 = vmatpush1.msra.mxu0 0.0
      %2045 = vmatprep.subr.mxu0 0.0
      %2046 = vmatpush1.msra.mxu0 0.0
      %2047 = vmatprep.subr.mxu0 0.0
      %2048 = vmatpush1.msra.mxu0 0.0
      %2049 = vmatprep.subr.mxu0 0.0
      %2050 = vmatpush1.msra.mxu0 0.0
      %2051 = vmatprep.subr.mxu0 0.0
      %2052 = vmatpush1.msra.mxu0 0.0
      %2053 = vmatprep.subr.mxu0 0.0
      %2054 = vmatpush1.msra.mxu0 0.0
      %2055 = vmatprep.subr.mxu0 0.0
      %2056 = vmatpush1.msra.mxu0 0.0
      %2057 = vmatprep.subr.mxu0 0.0
      %2058 = vmatpush1.msra.mxu0 0.0
      %2059 = vmatprep.subr.mxu0 0.0
      %2060 = vmatpush1.msra.mxu0 0.0
      %2061 = vmatprep.subr.mxu0 0.0
      %2062 = vmatpush1.msra.mxu0 0.0
      %2063 = vmatprep.subr.mxu0 0.0
      %2064 = vmatpush1.msra.mxu0 0.0
      %2065 = vmatprep.subr.mxu0 0.0
      %2066 = vmatpush1.msra.mxu0 0.0
      %2067 = vmatprep.subr.mxu0 0.0
      %2068 = vmatpush1.msra.mxu0 0.0
      %2069 = vmatprep.subr.mxu0 0.0
      %2070 = vmatpush1.msra.mxu0 0.0
      %2071 = vmatprep.subr.mxu0 0.0
      %2072 = vmatpush1.msra.mxu0 0.0
      %2073 = vmatprep.subr.mxu0 0.0
      %2074 = vmatpush1.msra.mxu0 0.0
      %2075 = vmatprep.mubr.f32.mxu0 0.0
      %2076 = vmatmul.mubr.f32.gmra.mrb[0].mxu0 %v1925
      %v2077 = vpop.f32.mrb[0].mxu0
      %v2078 = vadd.f32 0.0, %v2077
      %v2079 = vpop.f32.mrb[0].mxu0
      %2080 = vmatprep.mubr.f32.mxu0 0.0
      %2081 = vmatmul.mubr.f32.gmra.mrb[0].mxu0 %v1928
      %v2082 = vpop.f32.mrb[0].mxu0
      %v2083 = vadd.f32 0.0, %v2082
      %v2084 = vpop.f32.mrb[0].mxu0
      %2085 = vmatprep.mubr.f32.mxu0 0.0
      %2086 = vmatmul.mubr.f32.gmra.mrb[0].mxu0 %v1931
      %v2087 = vpop.f32.mrb[0].mxu0
      %v2088 = vadd.f32 0.0, %v2087
      %v2089 = vpop.f32.mrb[0].mxu0
      %2090 = vmatprep.mubr.f32.mxu0 0.0
      %2091 = vmatmul.mubr.f32.gmra.mrb[0].mxu0 %v1934
      %v2092 = vpop.f32.mrb[0].mxu0
      %v2093 = vadd.f32 0.0, %v2092
      %v2094 = vpop.f32.mrb[0].mxu0
      %2095 = vmatprep.mubr.f32.mxu0 0.0
      %2096 = vmatmul.mubr.f32.gmra.mrb[0].mxu0 %v1937
      %v2097 = vpop.f32.mrb[0].mxu0
      %v2098 = vadd.f32 0.0, %v2097
      %v2099 = vpop.f32.mrb[0].mxu0
      %2100 = vmatprep.mubr.f32.mxu0 0.0
      %2101 = vmatmul.mubr.f32.gmra.mrb[0].mxu0 %v1940
      %v2102 = vpop.f32.mrb[0].mxu0
      %v2103 = vadd.f32 0.0, %v2102
      %v2104 = vpop.f32.mrb[0].mxu0
      %2105 = vmatprep.mubr.f32.mxu0 0.0
      %2106 = vmatmul.mubr.f32.gmra.mrb[0].mxu0 %v1943
      %v2107 = vpop.f32.mrb[0].mxu0
      %v2108 = vadd.f32 0.0, %v2107
      %v2109 = vpop.f32.mrb[0].mxu0
      %2110 = vmatprep.mubr.f32.mxu0 0.0
      %2111 = vmatmul.mubr.f32.gmra.mrb[0].mxu0 %v1946
      %v2112 = vpop.f32.mrb[0].mxu0
      %v2113 = vadd.f32 0.0, %v2112
      %v2114 = vpop.f32.mrb[0].mxu0
      %2115 = vmatprep.mubr.f32.mxu0 0.0
      %2116 = vmatmul.mubr.f32.gmra.mrb[0].mxu0 %v1949
      %v2117 = vpop.f32.mrb[0].mxu0
      %v2118 = vadd.f32 0.0, %v2117
      %v2119 = vpop.f32.mrb[0].mxu0
      %2120 = vmatprep.mubr.f32.mxu0 0.0
      %2121 = vmatmul.mubr.f32.gmra.mrb[0].mxu0 %v1952
      %v2122 = vpop.f32.mrb[0].mxu0
      %v2123 = vadd.f32 0.0, %v2122
      %v2124 = vpop.f32.mrb[0].mxu0
      %2125 = vmatprep.mubr.f32.mxu0 0.0
      %2126 = vmatmul.mubr.f32.gmra.mrb[0].mxu0 %v1955
      %v2127 = vpop.f32.mrb[0].mxu0
      %v2128 = vadd.f32 0.0, %v2127
      %v2129 = vpop.f32.mrb[0].mxu0
      %2130 = vmatprep.mubr.f32.mxu0 0.0
      %2131 = vmatmul.mubr.f32.gmra.mrb[0].mxu0 %v1958
      %v2132 = vpop.f32.mrb[0].mxu0
      %v2133 = vadd.f32 0.0, %v2132
      %v2134 = vpop.f32.mrb[0].mxu0
      %2135 = vmatprep.mubr.f32.mxu0 0.0
      %2136 = vmatmul.mubr.f32.gmra.mrb[0].mxu0 %v1961
      %v2137 = vpop.f32.mrb[0].mxu0
      %v2138 = vadd.f32 0.0, %v2137
      %v2139 = vpop.f32.mrb[0].mxu0
      %2140 = vmatprep.mubr.f32.mxu0 0.0
      %2141 = vmatmul.mubr.f32.gmra.mrb[0].mxu0 %v1964
      %v2142 = vpop.f32.mrb[0].mxu0
      %v2143 = vadd.f32 0.0, %v2142
      %v2144 = vpop.f32.mrb[0].mxu0
      %2145 = vmatprep.mubr.f32.mxu0 0.0
      %2146 = vmatmul.mubr.f32.gmra.mrb[0].mxu0 %v1967
      %v2147 = vpop.f32.mrb[0].mxu0
      %v2148 = vadd.f32 0.0, %v2147
      %v2149 = vpop.f32.mrb[0].mxu0
      %2150 = vmatprep.mubr.f32.mxu0 0.0
      %2151 = vmatmul.mubr.f32.gmra.mrb[0].mxu0 %v1970
      %v2152 = vpop.f32.mrb[0].mxu0
      %v2153 = vadd.f32 0.0, %v2152
      %v2154 = vpop.f32.mrb[0].mxu0
      %2155 = vmatprep.mubr.f32.mxu0 0.0
      %2156 = vmatmul.mubr.f32.gmra.mrb[0].mxu0 %v1973
      %v2157 = vpop.f32.mrb[0].mxu0
      %v2158 = vadd.f32 0.0, %v2157
      %v2159 = vpop.f32.mrb[0].mxu0
      %2160 = vmatprep.mubr.f32.mxu0 0.0
      %2161 = vmatmul.mubr.f32.gmra.mrb[0].mxu0 %v1976
      %v2162 = vpop.f32.mrb[0].mxu0
      %v2163 = vadd.f32 0.0, %v2162
      %v2164 = vpop.f32.mrb[0].mxu0
      %2165 = vmatprep.mubr.f32.mxu0 0.0
      %2166 = vmatmul.mubr.f32.gmra.mrb[0].mxu0 %v1979
      %v2167 = vpop.f32.mrb[0].mxu0
      %v2168 = vadd.f32 0.0, %v2167
      %v2169 = vpop.f32.mrb[0].mxu0
      %2170 = vmatprep.mubr.f32.mxu0 0.0
      %2171 = vmatmul.mubr.f32.gmra.mrb[0].mxu0 %v1982
      %v2172 = vpop.f32.mrb[0].mxu0
      %v2173 = vadd.f32 0.0, %v2172
      %v2174 = vpop.f32.mrb[0].mxu0
      %2175 = vmatprep.mubr.f32.mxu0 0.0
      %2176 = vmatmul.mubr.f32.gmra.mrb[0].mxu0 %v1985
      %v2177 = vpop.f32.mrb[0].mxu0
      %v2178 = vadd.f32 0.0, %v2177
      %v2179 = vpop.f32.mrb[0].mxu0
      %2180 = vmatprep.mubr.f32.mxu0 0.0
      %2181 = vmatmul.mubr.f32.gmra.mrb[0].mxu0 %v1988
      %v2182 = vpop.f32.mrb[0].mxu0
      %v2183 = vadd.f32 0.0, %v2182
      %v2184 = vpop.f32.mrb[0].mxu0
      %2185 = vmatprep.mubr.f32.mxu0 0.0
      %2186 = vmatmul.mubr.f32.gmra.mrb[0].mxu0 %v1991
      %v2187 = vpop.f32.mrb[0].mxu0
      %v2188 = vadd.f32 0.0, %v2187
      %v2189 = vpop.f32.mrb[0].mxu0
      %2190 = vmatprep.mubr.f32.mxu0 0.0
      %2191 = vmatmul.mubr.f32.gmra.mrb[0].mxu0 %v1994
      %v2192 = vpop.f32.mrb[0].mxu0
      %v2193 = vadd.f32 0.0, %v2192
      %v2194 = vpop.f32.mrb[0].mxu0
      %2195 = vmatprep.mubr.f32.mxu0 0.0
      %2196 = vmatmul.mubr.f32.gmra.mrb[0].mxu0 %v1997
      %v2197 = vpop.f32.mrb[0].mxu0
      %v2198 = vadd.f32 0.0, %v2197
      %v2199 = vpop.f32.mrb[0].mxu0
      %2200 = vmatprep.mubr.f32.mxu0 0.0
      %2201 = vmatmul.mubr.f32.gmra.mrb[0].mxu0 %v2000
      %v2202 = vpop.f32.mrb[0].mxu0
      %v2203 = vadd.f32 0.0, %v2202
      %v2204 = vpop.f32.mrb[0].mxu0
      %2205 = vmatprep.mubr.f32.mxu0 0.0
      %2206 = vmatmul.mubr.f32.gmra.mrb[0].mxu0 %v2003
      %v2207 = vpop.f32.mrb[0].mxu0
      %v2208 = vadd.f32 0.0, %v2207
      %v2209 = vpop.f32.mrb[0].mxu0
      %2210 = vmatprep.mubr.f32.mxu0 0.0
      %2211 = vmatmul.mubr.f32.gmra.mrb[0].mxu0 %v2006
      %v2212 = vpop.f32.mrb[0].mxu0
      %v2213 = vadd.f32 0.0, %v2212
      %v2214 = vpop.f32.mrb[0].mxu0
      %2215 = vdwg.mxu0
      %v2216 = vadd.f32 %v1866, %v2078
      %v2217 = vadd.f32 %v1867, %v2083
      %v2218 = vadd.f32 %v1868, %v2088
      %v2219 = vadd.f32 %v1869, %v2093
      %v2220 = vadd.f32 %v1870, %v2098
      %v2221 = vadd.f32 %v1871, %v2103
      %v2222 = vadd.f32 %v1872, %v2108
      %v2223 = vadd.f32 %v1873, %v2113
      %v2224 = vadd.f32 %v1874, %v2118
      %v2225 = vadd.f32 %v1875, %v2123
      %v2226 = vadd.f32 %v1876, %v2128
      %v2227 = vadd.f32 %v1877, %v2133
      %v2228 = vadd.f32 %v1878, %v2138
      %v2229 = vadd.f32 %v1879, %v2143
      %v2230 = vadd.f32 %v1880, %v2148
      %v2231 = vadd.f32 %v1881, %v2153
      %v2232 = vadd.f32 %v1882, %v2158
      %v2233 = vadd.f32 %v1883, %v2163
      %v2234 = vadd.f32 %v1884, %v2168
      %v2235 = vadd.f32 %v1885, %v2173
      %v2236 = vadd.f32 %v1886, %v2178
      %v2237 = vadd.f32 %v1887, %v2183
      %v2238 = vadd.f32 %v1888, %v2188
      %v2239 = vadd.f32 %v1889, %v2193
      %v2240 = vadd.f32 %v1890, %v2198
      %v2241 = vadd.f32 %v1891, %v2203
      %v2242 = vadd.f32 %v1892, %v2208
      %v2243 = vadd.f32 %v1893, %v2213
      %v2244 = vld [vmem:[%s193 + $0x20] sm:$0xff]
      %v2245 = vld [vmem:[%s193 + $0x28] sm:$0xff]
      %v2246 = vld [vmem:[%s193 + $0x30] sm:$0xff]
      %v2247 = vld [vmem:[%s193 + $0x38] sm:$0xff]
      %v2248 = vld [vmem:[%s193 + $0x40] sm:$0xff]
      %v2249 = vld [vmem:[%s193 + $0x48] sm:$0xff]
      %v2250 = vld [vmem:[%s193 + $0x50] sm:$0xff]
      %v2251 = vld [vmem:[%s193 + $0x58] sm:$0xff]
      %v2252 = vld [vmem:[%s193 + $0x60] sm:$0xff]
      %v2253 = vld [vmem:[%s193 + $0x68] sm:$0xff]
      %v2254 = vld [vmem:[%s193 + $0x70] sm:$0xff]
      %v2255 = vld [vmem:[%s193 + $0x78] sm:$0xff]
      %v2256 = vld [vmem:[%s193 + $0x80] sm:$0xff]
      %v2257 = vld [vmem:[%s193 + $0x88] sm:$0xff]
      %v2258 = vld [vmem:[%s193 + $0x90] sm:$0xff]
      %v2259 = vld [vmem:[%s193 + $0x98] sm:$0xff]
      %v2260 = vld [vmem:[%s193 + $0xa0] sm:$0xff]
      %v2261 = vld [vmem:[%s193 + $0xa8] sm:$0xff]
      %v2262 = vld [vmem:[%s193 + $0xb0] sm:$0xff]
      %v2263 = vld [vmem:[%s193 + $0xb8] sm:$0xff]
      %v2264 = vld [vmem:[%s193 + $0xc0] sm:$0xff]
      %v2265 = vld [vmem:[%s193 + $0xc8] sm:$0xff]
      %v2266 = vld [vmem:[%s193 + $0xd0] sm:$0xff]
      %v2267 = vld [vmem:[%s193 + $0xd8] sm:$0xff]
      %v2268 = vld [vmem:[%s193 + $0xe0] sm:$0xff]
      %v2269 = vld [vmem:[%s193 + $0xe8] sm:$0xff]
      %v2270 = vld [vmem:[%s193 + $0xf0] sm:$0xff]
      %v2271 = vld [vmem:[%s193 + $0xf8] sm:$0xff]
      %s2272 = scalar_lea.vmem %s1, 24
      %v2273 = vld [vmem:[%s2272] sm:$0x7]
      %v2275 = vsel %vm258, %v2244, 0
      %v2278 = vsel %vm258, %v2245, 0
      %v2281 = vsel %vm258, %v2246, 0
      %v2284 = vsel %vm258, %v2247, 0
      %v2287 = vsel %vm258, %v2248, 0
      %v2290 = vsel %vm258, %v2249, 0
      %v2293 = vsel %vm258, %v2250, 0
      %v2296 = vsel %vm258, %v2251, 0
      %v2299 = vsel %vm258, %v2252, 0
      %v2302 = vsel %vm258, %v2253, 0
      %v2305 = vsel %vm258, %v2254, 0
      %v2308 = vsel %vm258, %v2255, 0
      %v2311 = vsel %vm258, %v2256, 0
      %v2314 = vsel %vm258, %v2257, 0
      %v2317 = vsel %vm258, %v2258, 0
      %v2320 = vsel %vm258, %v2259, 0
      %v2323 = vsel %vm258, %v2260, 0
      %v2326 = vsel %vm258, %v2261, 0
      %v2329 = vsel %vm258, %v2262, 0
      %v2332 = vsel %vm258, %v2263, 0
      %v2335 = vsel %vm258, %v2264, 0
      %v2338 = vsel %vm258, %v2265, 0
      %v2341 = vsel %vm258, %v2266, 0
      %v2344 = vsel %vm258, %v2267, 0
      %v2347 = vsel %vm258, %v2268, 0
      %v2350 = vsel %vm258, %v2269, 0
      %v2353 = vsel %vm258, %v2270, 0
      %v2356 = vsel %vm258, %v2271, 0
      %v2359 = vsel %vm343, %v2273, 0
      %2361 = vmatprep.subr.mxu0 0.0
      %2362 = vmatpush1.msra.mxu0 %v2359
      %2363 = vmatprep.subr.mxu0 0.0
      %2364 = vmatpush1.msra.mxu0 0.0
      %2365 = vmatprep.subr.mxu0 0.0
      %2366 = vmatpush1.msra.mxu0 0.0
      %2367 = vmatprep.subr.mxu0 0.0
      %2368 = vmatpush1.msra.mxu0 0.0
      %2369 = vmatprep.subr.mxu0 0.0
      %2370 = vmatpush1.msra.mxu0 0.0
      %2371 = vmatprep.subr.mxu0 0.0
      %2372 = vmatpush1.msra.mxu0 0.0
      %2373 = vmatprep.subr.mxu0 0.0
      %2374 = vmatpush1.msra.mxu0 0.0
      %2375 = vmatprep.subr.mxu0 0.0
      %2376 = vmatpush1.msra.mxu0 0.0
      %2377 = vmatprep.subr.mxu0 0.0
      %2378 = vmatpush1.msra.mxu0 0.0
      %2379 = vmatprep.subr.mxu0 0.0
      %2380 = vmatpush1.msra.mxu0 0.0
      %2381 = vmatprep.subr.mxu0 0.0
      %2382 = vmatpush1.msra.mxu0 0.0
      %2383 = vmatprep.subr.mxu0 0.0
      %2384 = vmatpush1.msra.mxu0 0.0
      %2385 = vmatprep.subr.mxu0 0.0
      %2386 = vmatpush1.msra.mxu0 0.0
      %2387 = vmatprep.subr.mxu0 0.0
      %2388 = vmatpush1.msra.mxu0 0.0
      %2389 = vmatprep.subr.mxu0 0.0
      %2390 = vmatpush1.msra.mxu0 0.0
      %2391 = vmatprep.subr.mxu0 0.0
      %2392 = vmatpush1.msra.mxu0 0.0
      %2393 = vmatprep.subr.mxu0 0.0
      %2394 = vmatpush1.msra.mxu0 0.0
      %2395 = vmatprep.subr.mxu0 0.0
      %2396 = vmatpush1.msra.mxu0 0.0
      %2397 = vmatprep.subr.mxu0 0.0
      %2398 = vmatpush1.msra.mxu0 0.0
      %2399 = vmatprep.subr.mxu0 0.0
      %2400 = vmatpush1.msra.mxu0 0.0
      %2401 = vmatprep.subr.mxu0 0.0
      %2402 = vmatpush1.msra.mxu0 0.0
      %2403 = vmatprep.subr.mxu0 0.0
      %2404 = vmatpush1.msra.mxu0 0.0
      %2405 = vmatprep.subr.mxu0 0.0
      %2406 = vmatpush1.msra.mxu0 0.0
      %2407 = vmatprep.subr.mxu0 0.0
      %2408 = vmatpush1.msra.mxu0 0.0
      %2409 = vmatprep.subr.mxu0 0.0
      %2410 = vmatpush1.msra.mxu0 0.0
      %2411 = vmatprep.subr.mxu0 0.0
      %2412 = vmatpush1.msra.mxu0 0.0
      %2413 = vmatprep.subr.mxu0 0.0
      %2414 = vmatpush1.msra.mxu0 0.0
      %2415 = vmatprep.subr.mxu0 0.0
      %2416 = vmatpush1.msra.mxu0 0.0
      %2417 = vmatprep.subr.mxu0 0.0
      %2418 = vmatpush1.msra.mxu0 0.0
      %2419 = vmatprep.subr.mxu0 0.0
      %2420 = vmatpush1.msra.mxu0 0.0
      %2421 = vmatprep.subr.mxu0 0.0
      %2422 = vmatpush1.msra.mxu0 0.0
      %2423 = vmatprep.subr.mxu0 0.0
      %2424 = vmatpush1.msra.mxu0 0.0
      %2425 = vmatprep.mubr.f32.mxu0 0.0
      %2426 = vmatmul.mubr.f32.gmra.mrb[0].mxu0 %v2275
      %v2427 = vpop.f32.mrb[0].mxu0
      %v2428 = vadd.f32 0.0, %v2427
      %v2429 = vpop.f32.mrb[0].mxu0
      %2430 = vmatprep.mubr.f32.mxu0 0.0
      %2431 = vmatmul.mubr.f32.gmra.mrb[0].mxu0 %v2278
      %v2432 = vpop.f32.mrb[0].mxu0
      %v2433 = vadd.f32 0.0, %v2432
      %v2434 = vpop.f32.mrb[0].mxu0
      %2435 = vmatprep.mubr.f32.mxu0 0.0
      %2436 = vmatmul.mubr.f32.gmra.mrb[0].mxu0 %v2281
      %v2437 = vpop.f32.mrb[0].mxu0
      %v2438 = vadd.f32 0.0, %v2437
      %v2439 = vpop.f32.mrb[0].mxu0
      %2440 = vmatprep.mubr.f32.mxu0 0.0
      %2441 = vmatmul.mubr.f32.gmra.mrb[0].mxu0 %v2284
      %v2442 = vpop.f32.mrb[0].mxu0
      %v2443 = vadd.f32 0.0, %v2442
      %v2444 = vpop.f32.mrb[0].mxu0
      %2445 = vmatprep.mubr.f32.mxu0 0.0
      %2446 = vmatmul.mubr.f32.gmra.mrb[0].mxu0 %v2287
      %v2447 = vpop.f32.mrb[0].mxu0
      %v2448 = vadd.f32 0.0, %v2447
      %v2449 = vpop.f32.mrb[0].mxu0
      %2450 = vmatprep.mubr.f32.mxu0 0.0
      %2451 = vmatmul.mubr.f32.gmra.mrb[0].mxu0 %v2290
      %v2452 = vpop.f32.mrb[0].mxu0
      %v2453 = vadd.f32 0.0, %v2452
      %v2454 = vpop.f32.mrb[0].mxu0
      %2455 = vmatprep.mubr.f32.mxu0 0.0
      %2456 = vmatmul.mubr.f32.gmra.mrb[0].mxu0 %v2293
      %v2457 = vpop.f32.mrb[0].mxu0
      %v2458 = vadd.f32 0.0, %v2457
      %v2459 = vpop.f32.mrb[0].mxu0
      %2460 = vmatprep.mubr.f32.mxu0 0.0
      %2461 = vmatmul.mubr.f32.gmra.mrb[0].mxu0 %v2296
      %v2462 = vpop.f32.mrb[0].mxu0
      %v2463 = vadd.f32 0.0, %v2462
      %v2464 = vpop.f32.mrb[0].mxu0
      %2465 = vmatprep.mubr.f32.mxu0 0.0
      %2466 = vmatmul.mubr.f32.gmra.mrb[0].mxu0 %v2299
      %v2467 = vpop.f32.mrb[0].mxu0
      %v2468 = vadd.f32 0.0, %v2467
      %v2469 = vpop.f32.mrb[0].mxu0
      %2470 = vmatprep.mubr.f32.mxu0 0.0
      %2471 = vmatmul.mubr.f32.gmra.mrb[0].mxu0 %v2302
      %v2472 = vpop.f32.mrb[0].mxu0
      %v2473 = vadd.f32 0.0, %v2472
      %v2474 = vpop.f32.mrb[0].mxu0
      %2475 = vmatprep.mubr.f32.mxu0 0.0
      %2476 = vmatmul.mubr.f32.gmra.mrb[0].mxu0 %v2305
      %v2477 = vpop.f32.mrb[0].mxu0
      %v2478 = vadd.f32 0.0, %v2477
      %v2479 = vpop.f32.mrb[0].mxu0
      %2480 = vmatprep.mubr.f32.mxu0 0.0
      %2481 = vmatmul.mubr.f32.gmra.mrb[0].mxu0 %v2308
      %v2482 = vpop.f32.mrb[0].mxu0
      %v2483 = vadd.f32 0.0, %v2482
      %v2484 = vpop.f32.mrb[0].mxu0
      %2485 = vmatprep.mubr.f32.mxu0 0.0
      %2486 = vmatmul.mubr.f32.gmra.mrb[0].mxu0 %v2311
      %v2487 = vpop.f32.mrb[0].mxu0
      %v2488 = vadd.f32 0.0, %v2487
      %v2489 = vpop.f32.mrb[0].mxu0
      %2490 = vmatprep.mubr.f32.mxu0 0.0
      %2491 = vmatmul.mubr.f32.gmra.mrb[0].mxu0 %v2314
      %v2492 = vpop.f32.mrb[0].mxu0
      %v2493 = vadd.f32 0.0, %v2492
      %v2494 = vpop.f32.mrb[0].mxu0
      %2495 = vmatprep.mubr.f32.mxu0 0.0
      %2496 = vmatmul.mubr.f32.gmra.mrb[0].mxu0 %v2317
      %v2497 = vpop.f32.mrb[0].mxu0
      %v2498 = vadd.f32 0.0, %v2497
      %v2499 = vpop.f32.mrb[0].mxu0
      %2500 = vmatprep.mubr.f32.mxu0 0.0
      %2501 = vmatmul.mubr.f32.gmra.mrb[0].mxu0 %v2320
      %v2502 = vpop.f32.mrb[0].mxu0
      %v2503 = vadd.f32 0.0, %v2502
      %v2504 = vpop.f32.mrb[0].mxu0
      %2505 = vmatprep.mubr.f32.mxu0 0.0
      %2506 = vmatmul.mubr.f32.gmra.mrb[0].mxu0 %v2323
      %v2507 = vpop.f32.mrb[0].mxu0
      %v2508 = vadd.f32 0.0, %v2507
      %v2509 = vpop.f32.mrb[0].mxu0
      %2510 = vmatprep.mubr.f32.mxu0 0.0
      %2511 = vmatmul.mubr.f32.gmra.mrb[0].mxu0 %v2326
      %v2512 = vpop.f32.mrb[0].mxu0
      %v2513 = vadd.f32 0.0, %v2512
      %v2514 = vpop.f32.mrb[0].mxu0
      %2515 = vmatprep.mubr.f32.mxu0 0.0
      %2516 = vmatmul.mubr.f32.gmra.mrb[0].mxu0 %v2329
      %v2517 = vpop.f32.mrb[0].mxu0
      %v2518 = vadd.f32 0.0, %v2517
      %v2519 = vpop.f32.mrb[0].mxu0
      %2520 = vmatprep.mubr.f32.mxu0 0.0
      %2521 = vmatmul.mubr.f32.gmra.mrb[0].mxu0 %v2332
      %v2522 = vpop.f32.mrb[0].mxu0
      %v2523 = vadd.f32 0.0, %v2522
      %v2524 = vpop.f32.mrb[0].mxu0
      %2525 = vmatprep.mubr.f32.mxu0 0.0
      %2526 = vmatmul.mubr.f32.gmra.mrb[0].mxu0 %v2335
      %v2527 = vpop.f32.mrb[0].mxu0
      %v2528 = vadd.f32 0.0, %v2527
      %v2529 = vpop.f32.mrb[0].mxu0
      %2530 = vmatprep.mubr.f32.mxu0 0.0
      %2531 = vmatmul.mubr.f32.gmra.mrb[0].mxu0 %v2338
      %v2532 = vpop.f32.mrb[0].mxu0
      %v2533 = vadd.f32 0.0, %v2532
      %v2534 = vpop.f32.mrb[0].mxu0
      %2535 = vmatprep.mubr.f32.mxu0 0.0
      %2536 = vmatmul.mubr.f32.gmra.mrb[0].mxu0 %v2341
      %v2537 = vpop.f32.mrb[0].mxu0
      %v2538 = vadd.f32 0.0, %v2537
      %v2539 = vpop.f32.mrb[0].mxu0
      %2540 = vmatprep.mubr.f32.mxu0 0.0
      %2541 = vmatmul.mubr.f32.gmra.mrb[0].mxu0 %v2344
      %v2542 = vpop.f32.mrb[0].mxu0
      %v2543 = vadd.f32 0.0, %v2542
      %v2544 = vpop.f32.mrb[0].mxu0
      %2545 = vmatprep.mubr.f32.mxu0 0.0
      %2546 = vmatmul.mubr.f32.gmra.mrb[0].mxu0 %v2347
      %v2547 = vpop.f32.mrb[0].mxu0
      %v2548 = vadd.f32 0.0, %v2547
      %v2549 = vpop.f32.mrb[0].mxu0
      %2550 = vmatprep.mubr.f32.mxu0 0.0
      %2551 = vmatmul.mubr.f32.gmra.mrb[0].mxu0 %v2350
      %v2552 = vpop.f32.mrb[0].mxu0
      %v2553 = vadd.f32 0.0, %v2552
      %v2554 = vpop.f32.mrb[0].mxu0
      %2555 = vmatprep.mubr.f32.mxu0 0.0
      %2556 = vmatmul.mubr.f32.gmra.mrb[0].mxu0 %v2353
      %v2557 = vpop.f32.mrb[0].mxu0
      %v2558 = vadd.f32 0.0, %v2557
      %v2559 = vpop.f32.mrb[0].mxu0
      %2560 = vmatprep.mubr.f32.mxu0 0.0
      %2561 = vmatmul.mubr.f32.gmra.mrb[0].mxu0 %v2356
      %v2562 = vpop.f32.mrb[0].mxu0
      %v2563 = vadd.f32 0.0, %v2562
      %v2564 = vpop.f32.mrb[0].mxu0
      %2565 = vdwg.mxu0
      %v2566 = vadd.f32 %v2216, %v2428
      %v2567 = vadd.f32 %v2217, %v2433
      %v2568 = vadd.f32 %v2218, %v2438
      %v2569 = vadd.f32 %v2219, %v2443
      %v2570 = vadd.f32 %v2220, %v2448
      %v2571 = vadd.f32 %v2221, %v2453
      %v2572 = vadd.f32 %v2222, %v2458
      %v2573 = vadd.f32 %v2223, %v2463
      %v2574 = vadd.f32 %v2224, %v2468
      %v2575 = vadd.f32 %v2225, %v2473
      %v2576 = vadd.f32 %v2226, %v2478
      %v2577 = vadd.f32 %v2227, %v2483
      %v2578 = vadd.f32 %v2228, %v2488
      %v2579 = vadd.f32 %v2229, %v2493
      %v2580 = vadd.f32 %v2230, %v2498
      %v2581 = vadd.f32 %v2231, %v2503
      %v2582 = vadd.f32 %v2232, %v2508
      %v2583 = vadd.f32 %v2233, %v2513
      %v2584 = vadd.f32 %v2234, %v2518
      %v2585 = vadd.f32 %v2235, %v2523
      %v2586 = vadd.f32 %v2236, %v2528
      %v2587 = vadd.f32 %v2237, %v2533
      %v2588 = vadd.f32 %v2238, %v2538
      %v2589 = vadd.f32 %v2239, %v2543
      %v2590 = vadd.f32 %v2240, %v2548
      %v2591 = vadd.f32 %v2241, %v2553
      %v2592 = vadd.f32 %v2242, %v2558
      %v2593 = vadd.f32 %v2243, %v2563
      %v2594 = vld [vmem:[%s193 + $0x21] sm:$0xff]
      %v2595 = vld [vmem:[%s193 + $0x29] sm:$0xff]
      %v2596 = vld [vmem:[%s193 + $0x31] sm:$0xff]
      %v2597 = vld [vmem:[%s193 + $0x39] sm:$0xff]
      %v2598 = vld [vmem:[%s193 + $0x41] sm:$0xff]
      %v2599 = vld [vmem:[%s193 + $0x49] sm:$0xff]
      %v2600 = vld [vmem:[%s193 + $0x51] sm:$0xff]
      %v2601 = vld [vmem:[%s193 + $0x59] sm:$0xff]
      %v2602 = vld [vmem:[%s193 + $0x61] sm:$0xff]
      %v2603 = vld [vmem:[%s193 + $0x69] sm:$0xff]
      %v2604 = vld [vmem:[%s193 + $0x71] sm:$0xff]
      %v2605 = vld [vmem:[%s193 + $0x79] sm:$0xff]
      %v2606 = vld [vmem:[%s193 + $0x81] sm:$0xff]
      %v2607 = vld [vmem:[%s193 + $0x89] sm:$0xff]
      %v2608 = vld [vmem:[%s193 + $0x91] sm:$0xff]
      %v2609 = vld [vmem:[%s193 + $0x99] sm:$0xff]
      %v2610 = vld [vmem:[%s193 + $0xa1] sm:$0xff]
      %v2611 = vld [vmem:[%s193 + $0xa9] sm:$0xff]
      %v2612 = vld [vmem:[%s193 + $0xb1] sm:$0xff]
      %v2613 = vld [vmem:[%s193 + $0xb9] sm:$0xff]
      %v2614 = vld [vmem:[%s193 + $0xc1] sm:$0xff]
      %v2615 = vld [vmem:[%s193 + $0xc9] sm:$0xff]
      %v2616 = vld [vmem:[%s193 + $0xd1] sm:$0xff]
      %v2617 = vld [vmem:[%s193 + $0xd9] sm:$0xff]
      %v2618 = vld [vmem:[%s193 + $0xe1] sm:$0xff]
      %v2619 = vld [vmem:[%s193 + $0xe9] sm:$0xff]
      %v2620 = vld [vmem:[%s193 + $0xf1] sm:$0xff]
      %v2621 = vld [vmem:[%s193 + $0xf9] sm:$0xff]
      %s2622 = scalar_lea.vmem %s1, 28
      %v2623 = vld [vmem:[%s2622] sm:$0x7]
      %v2625 = vsel %vm258, %v2594, 0
      %v2628 = vsel %vm258, %v2595, 0
      %v2631 = vsel %vm258, %v2596, 0
      %v2634 = vsel %vm258, %v2597, 0
      %v2637 = vsel %vm258, %v2598, 0
      %v2640 = vsel %vm258, %v2599, 0
      %v2643 = vsel %vm258, %v2600, 0
      %v2646 = vsel %vm258, %v2601, 0
      %v2649 = vsel %vm258, %v2602, 0
      %v2652 = vsel %vm258, %v2603, 0
      %v2655 = vsel %vm258, %v2604, 0
      %v2658 = vsel %vm258, %v2605, 0
      %v2661 = vsel %vm258, %v2606, 0
      %v2664 = vsel %vm258, %v2607, 0
      %v2667 = vsel %vm258, %v2608, 0
      %v2670 = vsel %vm258, %v2609, 0
      %v2673 = vsel %vm258, %v2610, 0
      %v2676 = vsel %vm258, %v2611, 0
      %v2679 = vsel %vm258, %v2612, 0
      %v2682 = vsel %vm258, %v2613, 0
      %v2685 = vsel %vm258, %v2614, 0
      %v2688 = vsel %vm258, %v2615, 0
      %v2691 = vsel %vm258, %v2616, 0
      %v2694 = vsel %vm258, %v2617, 0
      %v2697 = vsel %vm258, %v2618, 0
      %v2700 = vsel %vm258, %v2619, 0
      %v2703 = vsel %vm258, %v2620, 0
      %v2706 = vsel %vm258, %v2621, 0
      %v2709 = vsel %vm343, %v2623, 0
      %2711 = vmatprep.subr.mxu0 0.0
      %2712 = vmatpush1.msra.mxu0 %v2709
      %2713 = vmatprep.subr.mxu0 0.0
      %2714 = vmatpush1.msra.mxu0 0.0
      %2715 = vmatprep.subr.mxu0 0.0
      %2716 = vmatpush1.msra.mxu0 0.0
      %2717 = vmatprep.subr.mxu0 0.0
      %2718 = vmatpush1.msra.mxu0 0.0
      %2719 = vmatprep.subr.mxu0 0.0
      %2720 = vmatpush1.msra.mxu0 0.0
      %2721 = vmatprep.subr.mxu0 0.0
      %2722 = vmatpush1.msra.mxu0 0.0
      %2723 = vmatprep.subr.mxu0 0.0
      %2724 = vmatpush1.msra.mxu0 0.0
      %2725 = vmatprep.subr.mxu0 0.0
      %2726 = vmatpush1.msra.mxu0 0.0
      %2727 = vmatprep.subr.mxu0 0.0
      %2728 = vmatpush1.msra.mxu0 0.0
      %2729 = vmatprep.subr.mxu0 0.0
      %2730 = vmatpush1.msra.mxu0 0.0
      %2731 = vmatprep.subr.mxu0 0.0
      %2732 = vmatpush1.msra.mxu0 0.0
      %2733 = vmatprep.subr.mxu0 0.0
      %2734 = vmatpush1.msra.mxu0 0.0
      %2735 = vmatprep.subr.mxu0 0.0
      %2736 = vmatpush1.msra.mxu0 0.0
      %2737 = vmatprep.subr.mxu0 0.0
      %2738 = vmatpush1.msra.mxu0 0.0
      %2739 = vmatprep.subr.mxu0 0.0
      %2740 = vmatpush1.msra.mxu0 0.0
      %2741 = vmatprep.subr.mxu0 0.0
      %2742 = vmatpush1.msra.mxu0 0.0
      %2743 = vmatprep.subr.mxu0 0.0
      %2744 = vmatpush1.msra.mxu0 0.0
      %2745 = vmatprep.subr.mxu0 0.0
      %2746 = vmatpush1.msra.mxu0 0.0
      %2747 = vmatprep.subr.mxu0 0.0
      %2748 = vmatpush1.msra.mxu0 0.0
      %2749 = vmatprep.subr.mxu0 0.0
      %2750 = vmatpush1.msra.mxu0 0.0
      %2751 = vmatprep.subr.mxu0 0.0
      %2752 = vmatpush1.msra.mxu0 0.0
      %2753 = vmatprep.subr.mxu0 0.0
      %2754 = vmatpush1.msra.mxu0 0.0
      %2755 = vmatprep.subr.mxu0 0.0
      %2756 = vmatpush1.msra.mxu0 0.0
      %2757 = vmatprep.subr.mxu0 0.0
      %2758 = vmatpush1.msra.mxu0 0.0
      %2759 = vmatprep.subr.mxu0 0.0
      %2760 = vmatpush1.msra.mxu0 0.0
      %2761 = vmatprep.subr.mxu0 0.0
      %2762 = vmatpush1.msra.mxu0 0.0
      %2763 = vmatprep.subr.mxu0 0.0
      %2764 = vmatpush1.msra.mxu0 0.0
      %2765 = vmatprep.subr.mxu0 0.0
      %2766 = vmatpush1.msra.mxu0 0.0
      %2767 = vmatprep.subr.mxu0 0.0
      %2768 = vmatpush1.msra.mxu0 0.0
      %2769 = vmatprep.subr.mxu0 0.0
      %2770 = vmatpush1.msra.mxu0 0.0
      %2771 = vmatprep.subr.mxu0 0.0
      %2772 = vmatpush1.msra.mxu0 0.0
      %2773 = vmatprep.subr.mxu0 0.0
      %2774 = vmatpush1.msra.mxu0 0.0
      %2775 = vmatprep.mubr.f32.mxu0 0.0
      %2776 = vmatmul.mubr.f32.gmra.mrb[0].mxu0 %v2625
      %v2777 = vpop.f32.mrb[0].mxu0
      %v2778 = vadd.f32 0.0, %v2777
      %v2779 = vpop.f32.mrb[0].mxu0
      %2780 = vmatprep.mubr.f32.mxu0 0.0
      %2781 = vmatmul.mubr.f32.gmra.mrb[0].mxu0 %v2628
      %v2782 = vpop.f32.mrb[0].mxu0
      %v2783 = vadd.f32 0.0, %v2782
      %v2784 = vpop.f32.mrb[0].mxu0
      %2785 = vmatprep.mubr.f32.mxu0 0.0
      %2786 = vmatmul.mubr.f32.gmra.mrb[0].mxu0 %v2631
      %v2787 = vpop.f32.mrb[0].mxu0
      %v2788 = vadd.f32 0.0, %v2787
      %v2789 = vpop.f32.mrb[0].mxu0
      %2790 = vmatprep.mubr.f32.mxu0 0.0
      %2791 = vmatmul.mubr.f32.gmra.mrb[0].mxu0 %v2634
      %v2792 = vpop.f32.mrb[0].mxu0
      %v2793 = vadd.f32 0.0, %v2792
      %v2794 = vpop.f32.mrb[0].mxu0
      %2795 = vmatprep.mubr.f32.mxu0 0.0
      %2796 = vmatmul.mubr.f32.gmra.mrb[0].mxu0 %v2637
      %v2797 = vpop.f32.mrb[0].mxu0
      %v2798 = vadd.f32 0.0, %v2797
      %v2799 = vpop.f32.mrb[0].mxu0
      %2800 = vmatprep.mubr.f32.mxu0 0.0
      %2801 = vmatmul.mubr.f32.gmra.mrb[0].mxu0 %v2640
      %v2802 = vpop.f32.mrb[0].mxu0
      %v2803 = vadd.f32 0.0, %v2802
      %v2804 = vpop.f32.mrb[0].mxu0
      %2805 = vmatprep.mubr.f32.mxu0 0.0
      %2806 = vmatmul.mubr.f32.gmra.mrb[0].mxu0 %v2643
      %v2807 = vpop.f32.mrb[0].mxu0
      %v2808 = vadd.f32 0.0, %v2807
      %v2809 = vpop.f32.mrb[0].mxu0
      %2810 = vmatprep.mubr.f32.mxu0 0.0
      %2811 = vmatmul.mubr.f32.gmra.mrb[0].mxu0 %v2646
      %v2812 = vpop.f32.mrb[0].mxu0
      %v2813 = vadd.f32 0.0, %v2812
      %v2814 = vpop.f32.mrb[0].mxu0
      %2815 = vmatprep.mubr.f32.mxu0 0.0
      %2816 = vmatmul.mubr.f32.gmra.mrb[0].mxu0 %v2649
      %v2817 = vpop.f32.mrb[0].mxu0
      %v2818 = vadd.f32 0.0, %v2817
      %v2819 = vpop.f32.mrb[0].mxu0
      %2820 = vmatprep.mubr.f32.mxu0 0.0
      %2821 = vmatmul.mubr.f32.gmra.mrb[0].mxu0 %v2652
      %v2822 = vpop.f32.mrb[0].mxu0
      %v2823 = vadd.f32 0.0, %v2822
      %v2824 = vpop.f32.mrb[0].mxu0
      %2825 = vmatprep.mubr.f32.mxu0 0.0
      %2826 = vmatmul.mubr.f32.gmra.mrb[0].mxu0 %v2655
      %v2827 = vpop.f32.mrb[0].mxu0
      %v2828 = vadd.f32 0.0, %v2827
      %v2829 = vpop.f32.mrb[0].mxu0
      %2830 = vmatprep.mubr.f32.mxu0 0.0
      %2831 = vmatmul.mubr.f32.gmra.mrb[0].mxu0 %v2658
      %v2832 = vpop.f32.mrb[0].mxu0
      %v2833 = vadd.f32 0.0, %v2832
      %v2834 = vpop.f32.mrb[0].mxu0
      %2835 = vmatprep.mubr.f32.mxu0 0.0
      %2836 = vmatmul.mubr.f32.gmra.mrb[0].mxu0 %v2661
      %v2837 = vpop.f32.mrb[0].mxu0
      %v2838 = vadd.f32 0.0, %v2837
      %v2839 = vpop.f32.mrb[0].mxu0
      %2840 = vmatprep.mubr.f32.mxu0 0.0
      %2841 = vmatmul.mubr.f32.gmra.mrb[0].mxu0 %v2664
      %v2842 = vpop.f32.mrb[0].mxu0
      %v2843 = vadd.f32 0.0, %v2842
      %v2844 = vpop.f32.mrb[0].mxu0
      %2845 = vmatprep.mubr.f32.mxu0 0.0
      %2846 = vmatmul.mubr.f32.gmra.mrb[0].mxu0 %v2667
      %v2847 = vpop.f32.mrb[0].mxu0
      %v2848 = vadd.f32 0.0, %v2847
      %v2849 = vpop.f32.mrb[0].mxu0
      %2850 = vmatprep.mubr.f32.mxu0 0.0
      %2851 = vmatmul.mubr.f32.gmra.mrb[0].mxu0 %v2670
      %v2852 = vpop.f32.mrb[0].mxu0
      %v2853 = vadd.f32 0.0, %v2852
      %v2854 = vpop.f32.mrb[0].mxu0
      %2855 = vmatprep.mubr.f32.mxu0 0.0
      %2856 = vmatmul.mubr.f32.gmra.mrb[0].mxu0 %v2673
      %v2857 = vpop.f32.mrb[0].mxu0
      %v2858 = vadd.f32 0.0, %v2857
      %v2859 = vpop.f32.mrb[0].mxu0
      %2860 = vmatprep.mubr.f32.mxu0 0.0
      %2861 = vmatmul.mubr.f32.gmra.mrb[0].mxu0 %v2676
      %v2862 = vpop.f32.mrb[0].mxu0
      %v2863 = vadd.f32 0.0, %v2862
      %v2864 = vpop.f32.mrb[0].mxu0
      %2865 = vmatprep.mubr.f32.mxu0 0.0
      %2866 = vmatmul.mubr.f32.gmra.mrb[0].mxu0 %v2679
      %v2867 = vpop.f32.mrb[0].mxu0
      %v2868 = vadd.f32 0.0, %v2867
      %v2869 = vpop.f32.mrb[0].mxu0
      %2870 = vmatprep.mubr.f32.mxu0 0.0
      %2871 = vmatmul.mubr.f32.gmra.mrb[0].mxu0 %v2682
      %v2872 = vpop.f32.mrb[0].mxu0
      %v2873 = vadd.f32 0.0, %v2872
      %v2874 = vpop.f32.mrb[0].mxu0
      %2875 = vmatprep.mubr.f32.mxu0 0.0
      %2876 = vmatmul.mubr.f32.gmra.mrb[0].mxu0 %v2685
      %v2877 = vpop.f32.mrb[0].mxu0
      %v2878 = vadd.f32 0.0, %v2877
      %v2879 = vpop.f32.mrb[0].mxu0
      %2880 = vmatprep.mubr.f32.mxu0 0.0
      %2881 = vmatmul.mubr.f32.gmra.mrb[0].mxu0 %v2688
      %v2882 = vpop.f32.mrb[0].mxu0
      %v2883 = vadd.f32 0.0, %v2882
      %v2884 = vpop.f32.mrb[0].mxu0
      %2885 = vmatprep.mubr.f32.mxu0 0.0
      %2886 = vmatmul.mubr.f32.gmra.mrb[0].mxu0 %v2691
      %v2887 = vpop.f32.mrb[0].mxu0
      %v2888 = vadd.f32 0.0, %v2887
      %v2889 = vpop.f32.mrb[0].mxu0
      %2890 = vmatprep.mubr.f32.mxu0 0.0
      %2891 = vmatmul.mubr.f32.gmra.mrb[0].mxu0 %v2694
      %v2892 = vpop.f32.mrb[0].mxu0
      %v2893 = vadd.f32 0.0, %v2892
      %v2894 = vpop.f32.mrb[0].mxu0
      %2895 = vmatprep.mubr.f32.mxu0 0.0
      %2896 = vmatmul.mubr.f32.gmra.mrb[0].mxu0 %v2697
      %v2897 = vpop.f32.mrb[0].mxu0
      %v2898 = vadd.f32 0.0, %v2897
      %v2899 = vpop.f32.mrb[0].mxu0
      %2900 = vmatprep.mubr.f32.mxu0 0.0
      %2901 = vmatmul.mubr.f32.gmra.mrb[0].mxu0 %v2700
      %v2902 = vpop.f32.mrb[0].mxu0
      %v2903 = vadd.f32 0.0, %v2902
      %v2904 = vpop.f32.mrb[0].mxu0
      %2905 = vmatprep.mubr.f32.mxu0 0.0
      %2906 = vmatmul.mubr.f32.gmra.mrb[0].mxu0 %v2703
      %v2907 = vpop.f32.mrb[0].mxu0
      %v2908 = vadd.f32 0.0, %v2907
      %v2909 = vpop.f32.mrb[0].mxu0
      %2910 = vmatprep.mubr.f32.mxu0 0.0
      %2911 = vmatmul.mubr.f32.gmra.mrb[0].mxu0 %v2706
      %v2912 = vpop.f32.mrb[0].mxu0
      %v2913 = vadd.f32 0.0, %v2912
      %v2914 = vpop.f32.mrb[0].mxu0
      %2915 = vdwg.mxu0
      %v2916 = vadd.f32 %v2566, %v2778
      %v2917 = vadd.f32 %v2567, %v2783
      %v2918 = vadd.f32 %v2568, %v2788
      %v2919 = vadd.f32 %v2569, %v2793
      %v2920 = vadd.f32 %v2570, %v2798
      %v2921 = vadd.f32 %v2571, %v2803
      %v2922 = vadd.f32 %v2572, %v2808
      %v2923 = vadd.f32 %v2573, %v2813
      %v2924 = vadd.f32 %v2574, %v2818
      %v2925 = vadd.f32 %v2575, %v2823
      %v2926 = vadd.f32 %v2576, %v2828
      %v2927 = vadd.f32 %v2577, %v2833
      %v2928 = vadd.f32 %v2578, %v2838
      %v2929 = vadd.f32 %v2579, %v2843
      %v2930 = vadd.f32 %v2580, %v2848
      %v2931 = vadd.f32 %v2581, %v2853
      %v2932 = vadd.f32 %v2582, %v2858
      %v2933 = vadd.f32 %v2583, %v2863
      %v2934 = vadd.f32 %v2584, %v2868
      %v2935 = vadd.f32 %v2585, %v2873
      %v2936 = vadd.f32 %v2586, %v2878
      %v2937 = vadd.f32 %v2587, %v2883
      %v2938 = vadd.f32 %v2588, %v2888
      %v2939 = vadd.f32 %v2589, %v2893
      %v2940 = vadd.f32 %v2590, %v2898
      %v2941 = vadd.f32 %v2591, %v2903
      %v2942 = vadd.f32 %v2592, %v2908
      %v2943 = vadd.f32 %v2593, %v2913
      %v2944 = vld [vmem:[%s193 + $0x22] sm:$0xff]
      %v2945 = vld [vmem:[%s193 + $0x2a] sm:$0xff]
      %v2946 = vld [vmem:[%s193 + $0x32] sm:$0xff]
      %v2947 = vld [vmem:[%s193 + $0x3a] sm:$0xff]
      %v2948 = vld [vmem:[%s193 + $0x42] sm:$0xff]
      %v2949 = vld [vmem:[%s193 + $0x4a] sm:$0xff]
      %v2950 = vld [vmem:[%s193 + $0x52] sm:$0xff]
      %v2951 = vld [vmem:[%s193 + $0x5a] sm:$0xff]
      %v2952 = vld [vmem:[%s193 + $0x62] sm:$0xff]
      %v2953 = vld [vmem:[%s193 + $0x6a] sm:$0xff]
      %v2954 = vld [vmem:[%s193 + $0x72] sm:$0xff]
      %v2955 = vld [vmem:[%s193 + $0x7a] sm:$0xff]
      %v2956 = vld [vmem:[%s193 + $0x82] sm:$0xff]
      %v2957 = vld [vmem:[%s193 + $0x8a] sm:$0xff]
      %v2958 = vld [vmem:[%s193 + $0x92] sm:$0xff]
      %v2959 = vld [vmem:[%s193 + $0x9a] sm:$0xff]
      %v2960 = vld [vmem:[%s193 + $0xa2] sm:$0xff]
      %v2961 = vld [vmem:[%s193 + $0xaa] sm:$0xff]
      %v2962 = vld [vmem:[%s193 + $0xb2] sm:$0xff]
      %v2963 = vld [vmem:[%s193 + $0xba] sm:$0xff]
      %v2964 = vld [vmem:[%s193 + $0xc2] sm:$0xff]
      %v2965 = vld [vmem:[%s193 + $0xca] sm:$0xff]
      %v2966 = vld [vmem:[%s193 + $0xd2] sm:$0xff]
      %v2967 = vld [vmem:[%s193 + $0xda] sm:$0xff]
      %v2968 = vld [vmem:[%s193 + $0xe2] sm:$0xff]
      %v2969 = vld [vmem:[%s193 + $0xea] sm:$0xff]
      %v2970 = vld [vmem:[%s193 + $0xf2] sm:$0xff]
      %v2971 = vld [vmem:[%s193 + $0xfa] sm:$0xff]
      %s2972 = scalar_lea.vmem %s1, 32
      %v2973 = vld [vmem:[%s2972] sm:$0x7]
      %v2975 = vsel %vm258, %v2944, 0
      %v2978 = vsel %vm258, %v2945, 0
      %v2981 = vsel %vm258, %v2946, 0
      %v2984 = vsel %vm258, %v2947, 0
      %v2987 = vsel %vm258, %v2948, 0
      %v2990 = vsel %vm258, %v2949, 0
      %v2993 = vsel %vm258, %v2950, 0
      %v2996 = vsel %vm258, %v2951, 0
      %v2999 = vsel %vm258, %v2952, 0
      %v3002 = vsel %vm258, %v2953, 0
      %v3005 = vsel %vm258, %v2954, 0
      %v3008 = vsel %vm258, %v2955, 0
      %v3011 = vsel %vm258, %v2956, 0
      %v3014 = vsel %vm258, %v2957, 0
      %v3017 = vsel %vm258, %v2958, 0
      %v3020 = vsel %vm258, %v2959, 0
      %v3023 = vsel %vm258, %v2960, 0
      %v3026 = vsel %vm258, %v2961, 0
      %v3029 = vsel %vm258, %v2962, 0
      %v3032 = vsel %vm258, %v2963, 0
      %v3035 = vsel %vm258, %v2964, 0
      %v3038 = vsel %vm258, %v2965, 0
      %v3041 = vsel %vm258, %v2966, 0
      %v3044 = vsel %vm258, %v2967, 0
      %v3047 = vsel %vm258, %v2968, 0
      %v3050 = vsel %vm258, %v2969, 0
      %v3053 = vsel %vm258, %v2970, 0
      %v3056 = vsel %vm258, %v2971, 0
      %v3059 = vsel %vm343, %v2973, 0
      %3061 = vmatprep.subr.mxu0 0.0
      %3062 = vmatpush1.msra.mxu0 %v3059
      %3063 = vmatprep.subr.mxu0 0.0
      %3064 = vmatpush1.msra.mxu0 0.0
      %3065 = vmatprep.subr.mxu0 0.0
      %3066 = vmatpush1.msra.mxu0 0.0
      %3067 = vmatprep.subr.mxu0 0.0
      %3068 = vmatpush1.msra.mxu0 0.0
      %3069 = vmatprep.subr.mxu0 0.0
      %3070 = vmatpush1.msra.mxu0 0.0
      %3071 = vmatprep.subr.mxu0 0.0
      %3072 = vmatpush1.msra.mxu0 0.0
      %3073 = vmatprep.subr.mxu0 0.0
      %3074 = vmatpush1.msra.mxu0 0.0
      %3075 = vmatprep.subr.mxu0 0.0
      %3076 = vmatpush1.msra.mxu0 0.0
      %3077 = vmatprep.subr.mxu0 0.0
      %3078 = vmatpush1.msra.mxu0 0.0
      %3079 = vmatprep.subr.mxu0 0.0
      %3080 = vmatpush1.msra.mxu0 0.0
      %3081 = vmatprep.subr.mxu0 0.0
      %3082 = vmatpush1.msra.mxu0 0.0
      %3083 = vmatprep.subr.mxu0 0.0
      %3084 = vmatpush1.msra.mxu0 0.0
      %3085 = vmatprep.subr.mxu0 0.0
      %3086 = vmatpush1.msra.mxu0 0.0
      %3087 = vmatprep.subr.mxu0 0.0
      %3088 = vmatpush1.msra.mxu0 0.0
      %3089 = vmatprep.subr.mxu0 0.0
      %3090 = vmatpush1.msra.mxu0 0.0
      %3091 = vmatprep.subr.mxu0 0.0
      %3092 = vmatpush1.msra.mxu0 0.0
      %3093 = vmatprep.subr.mxu0 0.0
      %3094 = vmatpush1.msra.mxu0 0.0
      %3095 = vmatprep.subr.mxu0 0.0
      %3096 = vmatpush1.msra.mxu0 0.0
      %3097 = vmatprep.subr.mxu0 0.0
      %3098 = vmatpush1.msra.mxu0 0.0
      %3099 = vmatprep.subr.mxu0 0.0
      %3100 = vmatpush1.msra.mxu0 0.0
      %3101 = vmatprep.subr.mxu0 0.0
      %3102 = vmatpush1.msra.mxu0 0.0
      %3103 = vmatprep.subr.mxu0 0.0
      %3104 = vmatpush1.msra.mxu0 0.0
      %3105 = vmatprep.subr.mxu0 0.0
      %3106 = vmatpush1.msra.mxu0 0.0
      %3107 = vmatprep.subr.mxu0 0.0
      %3108 = vmatpush1.msra.mxu0 0.0
      %3109 = vmatprep.subr.mxu0 0.0
      %3110 = vmatpush1.msra.mxu0 0.0
      %3111 = vmatprep.subr.mxu0 0.0
      %3112 = vmatpush1.msra.mxu0 0.0
      %3113 = vmatprep.subr.mxu0 0.0
      %3114 = vmatpush1.msra.mxu0 0.0
      %3115 = vmatprep.subr.mxu0 0.0
      %3116 = vmatpush1.msra.mxu0 0.0
      %3117 = vmatprep.subr.mxu0 0.0
      %3118 = vmatpush1.msra.mxu0 0.0
      %3119 = vmatprep.subr.mxu0 0.0
      %3120 = vmatpush1.msra.mxu0 0.0
      %3121 = vmatprep.subr.mxu0 0.0
      %3122 = vmatpush1.msra.mxu0 0.0
      %3123 = vmatprep.subr.mxu0 0.0
      %3124 = vmatpush1.msra.mxu0 0.0
      %3125 = vmatprep.mubr.f32.mxu0 0.0
      %3126 = vmatmul.mubr.f32.gmra.mrb[0].mxu0 %v2975
      %v3127 = vpop.f32.mrb[0].mxu0
      %v3128 = vadd.f32 0.0, %v3127
      %v3129 = vpop.f32.mrb[0].mxu0
      %3130 = vmatprep.mubr.f32.mxu0 0.0
      %3131 = vmatmul.mubr.f32.gmra.mrb[0].mxu0 %v2978
      %v3132 = vpop.f32.mrb[0].mxu0
      %v3133 = vadd.f32 0.0, %v3132
      %v3134 = vpop.f32.mrb[0].mxu0
      %3135 = vmatprep.mubr.f32.mxu0 0.0
      %3136 = vmatmul.mubr.f32.gmra.mrb[0].mxu0 %v2981
      %v3137 = vpop.f32.mrb[0].mxu0
      %v3138 = vadd.f32 0.0, %v3137
      %v3139 = vpop.f32.mrb[0].mxu0
      %3140 = vmatprep.mubr.f32.mxu0 0.0
      %3141 = vmatmul.mubr.f32.gmra.mrb[0].mxu0 %v2984
      %v3142 = vpop.f32.mrb[0].mxu0
      %v3143 = vadd.f32 0.0, %v3142
      %v3144 = vpop.f32.mrb[0].mxu0
      %3145 = vmatprep.mubr.f32.mxu0 0.0
      %3146 = vmatmul.mubr.f32.gmra.mrb[0].mxu0 %v2987
      %v3147 = vpop.f32.mrb[0].mxu0
      %v3148 = vadd.f32 0.0, %v3147
      %v3149 = vpop.f32.mrb[0].mxu0
      %3150 = vmatprep.mubr.f32.mxu0 0.0
      %3151 = vmatmul.mubr.f32.gmra.mrb[0].mxu0 %v2990
      %v3152 = vpop.f32.mrb[0].mxu0
      %v3153 = vadd.f32 0.0, %v3152
      %v3154 = vpop.f32.mrb[0].mxu0
      %3155 = vmatprep.mubr.f32.mxu0 0.0
      %3156 = vmatmul.mubr.f32.gmra.mrb[0].mxu0 %v2993
      %v3157 = vpop.f32.mrb[0].mxu0
      %v3158 = vadd.f32 0.0, %v3157
      %v3159 = vpop.f32.mrb[0].mxu0
      %3160 = vmatprep.mubr.f32.mxu0 0.0
      %3161 = vmatmul.mubr.f32.gmra.mrb[0].mxu0 %v2996
      %v3162 = vpop.f32.mrb[0].mxu0
      %v3163 = vadd.f32 0.0, %v3162
      %v3164 = vpop.f32.mrb[0].mxu0
      %3165 = vmatprep.mubr.f32.mxu0 0.0
      %3166 = vmatmul.mubr.f32.gmra.mrb[0].mxu0 %v2999
      %v3167 = vpop.f32.mrb[0].mxu0
      %v3168 = vadd.f32 0.0, %v3167
      %v3169 = vpop.f32.mrb[0].mxu0
      %3170 = vmatprep.mubr.f32.mxu0 0.0
      %3171 = vmatmul.mubr.f32.gmra.mrb[0].mxu0 %v3002
      %v3172 = vpop.f32.mrb[0].mxu0
      %v3173 = vadd.f32 0.0, %v3172
      %v3174 = vpop.f32.mrb[0].mxu0
      %3175 = vmatprep.mubr.f32.mxu0 0.0
      %3176 = vmatmul.mubr.f32.gmra.mrb[0].mxu0 %v3005
      %v3177 = vpop.f32.mrb[0].mxu0
      %v3178 = vadd.f32 0.0, %v3177
      %v3179 = vpop.f32.mrb[0].mxu0
      %3180 = vmatprep.mubr.f32.mxu0 0.0
      %3181 = vmatmul.mubr.f32.gmra.mrb[0].mxu0 %v3008
      %v3182 = vpop.f32.mrb[0].mxu0
      %v3183 = vadd.f32 0.0, %v3182
      %v3184 = vpop.f32.mrb[0].mxu0
      %3185 = vmatprep.mubr.f32.mxu0 0.0
      %3186 = vmatmul.mubr.f32.gmra.mrb[0].mxu0 %v3011
      %v3187 = vpop.f32.mrb[0].mxu0
      %v3188 = vadd.f32 0.0, %v3187
      %v3189 = vpop.f32.mrb[0].mxu0
      %3190 = vmatprep.mubr.f32.mxu0 0.0
      %3191 = vmatmul.mubr.f32.gmra.mrb[0].mxu0 %v3014
      %v3192 = vpop.f32.mrb[0].mxu0
      %v3193 = vadd.f32 0.0, %v3192
      %v3194 = vpop.f32.mrb[0].mxu0
      %3195 = vmatprep.mubr.f32.mxu0 0.0
      %3196 = vmatmul.mubr.f32.gmra.mrb[0].mxu0 %v3017
      %v3197 = vpop.f32.mrb[0].mxu0
      %v3198 = vadd.f32 0.0, %v3197
      %v3199 = vpop.f32.mrb[0].mxu0
      %3200 = vmatprep.mubr.f32.mxu0 0.0
      %3201 = vmatmul.mubr.f32.gmra.mrb[0].mxu0 %v3020
      %v3202 = vpop.f32.mrb[0].mxu0
      %v3203 = vadd.f32 0.0, %v3202
      %v3204 = vpop.f32.mrb[0].mxu0
      %3205 = vmatprep.mubr.f32.mxu0 0.0
      %3206 = vmatmul.mubr.f32.gmra.mrb[0].mxu0 %v3023
      %v3207 = vpop.f32.mrb[0].mxu0
      %v3208 = vadd.f32 0.0, %v3207
      %v3209 = vpop.f32.mrb[0].mxu0
      %3210 = vmatprep.mubr.f32.mxu0 0.0
      %3211 = vmatmul.mubr.f32.gmra.mrb[0].mxu0 %v3026
      %v3212 = vpop.f32.mrb[0].mxu0
      %v3213 = vadd.f32 0.0, %v3212
      %v3214 = vpop.f32.mrb[0].mxu0
      %3215 = vmatprep.mubr.f32.mxu0 0.0
      %3216 = vmatmul.mubr.f32.gmra.mrb[0].mxu0 %v3029
      %v3217 = vpop.f32.mrb[0].mxu0
      %v3218 = vadd.f32 0.0, %v3217
      %v3219 = vpop.f32.mrb[0].mxu0
      %3220 = vmatprep.mubr.f32.mxu0 0.0
      %3221 = vmatmul.mubr.f32.gmra.mrb[0].mxu0 %v3032
      %v3222 = vpop.f32.mrb[0].mxu0
      %v3223 = vadd.f32 0.0, %v3222
      %v3224 = vpop.f32.mrb[0].mxu0
      %3225 = vmatprep.mubr.f32.mxu0 0.0
      %3226 = vmatmul.mubr.f32.gmra.mrb[0].mxu0 %v3035
      %v3227 = vpop.f32.mrb[0].mxu0
      %v3228 = vadd.f32 0.0, %v3227
      %v3229 = vpop.f32.mrb[0].mxu0
      %3230 = vmatprep.mubr.f32.mxu0 0.0
      %3231 = vmatmul.mubr.f32.gmra.mrb[0].mxu0 %v3038
      %v3232 = vpop.f32.mrb[0].mxu0
      %v3233 = vadd.f32 0.0, %v3232
      %v3234 = vpop.f32.mrb[0].mxu0
      %3235 = vmatprep.mubr.f32.mxu0 0.0
      %3236 = vmatmul.mubr.f32.gmra.mrb[0].mxu0 %v3041
      %v3237 = vpop.f32.mrb[0].mxu0
      %v3238 = vadd.f32 0.0, %v3237
      %v3239 = vpop.f32.mrb[0].mxu0
      %3240 = vmatprep.mubr.f32.mxu0 0.0
      %3241 = vmatmul.mubr.f32.gmra.mrb[0].mxu0 %v3044
      %v3242 = vpop.f32.mrb[0].mxu0
      %v3243 = vadd.f32 0.0, %v3242
      %v3244 = vpop.f32.mrb[0].mxu0
      %3245 = vmatprep.mubr.f32.mxu0 0.0
      %3246 = vmatmul.mubr.f32.gmra.mrb[0].mxu0 %v3047
      %v3247 = vpop.f32.mrb[0].mxu0
      %v3248 = vadd.f32 0.0, %v3247
      %v3249 = vpop.f32.mrb[0].mxu0
      %3250 = vmatprep.mubr.f32.mxu0 0.0
      %3251 = vmatmul.mubr.f32.gmra.mrb[0].mxu0 %v3050
      %v3252 = vpop.f32.mrb[0].mxu0
      %v3253 = vadd.f32 0.0, %v3252
      %v3254 = vpop.f32.mrb[0].mxu0
      %3255 = vmatprep.mubr.f32.mxu0 0.0
      %3256 = vmatmul.mubr.f32.gmra.mrb[0].mxu0 %v3053
      %v3257 = vpop.f32.mrb[0].mxu0
      %v3258 = vadd.f32 0.0, %v3257
      %v3259 = vpop.f32.mrb[0].mxu0
      %3260 = vmatprep.mubr.f32.mxu0 0.0
      %3261 = vmatmul.mubr.f32.gmra.mrb[0].mxu0 %v3056
      %v3262 = vpop.f32.mrb[0].mxu0
      %v3263 = vadd.f32 0.0, %v3262
      %v3264 = vpop.f32.mrb[0].mxu0
      %3265 = vdwg.mxu0
      %v3266 = vadd.f32 %v2916, %v3128
      %v3267 = vadd.f32 %v2917, %v3133
      %v3268 = vadd.f32 %v2918, %v3138
      %v3269 = vadd.f32 %v2919, %v3143
      %v3270 = vadd.f32 %v2920, %v3148
      %v3271 = vadd.f32 %v2921, %v3153
      %v3272 = vadd.f32 %v2922, %v3158
      %v3273 = vadd.f32 %v2923, %v3163
      %v3274 = vadd.f32 %v2924, %v3168
      %v3275 = vadd.f32 %v2925, %v3173
      %v3276 = vadd.f32 %v2926, %v3178
      %v3277 = vadd.f32 %v2927, %v3183
      %v3278 = vadd.f32 %v2928, %v3188
      %v3279 = vadd.f32 %v2929, %v3193
      %v3280 = vadd.f32 %v2930, %v3198
      %v3281 = vadd.f32 %v2931, %v3203
      %v3282 = vadd.f32 %v2932, %v3208
      %v3283 = vadd.f32 %v2933, %v3213
      %v3284 = vadd.f32 %v2934, %v3218
      %v3285 = vadd.f32 %v2935, %v3223
      %v3286 = vadd.f32 %v2936, %v3228
      %v3287 = vadd.f32 %v2937, %v3233
      %v3288 = vadd.f32 %v2938, %v3238
      %v3289 = vadd.f32 %v2939, %v3243
      %v3290 = vadd.f32 %v2940, %v3248
      %v3291 = vadd.f32 %v2941, %v3253
      %v3292 = vadd.f32 %v2942, %v3258
      %v3293 = vadd.f32 %v2943, %v3263
      %v3294 = vld [vmem:[%s2] sm:$0x1]
      %v3296 = vlaneseq
      %v3297 = vshrl.u32 %v3296, 7
      %v3298 = vsub.s32 0, %v3297
      %v3299 = vrot.slane %v3294, %v3298
      %v3301 = vadd.f32 %v3266, %v3299
      %v3302 = vadd.f32 %v3267, %v3299
      %v3303 = vadd.f32 %v3268, %v3299
      %v3304 = vadd.f32 %v3269, %v3299
      %v3305 = vadd.f32 %v3270, %v3299
      %v3306 = vadd.f32 %v3271, %v3299
      %v3307 = vadd.f32 %v3272, %v3299
      %v3308 = vadd.f32 %v3273, %v3299
      %v3309 = vadd.f32 %v3274, %v3299
      %v3310 = vadd.f32 %v3275, %v3299
      %v3311 = vadd.f32 %v3276, %v3299
      %v3312 = vadd.f32 %v3277, %v3299
      %v3313 = vadd.f32 %v3278, %v3299
      %v3314 = vadd.f32 %v3279, %v3299
      %v3315 = vadd.f32 %v3280, %v3299
      %v3316 = vadd.f32 %v3281, %v3299
      %v3317 = vadd.f32 %v3282, %v3299
      %v3318 = vadd.f32 %v3283, %v3299
      %v3319 = vadd.f32 %v3284, %v3299
      %v3320 = vadd.f32 %v3285, %v3299
      %v3321 = vadd.f32 %v3286, %v3299
      %v3322 = vadd.f32 %v3287, %v3299
      %v3323 = vadd.f32 %v3288, %v3299
      %v3324 = vadd.f32 %v3289, %v3299
      %v3325 = vadd.f32 %v3290, %v3299
      %v3326 = vadd.f32 %v3291, %v3299
      %v3327 = vadd.f32 %v3292, %v3299
      %v3328 = vadd.f32 %v3293, %v3299
      %vm3329 = vcmp.ge.f32.partialorder %v3301, 0.0
      %vm3330 = vcmp.ge.f32.partialorder %v3302, 0.0
      %vm3331 = vcmp.ge.f32.partialorder %v3303, 0.0
      %vm3332 = vcmp.ge.f32.partialorder %v3304, 0.0
      %vm3333 = vcmp.ge.f32.partialorder %v3305, 0.0
      %vm3334 = vcmp.ge.f32.partialorder %v3306, 0.0
      %vm3335 = vcmp.ge.f32.partialorder %v3307, 0.0
      %vm3336 = vcmp.ge.f32.partialorder %v3308, 0.0
      %vm3337 = vcmp.ge.f32.partialorder %v3309, 0.0
      %vm3338 = vcmp.ge.f32.partialorder %v3310, 0.0
      %vm3339 = vcmp.ge.f32.partialorder %v3311, 0.0
      %vm3340 = vcmp.ge.f32.partialorder %v3312, 0.0
      %vm3341 = vcmp.ge.f32.partialorder %v3313, 0.0
      %vm3342 = vcmp.ge.f32.partialorder %v3314, 0.0
      %vm3343 = vcmp.ge.f32.partialorder %v3315, 0.0
      %vm3344 = vcmp.ge.f32.partialorder %v3316, 0.0
      %vm3345 = vcmp.ge.f32.partialorder %v3317, 0.0
      %vm3346 = vcmp.ge.f32.partialorder %v3318, 0.0
      %vm3347 = vcmp.ge.f32.partialorder %v3319, 0.0
      %vm3348 = vcmp.ge.f32.partialorder %v3320, 0.0
      %vm3349 = vcmp.ge.f32.partialorder %v3321, 0.0
      %vm3350 = vcmp.ge.f32.partialorder %v3322, 0.0
      %vm3351 = vcmp.ge.f32.partialorder %v3323, 0.0
      %vm3352 = vcmp.ge.f32.partialorder %v3324, 0.0
      %vm3353 = vcmp.ge.f32.partialorder %v3325, 0.0
      %vm3354 = vcmp.ge.f32.partialorder %v3326, 0.0
      %vm3355 = vcmp.ge.f32.partialorder %v3327, 0.0
      %vm3356 = vcmp.ge.f32.partialorder %v3328, 0.0
      %s3357 = sld [smem:[#allocation2]]
      %v3358 = vstv %s3357
      %v3359 = vmul.f32 %v3358, %v3301
      %v3360 = vmul.f32 %v3358, %v3302
      %v3361 = vmul.f32 %v3358, %v3303
      %v3362 = vmul.f32 %v3358, %v3304
      %v3363 = vmul.f32 %v3358, %v3305
      %v3364 = vmul.f32 %v3358, %v3306
      %v3365 = vmul.f32 %v3358, %v3307
      %v3366 = vmul.f32 %v3358, %v3308
      %v3367 = vmul.f32 %v3358, %v3309
      %v3368 = vmul.f32 %v3358, %v3310
      %v3369 = vmul.f32 %v3358, %v3311
      %v3370 = vmul.f32 %v3358, %v3312
      %v3371 = vmul.f32 %v3358, %v3313
      %v3372 = vmul.f32 %v3358, %v3314
      %v3373 = vmul.f32 %v3358, %v3315
      %v3374 = vmul.f32 %v3358, %v3316
      %v3375 = vmul.f32 %v3358, %v3317
      %v3376 = vmul.f32 %v3358, %v3318
      %v3377 = vmul.f32 %v3358, %v3319
      %v3378 = vmul.f32 %v3358, %v3320
      %v3379 = vmul.f32 %v3358, %v3321
      %v3380 = vmul.f32 %v3358, %v3322
      %v3381 = vmul.f32 %v3358, %v3323
      %v3382 = vmul.f32 %v3358, %v3324
      %v3383 = vmul.f32 %v3358, %v3325
      %v3384 = vmul.f32 %v3358, %v3326
      %v3385 = vmul.f32 %v3358, %v3327
      %v3386 = vmul.f32 %v3358, %v3328
      %v3387 = vsel %vm3329, %v3301, %v3359
      %v3388 = vsel %vm3330, %v3302, %v3360
      %v3389 = vsel %vm3331, %v3303, %v3361
      %v3390 = vsel %vm3332, %v3304, %v3362
      %v3391 = vsel %vm3333, %v3305, %v3363
      %v3392 = vsel %vm3334, %v3306, %v3364
      %v3393 = vsel %vm3335, %v3307, %v3365
      %v3394 = vsel %vm3336, %v3308, %v3366
      %v3395 = vsel %vm3337, %v3309, %v3367
      %v3396 = vsel %vm3338, %v3310, %v3368
      %v3397 = vsel %vm3339, %v3311, %v3369
      %v3398 = vsel %vm3340, %v3312, %v3370
      %v3399 = vsel %vm3341, %v3313, %v3371
      %v3400 = vsel %vm3342, %v3314, %v3372
      %v3401 = vsel %vm3343, %v3315, %v3373
      %v3402 = vsel %vm3344, %v3316, %v3374
      %v3403 = vsel %vm3345, %v3317, %v3375
      %v3404 = vsel %vm3346, %v3318, %v3376
      %v3405 = vsel %vm3347, %v3319, %v3377
      %v3406 = vsel %vm3348, %v3320, %v3378
      %v3407 = vsel %vm3349, %v3321, %v3379
      %v3408 = vsel %vm3350, %v3322, %v3380
      %v3409 = vsel %vm3351, %v3323, %v3381
      %v3410 = vsel %vm3352, %v3324, %v3382
      %v3411 = vsel %vm3353, %v3325, %v3383
      %v3412 = vsel %vm3354, %v3326, %v3384
      %v3413 = vsel %vm3355, %v3327, %v3385
      %v3414 = vsel %vm3356, %v3328, %v3386
      %vm3415 = vcmask 80896
      %3416 = vst.msk [vmem:[%s198] sm:$0xff] %vm3415, %v3387
      %3417 = vst.msk [vmem:[%s198 + $0x8] sm:$0xff] %vm3415, %v3388
      %3418 = vst.msk [vmem:[%s198 + $0x10] sm:$0xff] %vm3415, %v3389
      %3419 = vst.msk [vmem:[%s198 + $0x18] sm:$0xff] %vm3415, %v3390
      %3420 = vst.msk [vmem:[%s198 + $0x20] sm:$0xff] %vm3415, %v3391
      %3421 = vst.msk [vmem:[%s198 + $0x28] sm:$0xff] %vm3415, %v3392
      %3422 = vst.msk [vmem:[%s198 + $0x30] sm:$0xff] %vm3415, %v3393
      %3423 = vst.msk [vmem:[%s198 + $0x38] sm:$0xff] %vm3415, %v3394
      %3424 = vst.msk [vmem:[%s198 + $0x40] sm:$0xff] %vm3415, %v3395
      %3425 = vst.msk [vmem:[%s198 + $0x48] sm:$0xff] %vm3415, %v3396
      %3426 = vst.msk [vmem:[%s198 + $0x50] sm:$0xff] %vm3415, %v3397
      %3427 = vst.msk [vmem:[%s198 + $0x58] sm:$0xff] %vm3415, %v3398
      %3428 = vst.msk [vmem:[%s198 + $0x60] sm:$0xff] %vm3415, %v3399
      %3429 = vst.msk [vmem:[%s198 + $0x68] sm:$0xff] %vm3415, %v3400
      %3430 = vst.msk [vmem:[%s198 + $0x70] sm:$0xff] %vm3415, %v3401
      %3431 = vst.msk [vmem:[%s198 + $0x78] sm:$0xff] %vm3415, %v3402
      %3432 = vst.msk [vmem:[%s198 + $0x80] sm:$0xff] %vm3415, %v3403
      %3433 = vst.msk [vmem:[%s198 + $0x88] sm:$0xff] %vm3415, %v3404
      %3434 = vst.msk [vmem:[%s198 + $0x90] sm:$0xff] %vm3415, %v3405
      %3435 = vst.msk [vmem:[%s198 + $0x98] sm:$0xff] %vm3415, %v3406
      %3436 = vst.msk [vmem:[%s198 + $0xa0] sm:$0xff] %vm3415, %v3407
      %3437 = vst.msk [vmem:[%s198 + $0xa8] sm:$0xff] %vm3415, %v3408
      %3438 = vst.msk [vmem:[%s198 + $0xb0] sm:$0xff] %vm3415, %v3409
      %3439 = vst.msk [vmem:[%s198 + $0xb8] sm:$0xff] %vm3415, %v3410
      %3440 = vst.msk [vmem:[%s198 + $0xc0] sm:$0xff] %vm3415, %v3411
      %3441 = vst.msk [vmem:[%s198 + $0xc8] sm:$0xff] %vm3415, %v3412
      %3442 = vst.msk [vmem:[%s198 + $0xd0] sm:$0xff] %vm3415, %v3413
      %3443 = vst.msk [vmem:[%s198 + $0xd8] sm:$0xff] %vm3415, %v3414
      %p3444 = scmp.lt.s32.totalorder %s16, 1
      %s3445 = scalar_select %p3444, %s16, 1
      %s3446 = smul.addr %s3445, 28
      %s3447 = smul.addr %s3446, 8
      %s3448 = scalar_lea.vmem %s4, %s3447
      // Predicated region
      $region37: #{pnet_forward.2} parent=35 // pred_check
        %p3449 = pneg %p123
      $region38: #{pnet_forward.2} parent=35 // pred_check_branch
        %3451 = sbr.rel (%p3449) target = $region40
      $region39: #{pnet_forward.2} parent=35 // pred_region
        _
      $region40: #{pnet_forward.2} parent=35 // pred_fallthru
        _
    $region36: #{pnet_forward.2} parent=5 // pred_fallthru
      _
    %p3452 = scmp.le.s32.totalorder 2, %s11
    // Predicated region
    $region41: #{pnet_forward.2} parent=5 // pred_check
      %p3453 = pneg %p3452
    $region42: #{pnet_forward.2} parent=5 // pred_check_branch
      %3455 = sbr.rel (%p3453) target = $region44
    $region43: #{pnet_forward.2} parent=5 // pred_region
      %s3456 = ssub.s32 %s11, 2
      // Predicated region
      $region45: #{pnet_forward.2} parent=43 // pred_check
        %p3457 = pneg %p129
      $region46: #{pnet_forward.2} parent=43 // pred_check_branch
        %3459 = sbr.rel (%p3457) target = $region48
      $region47: #{pnet_forward.2} parent=43 // pred_region
        %p3460 = scmp.lt.s32.totalorder %s17, 1
        %s3461 = scalar_select %p3460, %s17, 1
        %s3462 = smul.addr %s3461, 28
        %s3463 = smul.addr %s3462, 8
        %s3464 = scalar_lea.vmem %s4, %s3463
      $region48: #{pnet_forward.2} parent=43 // pred_fallthru
        _
    $region44: #{pnet_forward.2} parent=5 // pred_fallthru
      _
  $region6: #{pnet_forward.2} parent=0 // loop_footer
    %s15 = sadd.s32 1, %s11
  $region7: #{pnet_forward.2} parent=0 // loop_footer_branch
    %10 = sbr.rel target = $region3
  $region8: #{pnet_forward.2} parent=0 // loop_exit
    _

</llo_original>
